<compile_context>
chip_gen: v5e
topology: v5e:2x2
jax: 0.10.0
libtpu: 0.0.40
codegen_flags: <defaults>
</compile_context>

<pallas_src>
import functools

import numpy as np
import jax
import jax.numpy as jnp
from jax import lax
from jax.experimental import pallas as pl
from jax.experimental.pallas import tpu as pltpu

NEG_SLOPE = 0.1   # LeakyReLU(0.1)
BN_EPS = 1e-5

# (output-row phase r, padded-row offset, transposed-kernel row ky) describing
# ConvTranspose2d(kernel=4, stride=2, padding=1) as 4 stride-1 row taps.
_DECONV_TAPS = ((0, 0, 3), (0, 1, 1), (1, 1, 2), (1, 2, 0))


# --------------------------------------------------------------------------
# Host-side construction of constant matmul operands (params are concrete
# closure constants under jit, so numpy is fine here).
# --------------------------------------------------------------------------
class _Packer:
    """Packs many small 2-D constants into one (rows, 128k) slab; static handles."""

    def __init__(self, row_align):
        self._arrays, self._offsets = [], []
        self._rows, self._cols, self._align = 0, 0, row_align

    def add(self, arr):
        a = np.asarray(arr, np.float32)
        assert a.ndim == 2
        off = self._rows
        self._arrays.append(a)
        self._offsets.append(off)
        self._rows = off + -(-a.shape[0] // self._align) * self._align
        self._cols = max(self._cols, a.shape[1])
        return (off, a.shape[0], a.shape[1])            # static handle

    def finalize(self, dtype):
        rows = max(self._rows, 8)
        cols = max(-(-self._cols // 128) * 128, 128)
        slab = np.zeros((rows, cols), np.float32)
        for a, off in zip(self._arrays, self._offsets):
            slab[off:off + a.shape[0], :a.shape[1]] = a
        return jnp.asarray(slab, dtype=dtype)


def _conv_band(w_oihw, scale, Hin, Win, stride):
    """Banded matrices for a 3x3 'same' conv in the lane layout w*C+c (no pad columns).

    B[dy][wi*Cin+ci, wo*Cout+co] = w[co,ci,dy,dx] * scale[co]  with wi = stride*wo+dx-1.
    Out-of-range wi (the 'same' padding) is simply omitted (contributes zero).
    """
    w = np.asarray(w_oihw, np.float32)
    Cout, Cin, kh, kw = w.shape
    assert kh == 3 and kw == 3
    sc = np.asarray(scale, np.float32)
    Hout = (Hin + 2 - kh) // stride + 1
    Wout = (Win + 2 - kw) // stride + 1
    Bm = np.zeros((3, Win * Cin, Wout * Cout), np.float32)
    for dy in range(3):
        for dx in range(3):
            wt = w[:, :, dy, dx].T * sc[None, :]
            for wo in range(Wout):
                wi = stride * wo + dx - 1
                if 0 <= wi < Win:
                    Bm[dy, wi * Cin:(wi + 1) * Cin, wo * Cout:(wo + 1) * Cout] = wt
    return Bm, Hout, Wout


def _conv_rowmap(Bt, Hin, Hout, stride):
    """0/1 matrix: selects valid output rows (incl. stride-2 subsample), compacts the
    per-sample blocks, re-inserts zero border rows and performs the slab store."""
    Lc = (Bt - 1) * (Hin + 2) + stride * (Hout - 1) + 1
    M = np.zeros((Bt * (Hout + 2), Lc), np.float32)
    for b in range(Bt):
        for ho in range(Hout):
            M[b * (Hout + 2) + 1 + ho, b * (Hin + 2) + stride * ho] = 1.0
    return M, Lc


def _deconv_band(w_t, ch_off, Cg, Win):
    """Lane-mixing matrices (per 4 row taps) for ConvTranspose2d(k=4, s=2, p=1) for one
    concat-source channel group [ch_off, ch_off+Cg)."""
    w = np.asarray(w_t, np.float32)
    Cout = w.shape[1]
    Wout = 2 * Win
    M = np.zeros((4, Win * Cg, Wout * Cout), np.float32)
    for t, (_, _, ky) in enumerate(_DECONV_TAPS):
        for ox in range(Wout):
            for ix in range(Win):
                kx = ox - 2 * ix + 1
                if 0 <= kx < 4:
                    M[t, ix * Cg:(ix + 1) * Cg, ox * Cout:(ox + 1) * Cout] = \
                        w[ch_off:ch_off + Cg, :, ky, kx]
    return M


def _deconv_qmaps(Bt, Hin):
    """0/1 matrices interleaving the two deconv row phases into the padded dest slab."""
    Hout = 2 * Hin
    Ld = Bt * (Hin + 2) - 2
    Q = np.zeros((2, Bt * (Hout + 2), Ld), np.float32)
    for r in range(2):
        for b in range(Bt):
            for q in range(Hin):
                Q[r, b * (Hout + 2) + 1 + 2 * q + r, b * (Hin + 2) + q] = 1.0
    return Q, Ld


def _input_rowmap(Bt, H):
    """0/1 matrix scattering the (B*H, W*C) input block into the row-padded slab."""
    M = np.zeros((Bt * (H + 2), Bt * H), np.float32)
    for b in range(Bt):
        for h in range(H):
            M[b * (H + 2) + 1 + h, b * H + h] = 1.0
    return M


def _output_rowmap(Bt, H):
    """0/1 matrix gathering valid output rows into the dense (B*H, W*C) output block."""
    Lo = Bt * (H + 2) - 2
    M = np.zeros((Bt * H, Lo), np.float32)
    for b in range(Bt):
        for h in range(H):
            M[b * H + h, b * (H + 2) + h] = 1.0
    return M


def _tile_row(v, reps):
    return np.tile(np.asarray(v, np.float32), reps)[None, :]


def _pick_batch_tile(N):
    # Stack samples on the matmul M (sublane) axis to fill the MXU and amortize the
    # per-grid-step overhead, but keep >=2 grid steps when the batch allows it so
    # v7x's two TensorCores both get work.
    if N >= 16:
        return 8
    if N >= 4:
        return (N + 1) // 2
    return max(N, 1)


# --------------------------------------------------------------------------
# Fused U-Net forward: one pallas_call, all activations in VMEM scratch
# --------------------------------------------------------------------------
def unet_forward(params, x_nchw, batch_tile=None):
    N, C, H, W = x_nchw.shape
    assert H % 8 == 0 and W % 8 == 0, "spatial dims must be divisible by 8"
    p = params
    H2, W2, H4, W4, H8, W8 = H // 2, W // 2, H // 4, W // 4, H // 8, W // 8

    B = _pick_batch_tile(N) if batch_tile is None else batch_tile
    G = -(-N // B)
    NB = G * B

    wb = _Packer(row_align=16)        # bf16 MXU operands
    wf = _Packer(row_align=1)         # f32 BN-shift / bias rows
    plan = {}

    def add_conv(name, blk, Hin, Win, stride):
        Bm, Hout, Wout = _conv_band(blk["w"], blk["scale"], Hin, Win, stride)
        rm, Lc = _conv_rowmap(B, Hin, Hout, stride)
        plan[name] = dict(
            Lc=Lc,
            taps=[wb.add(Bm[d]) for d in range(3)],
            shift=wf.add(_tile_row(blk["shift"], Wout)),
            rowmap=wb.add(rm))

    add_conv("c1", p["conv1"], H, W, 2)
    add_conv("c2", p["conv2"], H2, W2, 2)
    add_conv("c21", p["conv2_1"], H4, W4, 1)
    add_conv("c3", p["conv3"], H4, W4, 2)
    add_conv("c31", p["conv3_1"], H8, W8, 1)

    def add_deconv(name, blk, Hin, Win):
        w = np.asarray(blk["w"], np.float32)
        ng = w.shape[0] // C                              # concat sources
        groups = []
        for g in range(ng):
            M = _deconv_band(w, g * C, C, Win)
            groups.append([wb.add(M[t]) for t in range(4)])
        Q, Ld = _deconv_qmaps(B, Hin)
        plan[name] = dict(
            Ld=Ld, groups=groups,
            bias=wf.add(_tile_row(blk["b"], 2 * Win)),
            q=[wb.add(Q[0]), wb.add(Q[1])])

    add_deconv("d2", p["deconv2"], H8, W8)
    add_deconv("d1", p["deconv1"], H4, W4)
    add_deconv("d0", p["deconv0"], H2, W2)

    ones = np.ones((C,), np.float32)
    Bx, _, _ = _conv_band(np.asarray(p["out_w"])[:, :C], ones, H, W, 1)   # source: x
    Bd, _, _ = _conv_band(np.asarray(p["out_w"])[:, C:], ones, H, W, 1)   # source: deconv0
    plan["out"] = dict(
        Lo=B * (H + 2) - 2,
        bx=[wb.add(Bx[d]) for d in range(3)],
        bd=[wb.add(Bd[d]) for d in range(3)],
        bias=wf.add(_tile_row(p["out_b"], W)),
        outmap=wb.add(_output_rowmap(B, H)))
    plan["xmap"] = wb.add(_input_rowmap(B, H))

    wb_arr = wb.finalize(jnp.bfloat16)
    wf_arr = wf.finalize(jnp.float32)

    # one row-padded f32 slab per activation (B per-sample blocks stacked on sublanes)
    scratch = [
        pltpu.VMEM((B * (H + 2), W * C), jnp.float32),    # xpad
        pltpu.VMEM((B * (H2 + 2), W2 * C), jnp.float32),  # out_conv1
        pltpu.VMEM((B * (H4 + 2), W4 * C), jnp.float32),  # conv2
        pltpu.VMEM((B * (H4 + 2), W4 * C), jnp.float32),  # out_conv2
        pltpu.VMEM((B * (H8 + 2), W8 * C), jnp.float32),  # conv3
        pltpu.VMEM((B * (H8 + 2), W8 * C), jnp.float32),  # out_conv3
        pltpu.VMEM((B * (H4 + 2), W4 * C), jnp.float32),  # out_deconv2
        pltpu.VMEM((B * (H2 + 2), W2 * C), jnp.float32),  # out_deconv1
        pltpu.VMEM((B * (H + 2), W * C), jnp.float32),    # out_deconv0
    ]

    f32, bf16 = jnp.float32, jnp.bfloat16

    def kernel(x_ref, wb_ref, wf_ref, out_ref,
               xpad, c1p, c2p, c21p, c3p, c31p, d2p, d1p, d0p):

        def wload(e):                                     # bf16 matmul operand
            off, r, c = e
            return wb_ref[off:off + r, 0:c]

        def fload(e):                                     # f32 row vector
            off, r, c = e
            return wf_ref[off:off + r, 0:c]

        def lrelu(v):
            return jnp.where(v >= 0.0, v, NEG_SLOPE * v)

        def mm(a, e):
            return jnp.dot(a.astype(bf16), wload(e), preferred_element_type=f32)

        # scatter the batch tile into the row-padded input slab (borders zeroed by the map)
        xpad[...] = jnp.dot(wload(plan["xmap"]), x_ref[...].astype(bf16),
                            preferred_element_type=f32)

        def conv(src, dst, name):
            e = plan[name]
            Lc = e["Lc"]
            acc = None
            for dy in range(3):                           # 3 row taps, banded matmuls
                a = mm(src[dy:dy + Lc, :], e["taps"][dy])
                acc = a if acc is None else acc + a
            y = lrelu(acc + fload(e["shift"]))            # BN shift + LeakyReLU in f32
            dst[...] = jnp.dot(wload(e["rowmap"]), y.astype(bf16),
                               preferred_element_type=f32)

        def deconv(srcs, dst, name):
            e = plan[name]
            Ld = e["Ld"]
            acc = [None, None]
            for src, taps in zip(srcs, e["groups"]):      # concat -> split-channel accum
                for t, (r, off, _) in enumerate(_DECONV_TAPS):
                    a = mm(src[off:off + Ld, :], taps[t])
                    acc[r] = a if acc[r] is None else acc[r] + a
            bias = fload(e["bias"])
            dst[...] = (
                jnp.dot(wload(e["q"][0]), lrelu(acc[0] + bias).astype(bf16),
                        preferred_element_type=f32)
                + jnp.dot(wload(e["q"][1]), lrelu(acc[1] + bias).astype(bf16),
                          preferred_element_type=f32))

        # ---- encoder ----
        conv(xpad, c1p, "c1")
        conv(c1p, c2p, "c2")
        conv(c2p, c21p, "c21")
        conv(c21p, c3p, "c3")
        conv(c3p, c31p, "c31")

        # ---- decoder (torch.cat -> two-source accumulation) ----
        deconv([c31p], d2p, "d2")
        deconv([c21p, d2p], d1p, "d1")
        deconv([c1p, d1p], d0p, "d0")

        # ---- output 3x3 conv (bias only) on concat(x, out_deconv0) ----
        e = plan["out"]
        Lo = e["Lo"]
        acc = None
        for dy in range(3):
            a = mm(xpad[dy:dy + Lo, :], e["bx"][dy]) + mm(d0p[dy:dy + Lo, :], e["bd"][dy])
            acc = a if acc is None else acc + a
        y = acc + fload(e["bias"])
        out_ref[...] = jnp.dot(wload(e["outmap"]).astype(f32), y,   # final gather in f32
                               preferred_element_type=f32)

    # ---- host-side layout: NCHW -> (N*H, W*C) lane layout w*C + c ----
    x3 = jnp.transpose(x_nchw, (0, 2, 3, 1)).astype(jnp.float32).reshape(N, H, W * C)
    if NB > N:
        x3 = jnp.concatenate([x3, jnp.zeros((NB - N, H, W * C), x3.dtype)], axis=0)
    x2 = x3.reshape(NB * H, W * C)

    out2 = pl.pallas_call(
        kernel,
        out_shape=jax.ShapeDtypeStruct((NB * H, W * C), jnp.float32),
        grid=(G,),
        in_specs=[
            pl.BlockSpec((B * H, W * C), lambda n: (n, 0)),
            pl.BlockSpec(wb_arr.shape, lambda n: (0, 0)),
            pl.BlockSpec(wf_arr.shape, lambda n: (0, 0)),
        ],
        out_specs=pl.BlockSpec((B * H, W * C), lambda n: (n, 0)),
        scratch_shapes=scratch,
        compiler_params=pltpu.CompilerParams(dimension_semantics=("parallel",)),
    )(x2, wb_arr, wf_arr)

    out = out2.reshape(NB, H, W, C)[:N]
    return jnp.transpose(out, (0, 3, 1, 2))               # NHWC -> NCHW


# --------------------------------------------------------------------------
# Pure-JAX reference (XLA convs, f32) for correctness checking
# --------------------------------------------------------------------------
def _conv_ref(x, w_oihw, scale, shift, stride, lrelu):
    kh = w_oihw.shape[2]
    pad = (kh - 1) // 2
    w = jnp.transpose(w_oihw, (2, 3, 1, 0))
    y = lax.conv_general_dilated(x, w, (stride, stride), ((pad, pad), (pad, pad)),
                                 dimension_numbers=("NHWC", "HWIO", "NHWC"))
    y = y * scale + shift
    return jnp.where(y >= 0, y, NEG_SLOPE * y) if lrelu else y


def _deconv_ref(x, w_t, b):
    w = jnp.transpose(w_t, (2, 3, 0, 1))[::-1, ::-1]
    y = lax.conv_general_dilated(x, w, (1, 1), ((2, 2), (2, 2)), lhs_dilation=(2, 2),
                                 dimension_numbers=("NHWC", "HWIO", "NHWC"))
    y = y + b
    return jnp.where(y >= 0, y, NEG_SLOPE * y)


def unet_ref(params, x_nchw):
    x = jnp.transpose(x_nchw, (0, 2, 3, 1))
    p = params

    def cblk(name, inp, stride):
        blk = p[name]
        return _conv_ref(inp, blk["w"], blk["scale"], blk["shift"], stride, True)

    out_conv1 = cblk("conv1", x, 2)
    out_conv2 = cblk("conv2_1", cblk("conv2", out_conv1, 2), 1)
    out_conv3 = cblk("conv3_1", cblk("conv3", out_conv2, 2), 1)
    out_deconv2 = _deconv_ref(out_conv3, p["deconv2"]["w"], p["deconv2"]["b"])
    concat2 = jnp.concatenate([out_conv2, out_deconv2], axis=-1)
    out_deconv1 = _deconv_ref(concat2, p["deconv1"]["w"], p["deconv1"]["b"])
    concat1 = jnp.concatenate([out_conv1, out_deconv1], axis=-1)
    out_deconv0 = _deconv_ref(concat1, p["deconv0"]["w"], p["deconv0"]["b"])
    concat0 = jnp.concatenate([x, out_deconv0], axis=-1)
    ones = jnp.ones((p["out_w"].shape[0],), x.dtype)
    out = _conv_ref(concat0, p["out_w"], ones, p["out_b"], 1, False)
    return jnp.transpose(out, (0, 3, 1, 2))


# --------------------------------------------------------------------------
# Deterministic parameter init (shapes follow U_net.__init__; in == out channels)
# --------------------------------------------------------------------------
def init_params(key, C, k):
    keys = iter(jax.random.split(key, 64))

    def nrm(shape, s=0.3):
        return (s * jax.random.normal(next(keys), shape)).astype(jnp.float32)

    def conv_block(cin, cout):
        w = nrm((cout, cin, k, k))                               # Conv2d, bias=False
        gamma = 1.0 + 0.1 * jax.random.normal(next(keys), (cout,))
        beta = 0.1 * jax.random.normal(next(keys), (cout,))
        rmean = 0.1 * jax.random.normal(next(keys), (cout,))
        rvar = 0.5 + jax.random.uniform(next(keys), (cout,))
        scale = (gamma / jnp.sqrt(rvar + BN_EPS)).astype(jnp.float32)
        shift = (beta - rmean * scale).astype(jnp.float32)
        return dict(w=w, scale=scale, shift=shift)               # BN folded (eval mode)

    def deconv_block(cin, cout):
        return dict(w=nrm((cin, cout, 4, 4)), b=nrm((cout,), 0.1))

    return dict(
        conv1=conv_block(C, C), conv2=conv_block(C, C), conv2_1=conv_block(C, C),
        conv3=conv_block(C, C), conv3_1=conv_block(C, C),
        deconv2=deconv_block(C, C), deconv1=deconv_block(2 * C, C),
        deconv0=deconv_block(2 * C, C),
        out_w=nrm((C, 2 * C, k, k)), out_b=nrm((C,), 0.1),
    )


if __name__ == "__main__":
    key = jax.random.PRNGKey(0)
    kp, kx = jax.random.split(key)
    N, C, H, W = 2, 4, 16, 16       # batch=2, channels=4, spatial=16
    K_SIZE = 3                       # kernel_size=3; dropout_rate unused in eval
    params = init_params(kp, C, K_SIZE)
    x = jax.random.normal(kx, (N, C, H, W), jnp.float32)

    fwd = jax.jit(functools.partial(unet_forward, params))
    out = jax.block_until_ready(fwd(x))
    assert out.shape == (N, C, H, W), out.shape

    ref = jax.block_until_ready(unet_ref(params, x))
    err = float(jnp.max(jnp.abs(out - ref)))
    scale = float(jnp.max(jnp.abs(ref)))
    # bf16 MXU operands through ~10 layers -> validate with a relative tolerance.
    assert err <= 5e-2 * max(scale, 1.0), (err, scale)

    print("KERNEL_OK")
</pallas_src>

<mosaic_0001>
module attributes {stable_mosaic.version = 11 : i64} {
  func.func @kernel(%arg0: i32, %arg1: memref<32x64xf32, #tpu.memory_space<vmem>>, %arg2: memref<1632x128xbf16, #tpu.memory_space<vmem>>, %arg3: memref<9x128xf32, #tpu.memory_space<vmem>>, %arg4: memref<32x64xf32, #tpu.memory_space<vmem>>, %arg5: memref<36x64xf32, #tpu.memory_space<vmem>>, %arg6: memref<20x32xf32, #tpu.memory_space<vmem>>, %arg7: memref<12x16xf32, #tpu.memory_space<vmem>>, %arg8: memref<12x16xf32, #tpu.memory_space<vmem>>, %arg9: memref<8x8xf32, #tpu.memory_space<vmem>>, %arg10: memref<8x8xf32, #tpu.memory_space<vmem>>, %arg11: memref<12x16xf32, #tpu.memory_space<vmem>>, %arg12: memref<20x32xf32, #tpu.memory_space<vmem>>, %arg13: memref<36x64xf32, #tpu.memory_space<vmem>>) attributes {dimension_semantics = [#tpu.dimension_semantics<parallel>], iteration_bounds = array<i64: 1>, scalar_prefetch = 0 : i64, scratch_operands = 9 : i64, tpu.core_type = #tpu.core_type<tc>, window_params = [{transform_indices = @transform_0, window_bounds = array<i64: 32, 64>}, {pipeline_mode = #tpu.pipeline_mode<synchronous>, transform_indices = @transform_1, window_bounds = array<i64: 1632, 128>}, {pipeline_mode = #tpu.pipeline_mode<synchronous>, transform_indices = @transform_2, window_bounds = array<i64: 9, 128>}, {transform_indices = @transform_3, window_bounds = array<i64: 32, 64>}]} {
    %c1584 = arith.constant 1584 : index
    %c0 = arith.constant 0 : index
    %0 = vector.load %arg2[%c1584, %c0] : memref<1632x128xbf16, #tpu.memory_space<vmem>>, vector<36x32xbf16>
    %c0_0 = arith.constant 0 : index
    %c0_1 = arith.constant 0 : index
    %1 = vector.load %arg1[%c0_0, %c0_1] : memref<32x64xf32, #tpu.memory_space<vmem>>, vector<32x64xf32>
    %2 = arith.truncf %1 : vector<32x64xf32> to vector<32x64xbf16>
    %cst = arith.constant dense<0.000000e+00> : vector<36x64xf32>
    %3 = tpu.matmul %0, %2, %cst {dimension_numbers = #tpu.dot_dimension_numbers<[1], [0], [0], [1], [0, 0, 1, 1], [], []>} : vector<36x32xbf16>, vector<32x64xbf16>, vector<36x64xf32> -> vector<36x64xf32>
    %c0_2 = arith.constant 0 : index
    %c0_3 = arith.constant 0 : index
    %4 = vector.load %arg5[%c0_2, %c0_3] : memref<36x64xf32, #tpu.memory_space<vmem>>, vector<36x64xf32>
    tpu.vector_store %arg5[%c0_2, %c0_3], %3 {strides = array<i32>} : memref<36x64xf32, #tpu.memory_space<vmem>>, vector<36x64xf32>,
    %c0_4 = arith.constant 0 : index
    %c0_5 = arith.constant 0 : index
    %5 = vector.load %arg5[%c0_4, %c0_5] : memref<36x64xf32, #tpu.memory_space<vmem>>, vector<33x64xf32>
    %6 = arith.truncf %5 : vector<33x64xf32> to vector<33x64xbf16>
    %c0_6 = arith.constant 0 : index
    %c0_7 = arith.constant 0 : index
    %7 = vector.load %arg2[%c0_6, %c0_7] : memref<1632x128xbf16, #tpu.memory_space<vmem>>, vector<64x32xbf16>
    %cst_8 = arith.constant dense<0.000000e+00> : vector<33x32xf32>
    %8 = tpu.matmul %6, %7, %cst_8 {dimension_numbers = #tpu.dot_dimension_numbers<[1], [0], [0], [1], [0, 0, 1, 1], [], []>} : vector<33x64xbf16>, vector<64x32xbf16>, vector<33x32xf32> -> vector<33x32xf32>
    %c1 = arith.constant 1 : index
    %c0_9 = arith.constant 0 : index
    %9 = vector.load %arg5[%c1, %c0_9] : memref<36x64xf32, #tpu.memory_space<vmem>>, vector<33x64xf32>
    %10 = arith.truncf %9 : vector<33x64xf32> to vector<33x64xbf16>
    %c64 = arith.constant 64 : index
    %c0_10 = arith.constant 0 : index
    %11 = vector.load %arg2[%c64, %c0_10] : memref<1632x128xbf16, #tpu.memory_space<vmem>>, vector<64x32xbf16>
    %cst_11 = arith.constant dense<0.000000e+00> : vector<33x32xf32>
    %12 = tpu.matmul %10, %11, %cst_11 {dimension_numbers = #tpu.dot_dimension_numbers<[1], [0], [0], [1], [0, 0, 1, 1], [], []>} : vector<33x64xbf16>, vector<64x32xbf16>, vector<33x32xf32> -> vector<33x32xf32>
    %13 = arith.addf %8, %12 : vector<33x32xf32>
    %c2 = arith.constant 2 : index
    %c0_12 = arith.constant 0 : index
    %14 = vector.load %arg5[%c2, %c0_12] : memref<36x64xf32, #tpu.memory_space<vmem>>, vector<33x64xf32>
    %15 = arith.truncf %14 : vector<33x64xf32> to vector<33x64xbf16>
    %c128 = arith.constant 128 : index
    %c0_13 = arith.constant 0 : index
    %16 = vector.load %arg2[%c128, %c0_13] : memref<1632x128xbf16, #tpu.memory_space<vmem>>, vector<64x32xbf16>
    %cst_14 = arith.constant dense<0.000000e+00> : vector<33x32xf32>
    %17 = tpu.matmul %15, %16, %cst_14 {dimension_numbers = #tpu.dot_dimension_numbers<[1], [0], [0], [1], [0, 0, 1, 1], [], []>} : vector<33x64xbf16>, vector<64x32xbf16>, vector<33x32xf32> -> vector<33x32xf32>
    %18 = arith.addf %13, %17 : vector<33x32xf32>
    %c0_15 = arith.constant 0 : index
    %c0_16 = arith.constant 0 : index
    %19 = vector.load %arg3[%c0_15, %c0_16] : memref<9x128xf32, #tpu.memory_space<vmem>>, vector<1x32xf32>
    %20 = vector.broadcast %19 : vector<1x32xf32> to vector<33x32xf32>
    %21 = arith.addf %18, %20 : vector<33x32xf32>
    %cst_17 = arith.constant 0.000000e+00 : f32
    %22 = vector.broadcast %cst_17 : f32 to vector<33x32xf32>
    %23 = arith.cmpf oge, %21, %22 : vector<33x32xf32>
    %cst_18 = arith.constant 1.000000e-01 : f32
    %24 = vector.broadcast %cst_18 : f32 to vector<33x32xf32>
    %25 = arith.mulf %24, %21 : vector<33x32xf32>
    %26 = arith.select %23, %21, %25 : vector<33x32xi1>, vector<33x32xf32>
    %c192 = arith.constant 192 : index
    %c0_19 = arith.constant 0 : index
    %27 = vector.load %arg2[%c192, %c0_19] : memref<1632x128xbf16, #tpu.memory_space<vmem>>, vector<20x33xbf16>
    %28 = arith.truncf %26 : vector<33x32xf32> to vector<33x32xbf16>
    %cst_20 = arith.constant dense<0.000000e+00> : vector<20x32xf32>
    %29 = tpu.matmul %27, %28, %cst_20 {dimension_numbers = #tpu.dot_dimension_numbers<[1], [0], [0], [1], [0, 0, 1, 1], [], []>} : vector<20x33xbf16>, vector<33x32xbf16>, vector<20x32xf32> -> vector<20x32xf32>
    %c0_21 = arith.constant 0 : index
    %c0_22 = arith.constant 0 : index
    %30 = vector.load %arg6[%c0_21, %c0_22] : memref<20x32xf32, #tpu.memory_space<vmem>>, vector<20x32xf32>
    tpu.vector_store %arg6[%c0_21, %c0_22], %29 {strides = array<i32>} : memref<20x32xf32, #tpu.memory_space<vmem>>, vector<20x32xf32>,
    %c0_23 = arith.constant 0 : index
    %c0_24 = arith.constant 0 : index
    %31 = vector.load %arg6[%c0_23, %c0_24] : memref<20x32xf32, #tpu.memory_space<vmem>>, vector<17x32xf32>
    %32 = arith.truncf %31 : vector<17x32xf32> to vector<17x32xbf16>
    %c224 = arith.constant 224 : index
    %c0_25 = arith.constant 0 : index
    %33 = vector.load %arg2[%c224, %c0_25] : memref<1632x128xbf16, #tpu.memory_space<vmem>>, vector<32x16xbf16>
    %cst_26 = arith.constant dense<0.000000e+00> : vector<17x16xf32>
    %34 = tpu.matmul %32, %33, %cst_26 {dimension_numbers = #tpu.dot_dimension_numbers<[1], [0], [0], [1], [0, 0, 1, 1], [], []>} : vector<17x32xbf16>, vector<32x16xbf16>, vector<17x16xf32> -> vector<17x16xf32>
    %c1_27 = arith.constant 1 : index
    %c0_28 = arith.constant 0 : index
    %35 = vector.load %arg6[%c1_27, %c0_28] : memref<20x32xf32, #tpu.memory_space<vmem>>, vector<17x32xf32>
    %36 = arith.truncf %35 : vector<17x32xf32> to vector<17x32xbf16>
    %c256 = arith.constant 256 : index
    %c0_29 = arith.constant 0 : index
    %37 = vector.load %arg2[%c256, %c0_29] : memref<1632x128xbf16, #tpu.memory_space<vmem>>, vector<32x16xbf16>
    %cst_30 = arith.constant dense<0.000000e+00> : vector<17x16xf32>
    %38 = tpu.matmul %36, %37, %cst_30 {dimension_numbers = #tpu.dot_dimension_numbers<[1], [0], [0], [1], [0, 0, 1, 1], [], []>} : vector<17x32xbf16>, vector<32x16xbf16>, vector<17x16xf32> -> vector<17x16xf32>
    %39 = arith.addf %34, %38 : vector<17x16xf32>
    %c2_31 = arith.constant 2 : index
    %c0_32 = arith.constant 0 : index
    %40 = vector.load %arg6[%c2_31, %c0_32] : memref<20x32xf32, #tpu.memory_space<vmem>>, vector<17x32xf32>
    %41 = arith.truncf %40 : vector<17x32xf32> to vector<17x32xbf16>
    %c288 = arith.constant 288 : index
    %c0_33 = arith.constant 0 : index
    %42 = vector.load %arg2[%c288, %c0_33] : memref<1632x128xbf16, #tpu.memory_space<vmem>>, vector<32x16xbf16>
    %cst_34 = arith.constant dense<0.000000e+00> : vector<17x16xf32>
    %43 = tpu.matmul %41, %42, %cst_34 {dimension_numbers = #tpu.dot_dimension_numbers<[1], [0], [0], [1], [0, 0, 1, 1], [], []>} : vector<17x32xbf16>, vector<32x16xbf16>, vector<17x16xf32> -> vector<17x16xf32>
    %44 = arith.addf %39, %43 : vector<17x16xf32>
    %c1_35 = arith.constant 1 : index
    %c0_36 = arith.constant 0 : index
    %45 = vector.load %arg3[%c1_35, %c0_36] : memref<9x128xf32, #tpu.memory_space<vmem>>, vector<1x16xf32>
    %46 = vector.broadcast %45 : vector<1x16xf32> to vector<17x16xf32>
    %47 = arith.addf %44, %46 : vector<17x16xf32>
    %cst_37 = arith.constant 0.000000e+00 : f32
    %48 = vector.broadcast %cst_37 : f32 to vector<17x16xf32>
    %49 = arith.cmpf oge, %47, %48 : vector<17x16xf32>
    %cst_38 = arith.constant 1.000000e-01 : f32
    %50 = vector.broadcast %cst_38 : f32 to vector<17x16xf32>
    %51 = arith.mulf %50, %47 : vector<17x16xf32>
    %52 = arith.select %49, %47, %51 : vector<17x16xi1>, vector<17x16xf32>
    %c320 = arith.constant 320 : index
    %c0_39 = arith.constant 0 : index
    %53 = vector.load %arg2[%c320, %c0_39] : memref<1632x128xbf16, #tpu.memory_space<vmem>>, vector<12x17xbf16>
    %54 = arith.truncf %52 : vector<17x16xf32> to vector<17x16xbf16>
    %cst_40 = arith.constant dense<0.000000e+00> : vector<12x16xf32>
    %55 = tpu.matmul %53, %54, %cst_40 {dimension_numbers = #tpu.dot_dimension_numbers<[1], [0], [0], [1], [0, 0, 1, 1], [], []>} : vector<12x17xbf16>, vector<17x16xbf16>, vector<12x16xf32> -> vector<12x16xf32>
    %c0_41 = arith.constant 0 : index
    %c0_42 = arith.constant 0 : index
    %56 = vector.load %arg7[%c0_41, %c0_42] : memref<12x16xf32, #tpu.memory_space<vmem>>, vector<12x16xf32>
    tpu.vector_store %arg7[%c0_41, %c0_42], %55 {strides = array<i32>} : memref<12x16xf32, #tpu.memory_space<vmem>>, vector<12x16xf32>,
    %c0_43 = arith.constant 0 : index
    %c0_44 = arith.constant 0 : index
    %57 = vector.load %arg7[%c0_43, %c0_44] : memref<12x16xf32, #tpu.memory_space<vmem>>, vector<10x16xf32>
    %58 = arith.truncf %57 : vector<10x16xf32> to vector<10x16xbf16>
    %c336 = arith.constant 336 : index
    %c0_45 = arith.constant 0 : index
    %59 = vector.load %arg2[%c336, %c0_45] : memref<1632x128xbf16, #tpu.memory_space<vmem>>, vector<16x16xbf16>
    %cst_46 = arith.constant dense<0.000000e+00> : vector<10x16xf32>
    %60 = tpu.matmul %58, %59, %cst_46 {dimension_numbers = #tpu.dot_dimension_numbers<[1], [0], [0], [1], [0, 0, 1, 1], [], []>} : vector<10x16xbf16>, vector<16x16xbf16>, vector<10x16xf32> -> vector<10x16xf32>
    %c1_47 = arith.constant 1 : index
    %c0_48 = arith.constant 0 : index
    %61 = vector.load %arg7[%c1_47, %c0_48] : memref<12x16xf32, #tpu.memory_space<vmem>>, vector<10x16xf32>
    %62 = arith.truncf %61 : vector<10x16xf32> to vector<10x16xbf16>
    %c352 = arith.constant 352 : index
    %c0_49 = arith.constant 0 : index
    %63 = vector.load %arg2[%c352, %c0_49] : memref<1632x128xbf16, #tpu.memory_space<vmem>>, vector<16x16xbf16>
    %cst_50 = arith.constant dense<0.000000e+00> : vector<10x16xf32>
    %64 = tpu.matmul %62, %63, %cst_50 {dimension_numbers = #tpu.dot_dimension_numbers<[1], [0], [0], [1], [0, 0, 1, 1], [], []>} : vector<10x16xbf16>, vector<16x16xbf16>, vector<10x16xf32> -> vector<10x16xf32>
    %65 = arith.addf %60, %64 : vector<10x16xf32>
    %c2_51 = arith.constant 2 : index
    %c0_52 = arith.constant 0 : index
    %66 = vector.load %arg7[%c2_51, %c0_52] : memref<12x16xf32, #tpu.memory_space<vmem>>, vector<10x16xf32>
    %67 = arith.truncf %66 : vector<10x16xf32> to vector<10x16xbf16>
    %c368 = arith.constant 368 : index
    %c0_53 = arith.constant 0 : index
    %68 = vector.load %arg2[%c368, %c0_53] : memref<1632x128xbf16, #tpu.memory_space<vmem>>, vector<16x16xbf16>
    %cst_54 = arith.constant dense<0.000000e+00> : vector<10x16xf32>
    %69 = tpu.matmul %67, %68, %cst_54 {dimension_numbers = #tpu.dot_dimension_numbers<[1], [0], [0], [1], [0, 0, 1, 1], [], []>} : vector<10x16xbf16>, vector<16x16xbf16>, vector<10x16xf32> -> vector<10x16xf32>
    %70 = arith.addf %65, %69 : vector<10x16xf32>
    %c2_55 = arith.constant 2 : index
    %c0_56 = arith.constant 0 : index
    %71 = vector.load %arg3[%c2_55, %c0_56] : memref<9x128xf32, #tpu.memory_space<vmem>>, vector<1x16xf32>
    %72 = vector.broadcast %71 : vector<1x16xf32> to vector<10x16xf32>
    %73 = arith.addf %70, %72 : vector<10x16xf32>
    %cst_57 = arith.constant 0.000000e+00 : f32
    %74 = vector.broadcast %cst_57 : f32 to vector<10x16xf32>
    %75 = arith.cmpf oge, %73, %74 : vector<10x16xf32>
    %cst_58 = arith.constant 1.000000e-01 : f32
    %76 = vector.broadcast %cst_58 : f32 to vector<10x16xf32>
    %77 = arith.mulf %76, %73 : vector<10x16xf32>
    %78 = arith.select %75, %73, %77 : vector<10x16xi1>, vector<10x16xf32>
    %c384 = arith.constant 384 : index
    %c0_59 = arith.constant 0 : index
    %79 = vector.load %arg2[%c384, %c0_59] : memref<1632x128xbf16, #tpu.memory_space<vmem>>, vector<12x10xbf16>
    %80 = arith.truncf %78 : vector<10x16xf32> to vector<10x16xbf16>
    %cst_60 = arith.constant dense<0.000000e+00> : vector<12x16xf32>
    %81 = tpu.matmul %79, %80, %cst_60 {dimension_numbers = #tpu.dot_dimension_numbers<[1], [0], [0], [1], [0, 0, 1, 1], [], []>} : vector<12x10xbf16>, vector<10x16xbf16>, vector<12x16xf32> -> vector<12x16xf32>
    %c0_61 = arith.constant 0 : index
    %c0_62 = arith.constant 0 : index
    %82 = vector.load %arg8[%c0_61, %c0_62] : memref<12x16xf32, #tpu.memory_space<vmem>>, vector<12x16xf32>
    tpu.vector_store %arg8[%c0_61, %c0_62], %81 {strides = array<i32>} : memref<12x16xf32, #tpu.memory_space<vmem>>, vector<12x16xf32>,
    %c0_63 = arith.constant 0 : index
    %c0_64 = arith.constant 0 : index
    %83 = vector.load %arg8[%c0_63, %c0_64] : memref<12x16xf32, #tpu.memory_space<vmem>>, vector<9x16xf32>
    %84 = arith.truncf %83 : vector<9x16xf32> to vector<9x16xbf16>
    %c400 = arith.constant 400 : index
    %c0_65 = arith.constant 0 : index
    %85 = vector.load %arg2[%c400, %c0_65] : memref<1632x128xbf16, #tpu.memory_space<vmem>>, vector<16x8xbf16>
    %cst_66 = arith.constant dense<0.000000e+00> : vector<9x8xf32>
    %86 = tpu.matmul %84, %85, %cst_66 {dimension_numbers = #tpu.dot_dimension_numbers<[1], [0], [0], [1], [0, 0, 1, 1], [], []>} : vector<9x16xbf16>, vector<16x8xbf16>, vector<9x8xf32> -> vector<9x8xf32>
    %c1_67 = arith.constant 1 : index
    %c0_68 = arith.constant 0 : index
    %87 = vector.load %arg8[%c1_67, %c0_68] : memref<12x16xf32, #tpu.memory_space<vmem>>, vector<9x16xf32>
    %88 = arith.truncf %87 : vector<9x16xf32> to vector<9x16xbf16>
    %c416 = arith.constant 416 : index
    %c0_69 = arith.constant 0 : index
    %89 = vector.load %arg2[%c416, %c0_69] : memref<1632x128xbf16, #tpu.memory_space<vmem>>, vector<16x8xbf16>
    %cst_70 = arith.constant dense<0.000000e+00> : vector<9x8xf32>
    %90 = tpu.matmul %88, %89, %cst_70 {dimension_numbers = #tpu.dot_dimension_numbers<[1], [0], [0], [1], [0, 0, 1, 1], [], []>} : vector<9x16xbf16>, vector<16x8xbf16>, vector<9x8xf32> -> vector<9x8xf32>
    %91 = arith.addf %86, %90 : vector<9x8xf32>
    %c2_71 = arith.constant 2 : index
    %c0_72 = arith.constant 0 : index
    %92 = vector.load %arg8[%c2_71, %c0_72] : memref<12x16xf32, #tpu.memory_space<vmem>>, vector<9x16xf32>
    %93 = arith.truncf %92 : vector<9x16xf32> to vector<9x16xbf16>
    %c432 = arith.constant 432 : index
    %c0_73 = arith.constant 0 : index
    %94 = vector.load %arg2[%c432, %c0_73] : memref<1632x128xbf16, #tpu.memory_space<vmem>>, vector<16x8xbf16>
    %cst_74 = arith.constant dense<0.000000e+00> : vector<9x8xf32>
    %95 = tpu.matmul %93, %94, %cst_74 {dimension_numbers = #tpu.dot_dimension_numbers<[1], [0], [0], [1], [0, 0, 1, 1], [], []>} : vector<9x16xbf16>, vector<16x8xbf16>, vector<9x8xf32> -> vector<9x8xf32>
    %96 = arith.addf %91, %95 : vector<9x8xf32>
    %c3 = arith.constant 3 : index
    %c0_75 = arith.constant 0 : index
    %97 = vector.load %arg3[%c3, %c0_75] : memref<9x128xf32, #tpu.memory_space<vmem>>, vector<1x8xf32>
    %98 = vector.broadcast %97 : vector<1x8xf32> to vector<9x8xf32>
    %99 = arith.addf %96, %98 : vector<9x8xf32>
    %cst_76 = arith.constant 0.000000e+00 : f32
    %100 = vector.broadcast %cst_76 : f32 to vector<9x8xf32>
    %101 = arith.cmpf oge, %99, %100 : vector<9x8xf32>
    %cst_77 = arith.constant 1.000000e-01 : f32
    %102 = vector.broadcast %cst_77 : f32 to vector<9x8xf32>
    %103 = arith.mulf %102, %99 : vector<9x8xf32>
    %104 = arith.select %101, %99, %103 : vector<9x8xi1>, vector<9x8xf32>
    %c448 = arith.constant 448 : index
    %c0_78 = arith.constant 0 : index
    %105 = vector.load %arg2[%c448, %c0_78] : memref<1632x128xbf16, #tpu.memory_space<vmem>>, vector<8x9xbf16>
    %106 = arith.truncf %104 : vector<9x8xf32> to vector<9x8xbf16>
    %cst_79 = arith.constant dense<0.000000e+00> : vector<8x8xf32>
    %107 = tpu.matmul %105, %106, %cst_79 {dimension_numbers = #tpu.dot_dimension_numbers<[1], [0], [0], [1], [0, 0, 1, 1], [], []>} : vector<8x9xbf16>, vector<9x8xbf16>, vector<8x8xf32> -> vector<8x8xf32>
    %c0_80 = arith.constant 0 : index
    %c0_81 = arith.constant 0 : index
    %108 = vector.load %arg9[%c0_80, %c0_81] : memref<8x8xf32, #tpu.memory_space<vmem>>, vector<8x8xf32>
    tpu.vector_store %arg9[%c0_80, %c0_81], %107 {strides = array<i32>} : memref<8x8xf32, #tpu.memory_space<vmem>>, vector<8x8xf32>,
    %c0_82 = arith.constant 0 : index
    %c0_83 = arith.constant 0 : index
    %109 = vector.load %arg9[%c0_82, %c0_83] : memref<8x8xf32, #tpu.memory_space<vmem>>, vector<6x8xf32>
    %110 = arith.truncf %109 : vector<6x8xf32> to vector<6x8xbf16>
    %c464 = arith.constant 464 : index
    %c0_84 = arith.constant 0 : index
    %111 = vector.load %arg2[%c464, %c0_84] : memref<1632x128xbf16, #tpu.memory_space<vmem>>, vector<8x8xbf16>
    %cst_85 = arith.constant dense<0.000000e+00> : vector<6x8xf32>
    %112 = tpu.matmul %110, %111, %cst_85 {dimension_numbers = #tpu.dot_dimension_numbers<[1], [0], [0], [1], [0, 0, 1, 1], [], []>} : vector<6x8xbf16>, vector<8x8xbf16>, vector<6x8xf32> -> vector<6x8xf32>
    %c1_86 = arith.constant 1 : index
    %c0_87 = arith.constant 0 : index
    %113 = vector.load %arg9[%c1_86, %c0_87] : memref<8x8xf32, #tpu.memory_space<vmem>>, vector<6x8xf32>
    %114 = arith.truncf %113 : vector<6x8xf32> to vector<6x8xbf16>
    %c480 = arith.constant 480 : index
    %c0_88 = arith.constant 0 : index
    %115 = vector.load %arg2[%c480, %c0_88] : memref<1632x128xbf16, #tpu.memory_space<vmem>>, vector<8x8xbf16>
    %cst_89 = arith.constant dense<0.000000e+00> : vector<6x8xf32>
    %116 = tpu.matmul %114, %115, %cst_89 {dimension_numbers = #tpu.dot_dimension_numbers<[1], [0], [0], [1], [0, 0, 1, 1], [], []>} : vector<6x8xbf16>, vector<8x8xbf16>, vector<6x8xf32> -> vector<6x8xf32>
    %117 = arith.addf %112, %116 : vector<6x8xf32>
    %c2_90 = arith.constant 2 : index
    %c0_91 = arith.constant 0 : index
    %118 = vector.load %arg9[%c2_90, %c0_91] : memref<8x8xf32, #tpu.memory_space<vmem>>, vector<6x8xf32>
    %119 = arith.truncf %118 : vector<6x8xf32> to vector<6x8xbf16>
    %c496 = arith.constant 496 : index
    %c0_92 = arith.constant 0 : index
    %120 = vector.load %arg2[%c496, %c0_92] : memref<1632x128xbf16, #tpu.memory_space<vmem>>, vector<8x8xbf16>
    %cst_93 = arith.constant dense<0.000000e+00> : vector<6x8xf32>
    %121 = tpu.matmul %119, %120, %cst_93 {dimension_numbers = #tpu.dot_dimension_numbers<[1], [0], [0], [1], [0, 0, 1, 1], [], []>} : vector<6x8xbf16>, vector<8x8xbf16>, vector<6x8xf32> -> vector<6x8xf32>
    %122 = arith.addf %117, %121 : vector<6x8xf32>
    %c4 = arith.constant 4 : index
    %c0_94 = arith.constant 0 : index
    %123 = vector.load %arg3[%c4, %c0_94] : memref<9x128xf32, #tpu.memory_space<vmem>>, vector<1x8xf32>
    %124 = vector.broadcast %123 : vector<1x8xf32> to vector<6x8xf32>
    %125 = arith.addf %122, %124 : vector<6x8xf32>
    %cst_95 = arith.constant 0.000000e+00 : f32
    %126 = vector.broadcast %cst_95 : f32 to vector<6x8xf32>
    %127 = arith.cmpf oge, %125, %126 : vector<6x8xf32>
    %cst_96 = arith.constant 1.000000e-01 : f32
    %128 = vector.broadcast %cst_96 : f32 to vector<6x8xf32>
    %129 = arith.mulf %128, %125 : vector<6x8xf32>
    %130 = arith.select %127, %125, %129 : vector<6x8xi1>, vector<6x8xf32>
    %c512 = arith.constant 512 : index
    %c0_97 = arith.constant 0 : index
    %131 = vector.load %arg2[%c512, %c0_97] : memref<1632x128xbf16, #tpu.memory_space<vmem>>, vector<8x6xbf16>
    %132 = arith.truncf %130 : vector<6x8xf32> to vector<6x8xbf16>
    %cst_98 = arith.constant dense<0.000000e+00> : vector<8x8xf32>
    %133 = tpu.matmul %131, %132, %cst_98 {dimension_numbers = #tpu.dot_dimension_numbers<[1], [0], [0], [1], [0, 0, 1, 1], [], []>} : vector<8x6xbf16>, vector<6x8xbf16>, vector<8x8xf32> -> vector<8x8xf32>
    %c0_99 = arith.constant 0 : index
    %c0_100 = arith.constant 0 : index
    %134 = vector.load %arg10[%c0_99, %c0_100] : memref<8x8xf32, #tpu.memory_space<vmem>>, vector<8x8xf32>
    tpu.vector_store %arg10[%c0_99, %c0_100], %133 {strides = array<i32>} : memref<8x8xf32, #tpu.memory_space<vmem>>, vector<8x8xf32>,
    %c0_101 = arith.constant 0 : index
    %c0_102 = arith.constant 0 : index
    %135 = vector.load %arg10[%c0_101, %c0_102] : memref<8x8xf32, #tpu.memory_space<vmem>>, vector<6x8xf32>
    %136 = arith.truncf %135 : vector<6x8xf32> to vector<6x8xbf16>
    %c528 = arith.constant 528 : index
    %c0_103 = arith.constant 0 : index
    %137 = vector.load %arg2[%c528, %c0_103] : memref<1632x128xbf16, #tpu.memory_space<vmem>>, vector<8x16xbf16>
    %cst_104 = arith.constant dense<0.000000e+00> : vector<6x16xf32>
    %138 = tpu.matmul %136, %137, %cst_104 {dimension_numbers = #tpu.dot_dimension_numbers<[1], [0], [0], [1], [0, 0, 1, 1], [], []>} : vector<6x8xbf16>, vector<8x16xbf16>, vector<6x16xf32> -> vector<6x16xf32>
    %c1_105 = arith.constant 1 : index
    %c0_106 = arith.constant 0 : index
    %139 = vector.load %arg10[%c1_105, %c0_106] : memref<8x8xf32, #tpu.memory_space<vmem>>, vector<6x8xf32>
    %140 = arith.truncf %139 : vector<6x8xf32> to vector<6x8xbf16>
    %c544 = arith.constant 544 : index
    %c0_107 = arith.constant 0 : index
    %141 = vector.load %arg2[%c544, %c0_107] : memref<1632x128xbf16, #tpu.memory_space<vmem>>, vector<8x16xbf16>
    %cst_108 = arith.constant dense<0.000000e+00> : vector<6x16xf32>
    %142 = tpu.matmul %140, %141, %cst_108 {dimension_numbers = #tpu.dot_dimension_numbers<[1], [0], [0], [1], [0, 0, 1, 1], [], []>} : vector<6x8xbf16>, vector<8x16xbf16>, vector<6x16xf32> -> vector<6x16xf32>
    %143 = arith.addf %138, %142 : vector<6x16xf32>
    %c1_109 = arith.constant 1 : index
    %c0_110 = arith.constant 0 : index
    %144 = vector.load %arg10[%c1_109, %c0_110] : memref<8x8xf32, #tpu.memory_space<vmem>>, vector<6x8xf32>
    %145 = arith.truncf %144 : vector<6x8xf32> to vector<6x8xbf16>
    %c560 = arith.constant 560 : index
    %c0_111 = arith.constant 0 : index
    %146 = vector.load %arg2[%c560, %c0_111] : memref<1632x128xbf16, #tpu.memory_space<vmem>>, vector<8x16xbf16>
    %cst_112 = arith.constant dense<0.000000e+00> : vector<6x16xf32>
    %147 = tpu.matmul %145, %146, %cst_112 {dimension_numbers = #tpu.dot_dimension_numbers<[1], [0], [0], [1], [0, 0, 1, 1], [], []>} : vector<6x8xbf16>, vector<8x16xbf16>, vector<6x16xf32> -> vector<6x16xf32>
    %c2_113 = arith.constant 2 : index
    %c0_114 = arith.constant 0 : index
    %148 = vector.load %arg10[%c2_113, %c0_114] : memref<8x8xf32, #tpu.memory_space<vmem>>, vector<6x8xf32>
    %149 = arith.truncf %148 : vector<6x8xf32> to vector<6x8xbf16>
    %c576 = arith.constant 576 : index
    %c0_115 = arith.constant 0 : index
    %150 = vector.load %arg2[%c576, %c0_115] : memref<1632x128xbf16, #tpu.memory_space<vmem>>, vector<8x16xbf16>
    %cst_116 = arith.constant dense<0.000000e+00> : vector<6x16xf32>
    %151 = tpu.matmul %149, %150, %cst_116 {dimension_numbers = #tpu.dot_dimension_numbers<[1], [0], [0], [1], [0, 0, 1, 1], [], []>} : vector<6x8xbf16>, vector<8x16xbf16>, vector<6x16xf32> -> vector<6x16xf32>
    %152 = arith.addf %147, %151 : vector<6x16xf32>
    %c5 = arith.constant 5 : index
    %c0_117 = arith.constant 0 : index
    %153 = vector.load %arg3[%c5, %c0_117] : memref<9x128xf32, #tpu.memory_space<vmem>>, vector<1x16xf32>
    %c592 = arith.constant 592 : index
    %c0_118 = arith.constant 0 : index
    %154 = vector.load %arg2[%c592, %c0_118] : memref<1632x128xbf16, #tpu.memory_space<vmem>>, vector<12x6xbf16>
    %155 = vector.broadcast %153 : vector<1x16xf32> to vector<6x16xf32>
    %156 = arith.addf %143, %155 : vector<6x16xf32>
    %cst_119 = arith.constant 0.000000e+00 : f32
    %157 = vector.broadcast %cst_119 : f32 to vector<6x16xf32>
    %158 = arith.cmpf oge, %156, %157 : vector<6x16xf32>
    %cst_120 = arith.constant 1.000000e-01 : f32
    %159 = vector.broadcast %cst_120 : f32 to vector<6x16xf32>
    %160 = arith.mulf %159, %156 : vector<6x16xf32>
    %161 = arith.select %158, %156, %160 : vector<6x16xi1>, vector<6x16xf32>
    %162 = arith.truncf %161 : vector<6x16xf32> to vector<6x16xbf16>
    %cst_121 = arith.constant dense<0.000000e+00> : vector<12x16xf32>
    %163 = tpu.matmul %154, %162, %cst_121 {dimension_numbers = #tpu.dot_dimension_numbers<[1], [0], [0], [1], [0, 0, 1, 1], [], []>} : vector<12x6xbf16>, vector<6x16xbf16>, vector<12x16xf32> -> vector<12x16xf32>
    %c608 = arith.constant 608 : index
    %c0_122 = arith.constant 0 : index
    %164 = vector.load %arg2[%c608, %c0_122] : memref<1632x128xbf16, #tpu.memory_space<vmem>>, vector<12x6xbf16>
    %165 = vector.broadcast %153 : vector<1x16xf32> to vector<6x16xf32>
    %166 = arith.addf %152, %165 : vector<6x16xf32>
    %cst_123 = arith.constant 0.000000e+00 : f32
    %167 = vector.broadcast %cst_123 : f32 to vector<6x16xf32>
    %168 = arith.cmpf oge, %166, %167 : vector<6x16xf32>
    %cst_124 = arith.constant 1.000000e-01 : f32
    %169 = vector.broadcast %cst_124 : f32 to vector<6x16xf32>
    %170 = arith.mulf %169, %166 : vector<6x16xf32>
    %171 = arith.select %168, %166, %170 : vector<6x16xi1>, vector<6x16xf32>
    %172 = arith.truncf %171 : vector<6x16xf32> to vector<6x16xbf16>
    %cst_125 = arith.constant dense<0.000000e+00> : vector<12x16xf32>
    %173 = tpu.matmul %164, %172, %cst_125 {dimension_numbers = #tpu.dot_dimension_numbers<[1], [0], [0], [1], [0, 0, 1, 1], [], []>} : vector<12x6xbf16>, vector<6x16xbf16>, vector<12x16xf32> -> vector<12x16xf32>
    %174 = arith.addf %163, %173 : vector<12x16xf32>
    %c0_126 = arith.constant 0 : index
    %c0_127 = arith.constant 0 : index
    %175 = vector.load %arg11[%c0_126, %c0_127] : memref<12x16xf32, #tpu.memory_space<vmem>>, vector<12x16xf32>
    tpu.vector_store %arg11[%c0_126, %c0_127], %174 {strides = array<i32>} : memref<12x16xf32, #tpu.memory_space<vmem>>, vector<12x16xf32>,
    %c0_128 = arith.constant 0 : index
    %c0_129 = arith.constant 0 : index
    %176 = vector.load %arg8[%c0_128, %c0_129] : memref<12x16xf32, #tpu.memory_space<vmem>>, vector<10x16xf32>
    %177 = arith.truncf %176 : vector<10x16xf32> to vector<10x16xbf16>
    %c624 = arith.constant 624 : index
    %c0_130 = arith.constant 0 : index
    %178 = vector.load %arg2[%c624, %c0_130] : memref<1632x128xbf16, #tpu.memory_space<vmem>>, vector<16x32xbf16>
    %cst_131 = arith.constant dense<0.000000e+00> : vector<10x32xf32>
    %179 = tpu.matmul %177, %178, %cst_131 {dimension_numbers = #tpu.dot_dimension_numbers<[1], [0], [0], [1], [0, 0, 1, 1], [], []>} : vector<10x16xbf16>, vector<16x32xbf16>, vector<10x32xf32> -> vector<10x32xf32>
    %c1_132 = arith.constant 1 : index
    %c0_133 = arith.constant 0 : index
    %180 = vector.load %arg8[%c1_132, %c0_133] : memref<12x16xf32, #tpu.memory_space<vmem>>, vector<10x16xf32>
    %181 = arith.truncf %180 : vector<10x16xf32> to vector<10x16xbf16>
    %c640 = arith.constant 640 : index
    %c0_134 = arith.constant 0 : index
    %182 = vector.load %arg2[%c640, %c0_134] : memref<1632x128xbf16, #tpu.memory_space<vmem>>, vector<16x32xbf16>
    %cst_135 = arith.constant dense<0.000000e+00> : vector<10x32xf32>
    %183 = tpu.matmul %181, %182, %cst_135 {dimension_numbers = #tpu.dot_dimension_numbers<[1], [0], [0], [1], [0, 0, 1, 1], [], []>} : vector<10x16xbf16>, vector<16x32xbf16>, vector<10x32xf32> -> vector<10x32xf32>
    %184 = arith.addf %179, %183 : vector<10x32xf32>
    %c1_136 = arith.constant 1 : index
    %c0_137 = arith.constant 0 : index
    %185 = vector.load %arg8[%c1_136, %c0_137] : memref<12x16xf32, #tpu.memory_space<vmem>>, vector<10x16xf32>
    %186 = arith.truncf %185 : vector<10x16xf32> to vector<10x16xbf16>
    %c656 = arith.constant 656 : index
    %c0_138 = arith.constant 0 : index
    %187 = vector.load %arg2[%c656, %c0_138] : memref<1632x128xbf16, #tpu.memory_space<vmem>>, vector<16x32xbf16>
    %cst_139 = arith.constant dense<0.000000e+00> : vector<10x32xf32>
    %188 = tpu.matmul %186, %187, %cst_139 {dimension_numbers = #tpu.dot_dimension_numbers<[1], [0], [0], [1], [0, 0, 1, 1], [], []>} : vector<10x16xbf16>, vector<16x32xbf16>, vector<10x32xf32> -> vector<10x32xf32>
    %c2_140 = arith.constant 2 : index
    %c0_141 = arith.constant 0 : index
    %189 = vector.load %arg8[%c2_140, %c0_141] : memref<12x16xf32, #tpu.memory_space<vmem>>, vector<10x16xf32>
    %190 = arith.truncf %189 : vector<10x16xf32> to vector<10x16xbf16>
    %c672 = arith.constant 672 : index
    %c0_142 = arith.constant 0 : index
    %191 = vector.load %arg2[%c672, %c0_142] : memref<1632x128xbf16, #tpu.memory_space<vmem>>, vector<16x32xbf16>
    %cst_143 = arith.constant dense<0.000000e+00> : vector<10x32xf32>
    %192 = tpu.matmul %190, %191, %cst_143 {dimension_numbers = #tpu.dot_dimension_numbers<[1], [0], [0], [1], [0, 0, 1, 1], [], []>} : vector<10x16xbf16>, vector<16x32xbf16>, vector<10x32xf32> -> vector<10x32xf32>
    %193 = arith.addf %188, %192 : vector<10x32xf32>
    %c0_144 = arith.constant 0 : index
    %c0_145 = arith.constant 0 : index
    %194 = vector.load %arg11[%c0_144, %c0_145] : memref<12x16xf32, #tpu.memory_space<vmem>>, vector<10x16xf32>
    %195 = arith.truncf %194 : vector<10x16xf32> to vector<10x16xbf16>
    %c688 = arith.constant 688 : index
    %c0_146 = arith.constant 0 : index
    %196 = vector.load %arg2[%c688, %c0_146] : memref<1632x128xbf16, #tpu.memory_space<vmem>>, vector<16x32xbf16>
    %cst_147 = arith.constant dense<0.000000e+00> : vector<10x32xf32>
    %197 = tpu.matmul %195, %196, %cst_147 {dimension_numbers = #tpu.dot_dimension_numbers<[1], [0], [0], [1], [0, 0, 1, 1], [], []>} : vector<10x16xbf16>, vector<16x32xbf16>, vector<10x32xf32> -> vector<10x32xf32>
    %198 = arith.addf %184, %197 : vector<10x32xf32>
    %c1_148 = arith.constant 1 : index
    %c0_149 = arith.constant 0 : index
    %199 = vector.load %arg11[%c1_148, %c0_149] : memref<12x16xf32, #tpu.memory_space<vmem>>, vector<10x16xf32>
    %200 = arith.truncf %199 : vector<10x16xf32> to vector<10x16xbf16>
    %c704 = arith.constant 704 : index
    %c0_150 = arith.constant 0 : index
    %201 = vector.load %arg2[%c704, %c0_150] : memref<1632x128xbf16, #tpu.memory_space<vmem>>, vector<16x32xbf16>
    %cst_151 = arith.constant dense<0.000000e+00> : vector<10x32xf32>
    %202 = tpu.matmul %200, %201, %cst_151 {dimension_numbers = #tpu.dot_dimension_numbers<[1], [0], [0], [1], [0, 0, 1, 1], [], []>} : vector<10x16xbf16>, vector<16x32xbf16>, vector<10x32xf32> -> vector<10x32xf32>
    %203 = arith.addf %198, %202 : vector<10x32xf32>
    %c1_152 = arith.constant 1 : index
    %c0_153 = arith.constant 0 : index
    %204 = vector.load %arg11[%c1_152, %c0_153] : memref<12x16xf32, #tpu.memory_space<vmem>>, vector<10x16xf32>
    %205 = arith.truncf %204 : vector<10x16xf32> to vector<10x16xbf16>
    %c720 = arith.constant 720 : index
    %c0_154 = arith.constant 0 : index
    %206 = vector.load %arg2[%c720, %c0_154] : memref<1632x128xbf16, #tpu.memory_space<vmem>>, vector<16x32xbf16>
    %cst_155 = arith.constant dense<0.000000e+00> : vector<10x32xf32>
    %207 = tpu.matmul %205, %206, %cst_155 {dimension_numbers = #tpu.dot_dimension_numbers<[1], [0], [0], [1], [0, 0, 1, 1], [], []>} : vector<10x16xbf16>, vector<16x32xbf16>, vector<10x32xf32> -> vector<10x32xf32>
    %208 = arith.addf %193, %207 : vector<10x32xf32>
    %c2_156 = arith.constant 2 : index
    %c0_157 = arith.constant 0 : index
    %209 = vector.load %arg11[%c2_156, %c0_157] : memref<12x16xf32, #tpu.memory_space<vmem>>, vector<10x16xf32>
    %210 = arith.truncf %209 : vector<10x16xf32> to vector<10x16xbf16>
    %c736 = arith.constant 736 : index
    %c0_158 = arith.constant 0 : index
    %211 = vector.load %arg2[%c736, %c0_158] : memref<1632x128xbf16, #tpu.memory_space<vmem>>, vector<16x32xbf16>
    %cst_159 = arith.constant dense<0.000000e+00> : vector<10x32xf32>
    %212 = tpu.matmul %210, %211, %cst_159 {dimension_numbers = #tpu.dot_dimension_numbers<[1], [0], [0], [1], [0, 0, 1, 1], [], []>} : vector<10x16xbf16>, vector<16x32xbf16>, vector<10x32xf32> -> vector<10x32xf32>
    %213 = arith.addf %208, %212 : vector<10x32xf32>
    %c6 = arith.constant 6 : index
    %c0_160 = arith.constant 0 : index
    %214 = vector.load %arg3[%c6, %c0_160] : memref<9x128xf32, #tpu.memory_space<vmem>>, vector<1x32xf32>
    %c752 = arith.constant 752 : index
    %c0_161 = arith.constant 0 : index
    %215 = vector.load %arg2[%c752, %c0_161] : memref<1632x128xbf16, #tpu.memory_space<vmem>>, vector<20x10xbf16>
    %216 = vector.broadcast %214 : vector<1x32xf32> to vector<10x32xf32>
    %217 = arith.addf %203, %216 : vector<10x32xf32>
    %cst_162 = arith.constant 0.000000e+00 : f32
    %218 = vector.broadcast %cst_162 : f32 to vector<10x32xf32>
    %219 = arith.cmpf oge, %217, %218 : vector<10x32xf32>
    %cst_163 = arith.constant 1.000000e-01 : f32
    %220 = vector.broadcast %cst_163 : f32 to vector<10x32xf32>
    %221 = arith.mulf %220, %217 : vector<10x32xf32>
    %222 = arith.select %219, %217, %221 : vector<10x32xi1>, vector<10x32xf32>
    %223 = arith.truncf %222 : vector<10x32xf32> to vector<10x32xbf16>
    %cst_164 = arith.constant dense<0.000000e+00> : vector<20x32xf32>
    %224 = tpu.matmul %215, %223, %cst_164 {dimension_numbers = #tpu.dot_dimension_numbers<[1], [0], [0], [1], [0, 0, 1, 1], [], []>} : vector<20x10xbf16>, vector<10x32xbf16>, vector<20x32xf32> -> vector<20x32xf32>
    %c784 = arith.constant 784 : index
    %c0_165 = arith.constant 0 : index
    %225 = vector.load %arg2[%c784, %c0_165] : memref<1632x128xbf16, #tpu.memory_space<vmem>>, vector<20x10xbf16>
    %226 = vector.broadcast %214 : vector<1x32xf32> to vector<10x32xf32>
    %227 = arith.addf %213, %226 : vector<10x32xf32>
    %cst_166 = arith.constant 0.000000e+00 : f32
    %228 = vector.broadcast %cst_166 : f32 to vector<10x32xf32>
    %229 = arith.cmpf oge, %227, %228 : vector<10x32xf32>
    %cst_167 = arith.constant 1.000000e-01 : f32
    %230 = vector.broadcast %cst_167 : f32 to vector<10x32xf32>
    %231 = arith.mulf %230, %227 : vector<10x32xf32>
    %232 = arith.select %229, %227, %231 : vector<10x32xi1>, vector<10x32xf32>
    %233 = arith.truncf %232 : vector<10x32xf32> to vector<10x32xbf16>
    %cst_168 = arith.constant dense<0.000000e+00> : vector<20x32xf32>
    %234 = tpu.matmul %225, %233, %cst_168 {dimension_numbers = #tpu.dot_dimension_numbers<[1], [0], [0], [1], [0, 0, 1, 1], [], []>} : vector<20x10xbf16>, vector<10x32xbf16>, vector<20x32xf32> -> vector<20x32xf32>
    %235 = arith.addf %224, %234 : vector<20x32xf32>
    %c0_169 = arith.constant 0 : index
    %c0_170 = arith.constant 0 : index
    %236 = vector.load %arg12[%c0_169, %c0_170] : memref<20x32xf32, #tpu.memory_space<vmem>>, vector<20x32xf32>
    tpu.vector_store %arg12[%c0_169, %c0_170], %235 {strides = array<i32>} : memref<20x32xf32, #tpu.memory_space<vmem>>, vector<20x32xf32>,
    %c0_171 = arith.constant 0 : index
    %c0_172 = arith.constant 0 : index
    %237 = vector.load %arg6[%c0_171, %c0_172] : memref<20x32xf32, #tpu.memory_space<vmem>>, vector<18x32xf32>
    %238 = arith.truncf %237 : vector<18x32xf32> to vector<18x32xbf16>
    %c816 = arith.constant 816 : index
    %c0_173 = arith.constant 0 : index
    %239 = vector.load %arg2[%c816, %c0_173] : memref<1632x128xbf16, #tpu.memory_space<vmem>>, vector<32x64xbf16>
    %cst_174 = arith.constant dense<0.000000e+00> : vector<18x64xf32>
    %240 = tpu.matmul %238, %239, %cst_174 {dimension_numbers = #tpu.dot_dimension_numbers<[1], [0], [0], [1], [0, 0, 1, 1], [], []>} : vector<18x32xbf16>, vector<32x64xbf16>, vector<18x64xf32> -> vector<18x64xf32>
    %c1_175 = arith.constant 1 : index
    %c0_176 = arith.constant 0 : index
    %241 = vector.load %arg6[%c1_175, %c0_176] : memref<20x32xf32, #tpu.memory_space<vmem>>, vector<18x32xf32>
    %242 = arith.truncf %241 : vector<18x32xf32> to vector<18x32xbf16>
    %c848 = arith.constant 848 : index
    %c0_177 = arith.constant 0 : index
    %243 = vector.load %arg2[%c848, %c0_177] : memref<1632x128xbf16, #tpu.memory_space<vmem>>, vector<32x64xbf16>
    %cst_178 = arith.constant dense<0.000000e+00> : vector<18x64xf32>
    %244 = tpu.matmul %242, %243, %cst_178 {dimension_numbers = #tpu.dot_dimension_numbers<[1], [0], [0], [1], [0, 0, 1, 1], [], []>} : vector<18x32xbf16>, vector<32x64xbf16>, vector<18x64xf32> -> vector<18x64xf32>
    %245 = arith.addf %240, %244 : vector<18x64xf32>
    %c1_179 = arith.constant 1 : index
    %c0_180 = arith.constant 0 : index
    %246 = vector.load %arg6[%c1_179, %c0_180] : memref<20x32xf32, #tpu.memory_space<vmem>>, vector<18x32xf32>
    %247 = arith.truncf %246 : vector<18x32xf32> to vector<18x32xbf16>
    %c880 = arith.constant 880 : index
    %c0_181 = arith.constant 0 : index
    %248 = vector.load %arg2[%c880, %c0_181] : memref<1632x128xbf16, #tpu.memory_space<vmem>>, vector<32x64xbf16>
    %cst_182 = arith.constant dense<0.000000e+00> : vector<18x64xf32>
    %249 = tpu.matmul %247, %248, %cst_182 {dimension_numbers = #tpu.dot_dimension_numbers<[1], [0], [0], [1], [0, 0, 1, 1], [], []>} : vector<18x32xbf16>, vector<32x64xbf16>, vector<18x64xf32> -> vector<18x64xf32>
    %c2_183 = arith.constant 2 : index
    %c0_184 = arith.constant 0 : index
    %250 = vector.load %arg6[%c2_183, %c0_184] : memref<20x32xf32, #tpu.memory_space<vmem>>, vector<18x32xf32>
    %251 = arith.truncf %250 : vector<18x32xf32> to vector<18x32xbf16>
    %c912 = arith.constant 912 : index
    %c0_185 = arith.constant 0 : index
    %252 = vector.load %arg2[%c912, %c0_185] : memref<1632x128xbf16, #tpu.memory_space<vmem>>, vector<32x64xbf16>
    %cst_186 = arith.constant dense<0.000000e+00> : vector<18x64xf32>
    %253 = tpu.matmul %251, %252, %cst_186 {dimension_numbers = #tpu.dot_dimension_numbers<[1], [0], [0], [1], [0, 0, 1, 1], [], []>} : vector<18x32xbf16>, vector<32x64xbf16>, vector<18x64xf32> -> vector<18x64xf32>
    %254 = arith.addf %249, %253 : vector<18x64xf32>
    %c0_187 = arith.constant 0 : index
    %c0_188 = arith.constant 0 : index
    %255 = vector.load %arg12[%c0_187, %c0_188] : memref<20x32xf32, #tpu.memory_space<vmem>>, vector<18x32xf32>
    %256 = arith.truncf %255 : vector<18x32xf32> to vector<18x32xbf16>
    %c944 = arith.constant 944 : index
    %c0_189 = arith.constant 0 : index
    %257 = vector.load %arg2[%c944, %c0_189] : memref<1632x128xbf16, #tpu.memory_space<vmem>>, vector<32x64xbf16>
    %cst_190 = arith.constant dense<0.000000e+00> : vector<18x64xf32>
    %258 = tpu.matmul %256, %257, %cst_190 {dimension_numbers = #tpu.dot_dimension_numbers<[1], [0], [0], [1], [0, 0, 1, 1], [], []>} : vector<18x32xbf16>, vector<32x64xbf16>, vector<18x64xf32> -> vector<18x64xf32>
    %259 = arith.addf %245, %258 : vector<18x64xf32>
    %c1_191 = arith.constant 1 : index
    %c0_192 = arith.constant 0 : index
    %260 = vector.load %arg12[%c1_191, %c0_192] : memref<20x32xf32, #tpu.memory_space<vmem>>, vector<18x32xf32>
    %261 = arith.truncf %260 : vector<18x32xf32> to vector<18x32xbf16>
    %c976 = arith.constant 976 : index
    %c0_193 = arith.constant 0 : index
    %262 = vector.load %arg2[%c976, %c0_193] : memref<1632x128xbf16, #tpu.memory_space<vmem>>, vector<32x64xbf16>
    %cst_194 = arith.constant dense<0.000000e+00> : vector<18x64xf32>
    %263 = tpu.matmul %261, %262, %cst_194 {dimension_numbers = #tpu.dot_dimension_numbers<[1], [0], [0], [1], [0, 0, 1, 1], [], []>} : vector<18x32xbf16>, vector<32x64xbf16>, vector<18x64xf32> -> vector<18x64xf32>
    %264 = arith.addf %259, %263 : vector<18x64xf32>
    %c1_195 = arith.constant 1 : index
    %c0_196 = arith.constant 0 : index
    %265 = vector.load %arg12[%c1_195, %c0_196] : memref<20x32xf32, #tpu.memory_space<vmem>>, vector<18x32xf32>
    %266 = arith.truncf %265 : vector<18x32xf32> to vector<18x32xbf16>
    %c1008 = arith.constant 1008 : index
    %c0_197 = arith.constant 0 : index
    %267 = vector.load %arg2[%c1008, %c0_197] : memref<1632x128xbf16, #tpu.memory_space<vmem>>, vector<32x64xbf16>
    %cst_198 = arith.constant dense<0.000000e+00> : vector<18x64xf32>
    %268 = tpu.matmul %266, %267, %cst_198 {dimension_numbers = #tpu.dot_dimension_numbers<[1], [0], [0], [1], [0, 0, 1, 1], [], []>} : vector<18x32xbf16>, vector<32x64xbf16>, vector<18x64xf32> -> vector<18x64xf32>
    %269 = arith.addf %254, %268 : vector<18x64xf32>
    %c2_199 = arith.constant 2 : index
    %c0_200 = arith.constant 0 : index
    %270 = vector.load %arg12[%c2_199, %c0_200] : memref<20x32xf32, #tpu.memory_space<vmem>>, vector<18x32xf32>
    %271 = arith.truncf %270 : vector<18x32xf32> to vector<18x32xbf16>
    %c1040 = arith.constant 1040 : index
    %c0_201 = arith.constant 0 : index
    %272 = vector.load %arg2[%c1040, %c0_201] : memref<1632x128xbf16, #tpu.memory_space<vmem>>, vector<32x64xbf16>
    %cst_202 = arith.constant dense<0.000000e+00> : vector<18x64xf32>
    %273 = tpu.matmul %271, %272, %cst_202 {dimension_numbers = #tpu.dot_dimension_numbers<[1], [0], [0], [1], [0, 0, 1, 1], [], []>} : vector<18x32xbf16>, vector<32x64xbf16>, vector<18x64xf32> -> vector<18x64xf32>
    %274 = arith.addf %269, %273 : vector<18x64xf32>
    %c7 = arith.constant 7 : index
    %c0_203 = arith.constant 0 : index
    %275 = vector.load %arg3[%c7, %c0_203] : memref<9x128xf32, #tpu.memory_space<vmem>>, vector<1x64xf32>
    %c1072 = arith.constant 1072 : index
    %c0_204 = arith.constant 0 : index
    %276 = vector.load %arg2[%c1072, %c0_204] : memref<1632x128xbf16, #tpu.memory_space<vmem>>, vector<36x18xbf16>
    %277 = vector.broadcast %275 : vector<1x64xf32> to vector<18x64xf32>
    %278 = arith.addf %264, %277 : vector<18x64xf32>
    %cst_205 = arith.constant 0.000000e+00 : f32
    %279 = vector.broadcast %cst_205 : f32 to vector<18x64xf32>
    %280 = arith.cmpf oge, %278, %279 : vector<18x64xf32>
    %cst_206 = arith.constant 1.000000e-01 : f32
    %281 = vector.broadcast %cst_206 : f32 to vector<18x64xf32>
    %282 = arith.mulf %281, %278 : vector<18x64xf32>
    %283 = arith.select %280, %278, %282 : vector<18x64xi1>, vector<18x64xf32>
    %284 = arith.truncf %283 : vector<18x64xf32> to vector<18x64xbf16>
    %cst_207 = arith.constant dense<0.000000e+00> : vector<36x64xf32>
    %285 = tpu.matmul %276, %284, %cst_207 {dimension_numbers = #tpu.dot_dimension_numbers<[1], [0], [0], [1], [0, 0, 1, 1], [], []>} : vector<36x18xbf16>, vector<18x64xbf16>, vector<36x64xf32> -> vector<36x64xf32>
    %c1120 = arith.constant 1120 : index
    %c0_208 = arith.constant 0 : index
    %286 = vector.load %arg2[%c1120, %c0_208] : memref<1632x128xbf16, #tpu.memory_space<vmem>>, vector<36x18xbf16>
    %287 = vector.broadcast %275 : vector<1x64xf32> to vector<18x64xf32>
    %288 = arith.addf %274, %287 : vector<18x64xf32>
    %cst_209 = arith.constant 0.000000e+00 : f32
    %289 = vector.broadcast %cst_209 : f32 to vector<18x64xf32>
    %290 = arith.cmpf oge, %288, %289 : vector<18x64xf32>
    %cst_210 = arith.constant 1.000000e-01 : f32
    %291 = vector.broadcast %cst_210 : f32 to vector<18x64xf32>
    %292 = arith.mulf %291, %288 : vector<18x64xf32>
    %293 = arith.select %290, %288, %292 : vector<18x64xi1>, vector<18x64xf32>
    %294 = arith.truncf %293 : vector<18x64xf32> to vector<18x64xbf16>
    %cst_211 = arith.constant dense<0.000000e+00> : vector<36x64xf32>
    %295 = tpu.matmul %286, %294, %cst_211 {dimension_numbers = #tpu.dot_dimension_numbers<[1], [0], [0], [1], [0, 0, 1, 1], [], []>} : vector<36x18xbf16>, vector<18x64xbf16>, vector<36x64xf32> -> vector<36x64xf32>
    %296 = arith.addf %285, %295 : vector<36x64xf32>
    %c0_212 = arith.constant 0 : index
    %c0_213 = arith.constant 0 : index
    %297 = vector.load %arg13[%c0_212, %c0_213] : memref<36x64xf32, #tpu.memory_space<vmem>>, vector<36x64xf32>
    tpu.vector_store %arg13[%c0_212, %c0_213], %296 {strides = array<i32>} : memref<36x64xf32, #tpu.memory_space<vmem>>, vector<36x64xf32>,
    %c0_214 = arith.constant 0 : index
    %c0_215 = arith.constant 0 : index
    %298 = vector.load %arg5[%c0_214, %c0_215] : memref<36x64xf32, #tpu.memory_space<vmem>>, vector<34x64xf32>
    %299 = arith.truncf %298 : vector<34x64xf32> to vector<34x64xbf16>
    %c1168 = arith.constant 1168 : index
    %c0_216 = arith.constant 0 : index
    %300 = vector.load %arg2[%c1168, %c0_216] : memref<1632x128xbf16, #tpu.memory_space<vmem>>, vector<64x64xbf16>
    %cst_217 = arith.constant dense<0.000000e+00> : vector<34x64xf32>
    %301 = tpu.matmul %299, %300, %cst_217 {dimension_numbers = #tpu.dot_dimension_numbers<[1], [0], [0], [1], [0, 0, 1, 1], [], []>} : vector<34x64xbf16>, vector<64x64xbf16>, vector<34x64xf32> -> vector<34x64xf32>
    %c0_218 = arith.constant 0 : index
    %c0_219 = arith.constant 0 : index
    %302 = vector.load %arg13[%c0_218, %c0_219] : memref<36x64xf32, #tpu.memory_space<vmem>>, vector<34x64xf32>
    %303 = arith.truncf %302 : vector<34x64xf32> to vector<34x64xbf16>
    %c1360 = arith.constant 1360 : index
    %c0_220 = arith.constant 0 : index
    %304 = vector.load %arg2[%c1360, %c0_220] : memref<1632x128xbf16, #tpu.memory_space<vmem>>, vector<64x64xbf16>
    %cst_221 = arith.constant dense<0.000000e+00> : vector<34x64xf32>
    %305 = tpu.matmul %303, %304, %cst_221 {dimension_numbers = #tpu.dot_dimension_numbers<[1], [0], [0], [1], [0, 0, 1, 1], [], []>} : vector<34x64xbf16>, vector<64x64xbf16>, vector<34x64xf32> -> vector<34x64xf32>
    %306 = arith.addf %301, %305 : vector<34x64xf32>
    %c1_222 = arith.constant 1 : index
    %c0_223 = arith.constant 0 : index
    %307 = vector.load %arg5[%c1_222, %c0_223] : memref<36x64xf32, #tpu.memory_space<vmem>>, vector<34x64xf32>
    %308 = arith.truncf %307 : vector<34x64xf32> to vector<34x64xbf16>
    %c1232 = arith.constant 1232 : index
    %c0_224 = arith.constant 0 : index
    %309 = vector.load %arg2[%c1232, %c0_224] : memref<1632x128xbf16, #tpu.memory_space<vmem>>, vector<64x64xbf16>
    %cst_225 = arith.constant dense<0.000000e+00> : vector<34x64xf32>
    %310 = tpu.matmul %308, %309, %cst_225 {dimension_numbers = #tpu.dot_dimension_numbers<[1], [0], [0], [1], [0, 0, 1, 1], [], []>} : vector<34x64xbf16>, vector<64x64xbf16>, vector<34x64xf32> -> vector<34x64xf32>
    %c1_226 = arith.constant 1 : index
    %c0_227 = arith.constant 0 : index
    %311 = vector.load %arg13[%c1_226, %c0_227] : memref<36x64xf32, #tpu.memory_space<vmem>>, vector<34x64xf32>
    %312 = arith.truncf %311 : vector<34x64xf32> to vector<34x64xbf16>
    %c1424 = arith.constant 1424 : index
    %c0_228 = arith.constant 0 : index
    %313 = vector.load %arg2[%c1424, %c0_228] : memref<1632x128xbf16, #tpu.memory_space<vmem>>, vector<64x64xbf16>
    %cst_229 = arith.constant dense<0.000000e+00> : vector<34x64xf32>
    %314 = tpu.matmul %312, %313, %cst_229 {dimension_numbers = #tpu.dot_dimension_numbers<[1], [0], [0], [1], [0, 0, 1, 1], [], []>} : vector<34x64xbf16>, vector<64x64xbf16>, vector<34x64xf32> -> vector<34x64xf32>
    %315 = arith.addf %310, %314 : vector<34x64xf32>
    %316 = arith.addf %306, %315 : vector<34x64xf32>
    %c2_230 = arith.constant 2 : index
    %c0_231 = arith.constant 0 : index
    %317 = vector.load %arg5[%c2_230, %c0_231] : memref<36x64xf32, #tpu.memory_space<vmem>>, vector<34x64xf32>
    %318 = arith.truncf %317 : vector<34x64xf32> to vector<34x64xbf16>
    %c1296 = arith.constant 1296 : index
    %c0_232 = arith.constant 0 : index
    %319 = vector.load %arg2[%c1296, %c0_232] : memref<1632x128xbf16, #tpu.memory_space<vmem>>, vector<64x64xbf16>
    %cst_233 = arith.constant dense<0.000000e+00> : vector<34x64xf32>
    %320 = tpu.matmul %318, %319, %cst_233 {dimension_numbers = #tpu.dot_dimension_numbers<[1], [0], [0], [1], [0, 0, 1, 1], [], []>} : vector<34x64xbf16>, vector<64x64xbf16>, vector<34x64xf32> -> vector<34x64xf32>
    %c2_234 = arith.constant 2 : index
    %c0_235 = arith.constant 0 : index
    %321 = vector.load %arg13[%c2_234, %c0_235] : memref<36x64xf32, #tpu.memory_space<vmem>>, vector<34x64xf32>
    %322 = arith.truncf %321 : vector<34x64xf32> to vector<34x64xbf16>
    %c1488 = arith.constant 1488 : index
    %c0_236 = arith.constant 0 : index
    %323 = vector.load %arg2[%c1488, %c0_236] : memref<1632x128xbf16, #tpu.memory_space<vmem>>, vector<64x64xbf16>
    %cst_237 = arith.constant dense<0.000000e+00> : vector<34x64xf32>
    %324 = tpu.matmul %322, %323, %cst_237 {dimension_numbers = #tpu.dot_dimension_numbers<[1], [0], [0], [1], [0, 0, 1, 1], [], []>} : vector<34x64xbf16>, vector<64x64xbf16>, vector<34x64xf32> -> vector<34x64xf32>
    %325 = arith.addf %320, %324 : vector<34x64xf32>
    %326 = arith.addf %316, %325 : vector<34x64xf32>
    %c8 = arith.constant 8 : index
    %c0_238 = arith.constant 0 : index
    %327 = vector.load %arg3[%c8, %c0_238] : memref<9x128xf32, #tpu.memory_space<vmem>>, vector<1x64xf32>
    %328 = vector.broadcast %327 : vector<1x64xf32> to vector<34x64xf32>
    %329 = arith.addf %326, %328 : vector<34x64xf32>
    %c1552 = arith.constant 1552 : index
    %c0_239 = arith.constant 0 : index
    %330 = vector.load %arg2[%c1552, %c0_239] : memref<1632x128xbf16, #tpu.memory_space<vmem>>, vector<32x34xbf16>
    %331 = arith.extf %330 : vector<32x34xbf16> to vector<32x34xf32>
    %cst_240 = arith.constant dense<0.000000e+00> : vector<32x64xf32>
    %332 = tpu.matmul %331, %329, %cst_240 {dimension_numbers = #tpu.dot_dimension_numbers<[1], [0], [0], [1], [0, 0, 1, 1], [], []>} : vector<32x34xf32>, vector<34x64xf32>, vector<32x64xf32> -> vector<32x64xf32>
    %c0_241 = arith.constant 0 : index
    %c0_242 = arith.constant 0 : index
    %333 = vector.load %arg4[%c0_241, %c0_242] : memref<32x64xf32, #tpu.memory_space<vmem>>, vector<32x64xf32>
    tpu.vector_store %arg4[%c0_241, %c0_242], %332 {strides = array<i32>} : memref<32x64xf32, #tpu.memory_space<vmem>>, vector<32x64xf32>,
    return
  }
  func.func @transform_0(%arg0: i32) -> (i32, i32) {
    %c0_i32 = arith.constant 0 : i32
    %c0_i32_0 = arith.constant 0 : i32
    return %arg0, %c0_i32 : i32, i32
  }
  func.func @transform_1(%arg0: i32) -> (i32, i32) {
    %c0_i32 = arith.constant 0 : i32
    %c0_i32_0 = arith.constant 0 : i32
    %c0_i32_1 = arith.constant 0 : i32
    return %c0_i32, %c0_i32_0 : i32, i32
  }
  func.func @transform_2(%arg0: i32) -> (i32, i32) {
    %c0_i32 = arith.constant 0 : i32
    %c0_i32_0 = arith.constant 0 : i32
    %c0_i32_1 = arith.constant 0 : i32
    return %c0_i32, %c0_i32_0 : i32, i32
  }
  func.func @transform_3(%arg0: i32) -> (i32, i32) {
    %c0_i32 = arith.constant 0 : i32
    %c0_i32_0 = arith.constant 0 : i32
    return %arg0, %c0_i32 : i32, i32
  }
}

</mosaic_0001>

<llo_original>
// kernel: unet_forward.1
$region0: #{unet_forward.1}
  #allocation0 [shape = 'u32[]', space=smem, size = 0x4, offset = 0x4, fixed_abs, tag = 'smem constant byte address 0x4 - core index']
  #allocation1 [shape = 'u32[72,128]{1,0:T(1,128)}', space=vmem, size = 0x9000, scoped, tag = 'internal scratch']
  #allocation2 [shape = 'f32[36,64]{1,0:T(8,128)}', space=vmem, size = 0x5000, scoped, tag = 'scratch operand']
  #allocation3 [shape = 'f32[20,32]{1,0:T(8,128)}', space=vmem, size = 0x3000, scoped, tag = 'scratch operand']
  #allocation4 [shape = 'f32[12,16]{1,0:T(8,128)}', space=vmem, size = 0x2000, scoped, tag = 'scratch operand']
  #allocation5 [shape = 'f32[12,16]{1,0:T(8,128)}', space=vmem, size = 0x2000, scoped, tag = 'scratch operand']
  #allocation6 [shape = 'f32[8,8]{1,0:T(8,128)}', space=vmem, size = 0x1000, scoped, tag = 'scratch operand']
  #allocation7 [shape = 'f32[8,8]{1,0:T(8,128)}', space=vmem, size = 0x1000, scoped, tag = 'scratch operand']
  #allocation8 [shape = 'f32[12,16]{1,0:T(8,128)}', space=vmem, size = 0x2000, scoped, tag = 'scratch operand']
  #allocation9 [shape = 'f32[20,32]{1,0:T(8,128)}', space=vmem, size = 0x3000, scoped, tag = 'scratch operand']
  #allocation10 [shape = 'f32[36,64]{1,0:T(8,128)}', space=vmem, size = 0x5000, scoped, tag = 'scratch operand']
  %s0 = inlined_call_operand.vmem [shape: f32[32,64], index: 0, kind: input, shape index: {}]
  %s1 = inlined_call_operand.hbm [shape: bf16[1632,128], index: 1, kind: input, shape index: {}]
  %s2 = inlined_call_operand.vmem [shape: f32[9,128], index: 2, kind: input, shape index: {}]
  %s3 = inlined_call_operand.vmem [shape: f32[32,64], index: 3, kind: output, shape index: {}]
  %s4 = sld [smem:[#allocation0]]
  $region26: #{unet_forward.1} parent=0
    _
  %s6 = ssub.s32 1, %s4
  %s7 = scalar_select 0, %s6, %s4
  $region1: #{unet_forward.1} parent=0
    #allocation11 [shape = 'u8[417792]{0}', space=vmem, size = 0x66000, scoped, tag = 'input window, operand 1, single buffered']
    #allocation12 [shape = 's32[1]{0}', space=sflag, size = 0x4, scoped, tag = 'scoped memory for unet_forward.1']
    %8 = vsyncpa [#allocation12], 0
    // Predicated region
    $region2: #{unet_forward.1} parent=1 // pred_check
      _
    $region3: #{unet_forward.1} parent=1 // pred_check_branch
      %10 = sbr.rel (0) target = $region5
    $region4: #{unet_forward.1} parent=1 // pred_region
      _
    $region5: #{unet_forward.1} parent=1 // pred_fallthru
      _
    // Predicated region
    $region6: #{unet_forward.1} parent=1 // pred_check
      _
    $region7: #{unet_forward.1} parent=1 // pred_check_branch
      %12 = sbr.rel (0) target = $region9
    $region8: #{unet_forward.1} parent=1 // pred_region
      %14 = vsyncadd [#allocation12], 0
      %s15 = sshll.u32 %s1, 4
      %s16 = int_to_ptr.hbm [resolvable:$true] %s15
      %s17 = sshll.u32 [#allocation11], 4
      %s18 = int_to_ptr.vmem [resolvable:$true] %s17
      %23 = dma.hbm_to_vmem [thread:$0]  %s16, 13056, %s18, [#allocation12], 64, 64, 4
    $region9: #{unet_forward.1} parent=1 // pred_fallthru
      _
    // Predicated region
    $region10: #{unet_forward.1} parent=1 // pred_check
      _
    $region11: #{unet_forward.1} parent=1 // pred_check_branch
      %25 = sbr.rel (0) target = $region13
    $region12: #{unet_forward.1} parent=1 // pred_region
      _
    $region13: #{unet_forward.1} parent=1 // pred_fallthru
      _
    // Predicated region
    $region14: #{unet_forward.1} parent=1 // pred_check
      _
    $region15: #{unet_forward.1} parent=1 // pred_check_branch
      %27 = sbr.rel (0) target = $region17
    $region16: #{unet_forward.1} parent=1 // pred_region
      %29 = dma.done [#allocation12], 13056
    $region17: #{unet_forward.1} parent=1 // pred_fallthru
      _
    %v31 = vld [vmem:[#allocation11 + $0x318] sm:$0xf]
    %v32 = vld [vmem:[#allocation11 + $0x31c] sm:$0xf]
    %v33 = vld [vmem:[#allocation11 + $0x320] sm:$0xf]
    %v34 = vld [vmem:[#allocation11 + $0x324] sm:$0xf]
    %v35 = vld [vmem:[#allocation11 + $0x328] sm:$0x3]
    %v36 = vld [vmem:[%s0] sm:$0xff]
    %v37 = vld [vmem:[%s0 + $0x8] sm:$0xff]
    %v38 = vld [vmem:[%s0 + $0x10] sm:$0xff]
    %v39 = vld [vmem:[%s0 + $0x18] sm:$0xff]
    %v40 = vpack.c.bf16 %v37, %v36
    %v41 = vpack.c.bf16 %v39, %v38
    %v47 = vunpack.c.l.b16 %v31
    %v48 = vunpack.c.l.b16 %v32
    %v49 = vunpack.c.l.b16 %v33
    %v50 = vunpack.c.l.b16 %v34
    %v51 = vunpack.c.l.b16 %v35
    %v52 = vpack.c.b16 %v48, %v47
    %v53 = vpack.c.b16 %v50, %v49
    %v54 = vpack.c.b16 %v51, %v51
    %vm55 = vcmask 261120
    %v57 = vsel %vm55, %v52, 0
    %v60 = vsel %vm55, %v53, 0
    %v63 = vsel %vm55, %v54, 0
    %65 = vmatpush.bf16.msra.mxu0 0
    %66 = vmatpush.bf16.msra.mxu0 0
    %67 = vmatpush.bf16.msra.mxu0 0
    %68 = vmatpush.bf16.msra.mxu0 0
    %69 = vmatpush.bf16.msra.mxu0 0
    %70 = vmatpush.bf16.msra.mxu0 0
    %71 = vmatpush.bf16.msra.mxu0 %v41
    %72 = vmatpush.bf16.msra.mxu0 %v40
    %73 = vmatmul.bf16.gmra.mxu0 %v57
    %v74 = vpop.f32.mrf.mxu0
    %v75 = vadd.f32 0.0, %v74
    %v76 = vpop.f32.mrf.mxu0
    %v77 = vadd.f32 0.0, %v76
    %78 = vmatmul.bf16.gmra.mxu0 %v60
    %v79 = vpop.f32.mrf.mxu0
    %v80 = vadd.f32 0.0, %v79
    %v81 = vpop.f32.mrf.mxu0
    %v82 = vadd.f32 0.0, %v81
    %83 = vmatmul.bf16.gmra.mxu0 %v63
    %v84 = vpop.f32.mrf.mxu0
    %v85 = vadd.f32 0.0, %v84
    %v86 = vpop.f32.mrf.mxu0
    %87 = vdwg.mxu0
    %vm88 = vcmask 523264
    %89 = vst.msk [vmem:[#allocation2] sm:$0xff] %vm88, %v75
    %90 = vst.msk [vmem:[#allocation2 + $0x8] sm:$0xff] %vm88, %v77
    %91 = vst.msk [vmem:[#allocation2 + $0x10] sm:$0xff] %vm88, %v80
    %92 = vst.msk [vmem:[#allocation2 + $0x18] sm:$0xff] %vm88, %v82
    %vm93 = vcmask 519168
    %94 = vst.msk [vmem:[#allocation2 + $0x20] sm:$0xf] %vm93, %v85
    %v95 = vld [vmem:[#allocation2] sm:$0xff]
    %v96 = vld [vmem:[#allocation2 + $0x8] sm:$0xff]
    %v97 = vld [vmem:[#allocation2 + $0x10] sm:$0xff]
    %v98 = vld [vmem:[#allocation2 + $0x18] sm:$0xff]
    %v99 = vld [vmem:[#allocation2 + $0x20] sm:$0x1]
    %v100 = vpack.c.bf16 %v96, %v95
    %v101 = vpack.c.bf16 %v98, %v97
    %v102 = vpack.c.bf16 %v99, %v99
    %v103 = vld [vmem:[#allocation11] sm:$0xf]
    %v104 = vld [vmem:[#allocation11 + $0x4] sm:$0xf]
    %v105 = vld [vmem:[#allocation11 + $0x8] sm:$0xf]
    %v106 = vld [vmem:[#allocation11 + $0xc] sm:$0xf]
    %v107 = vld [vmem:[#allocation11 + $0x10] sm:$0xf]
    %v108 = vld [vmem:[#allocation11 + $0x14] sm:$0xf]
    %v109 = vld [vmem:[#allocation11 + $0x18] sm:$0xf]
    %v110 = vld [vmem:[#allocation11 + $0x1c] sm:$0xf]
    %v111 = vld [vmem:[#allocation2 + $0x1] sm:$0xff]
    %v112 = vld [vmem:[#allocation2 + $0x9] sm:$0xff]
    %v113 = vld [vmem:[#allocation2 + $0x11] sm:$0xff]
    %v114 = vld [vmem:[#allocation2 + $0x19] sm:$0xff]
    %v115 = vld [vmem:[#allocation2 + $0x21] sm:$0x1]
    %v116 = vpack.c.bf16 %v112, %v111
    %v117 = vpack.c.bf16 %v114, %v113
    %v118 = vpack.c.bf16 %v115, %v115
    %v119 = vld [vmem:[#allocation11 + $0x20] sm:$0xf]
    %v120 = vld [vmem:[#allocation11 + $0x24] sm:$0xf]
    %v121 = vld [vmem:[#allocation11 + $0x28] sm:$0xf]
    %v122 = vld [vmem:[#allocation11 + $0x2c] sm:$0xf]
    %v123 = vld [vmem:[#allocation11 + $0x30] sm:$0xf]
    %v124 = vld [vmem:[#allocation11 + $0x34] sm:$0xf]
    %v125 = vld [vmem:[#allocation11 + $0x38] sm:$0xf]
    %v126 = vld [vmem:[#allocation11 + $0x3c] sm:$0xf]
    %v135 = vunpack.c.l.b16 %v119
    %v136 = vunpack.c.l.b16 %v120
    %v137 = vunpack.c.l.b16 %v121
    %v138 = vunpack.c.l.b16 %v122
    %v139 = vunpack.c.l.b16 %v123
    %v140 = vunpack.c.l.b16 %v124
    %v141 = vunpack.c.l.b16 %v125
    %v142 = vunpack.c.l.b16 %v126
    %v143 = vpack.c.b16 %v136, %v135
    %v144 = vpack.c.b16 %v138, %v137
    %v145 = vpack.c.b16 %v140, %v139
    %v146 = vpack.c.b16 %v142, %v141
    %v152 = vsel %vm88, %v116, 0
    %v155 = vsel %vm88, %v117, 0
    %v158 = vsel %vm88, %v118, 0
    %160 = vmatpush.bf16.msra.mxu0 0
    %161 = vmatpush.bf16.msra.mxu0 0
    %162 = vmatpush.bf16.msra.mxu0 0
    %163 = vmatpush.bf16.msra.mxu0 0
    %164 = vmatpush.bf16.msra.mxu0 %v146
    %165 = vmatpush.bf16.msra.mxu0 %v145
    %166 = vmatpush.bf16.msra.mxu0 %v144
    %167 = vmatpush.bf16.msra.mxu0 %v143
    %168 = vmatmul.bf16.gmra.mxu0 %v152
    %v169 = vpop.f32.mrf.mxu0
    %v170 = vadd.f32 0.0, %v169
    %v171 = vpop.f32.mrf.mxu0
    %v172 = vadd.f32 0.0, %v171
    %173 = vmatmul.bf16.gmra.mxu0 %v155
    %v174 = vpop.f32.mrf.mxu0
    %v175 = vadd.f32 0.0, %v174
    %v176 = vpop.f32.mrf.mxu0
    %v177 = vadd.f32 0.0, %v176
    %178 = vmatmul.bf16.gmra.mxu0 %v158
    %v179 = vpop.f32.mrf.mxu0
    %v180 = vadd.f32 0.0, %v179
    %v181 = vpop.f32.mrf.mxu0
    %182 = vdwg.mxu0
    %v191 = vunpack.c.l.b16 %v103
    %v192 = vunpack.c.l.b16 %v104
    %v193 = vunpack.c.l.b16 %v105
    %v194 = vunpack.c.l.b16 %v106
    %v195 = vunpack.c.l.b16 %v107
    %v196 = vunpack.c.l.b16 %v108
    %v197 = vunpack.c.l.b16 %v109
    %v198 = vunpack.c.l.b16 %v110
    %v199 = vpack.c.b16 %v192, %v191
    %v200 = vpack.c.b16 %v194, %v193
    %v201 = vpack.c.b16 %v196, %v195
    %v202 = vpack.c.b16 %v198, %v197
    %v208 = vsel %vm88, %v100, 0
    %v211 = vsel %vm88, %v101, 0
    %v214 = vsel %vm88, %v102, 0
    %216 = vmatpush.bf16.msra.mxu0 0
    %217 = vmatpush.bf16.msra.mxu0 0
    %218 = vmatpush.bf16.msra.mxu0 0
    %219 = vmatpush.bf16.msra.mxu0 0
    %220 = vmatpush.bf16.msra.mxu0 %v202
    %221 = vmatpush.bf16.msra.mxu0 %v201
    %222 = vmatpush.bf16.msra.mxu0 %v200
    %223 = vmatpush.bf16.msra.mxu0 %v199
    %224 = vmatmul.bf16.gmra.mxu0 %v208
    %v225 = vpop.f32.mrf.mxu0
    %v226 = vadd.f32 %v170, %v225
    %v227 = vpop.f32.mrf.mxu0
    %v228 = vadd.f32 %v172, %v227
    %229 = vmatmul.bf16.gmra.mxu0 %v211
    %v230 = vpop.f32.mrf.mxu0
    %v231 = vadd.f32 %v175, %v230
    %v232 = vpop.f32.mrf.mxu0
    %v233 = vadd.f32 %v177, %v232
    %234 = vmatmul.bf16.gmra.mxu0 %v214
    %v235 = vpop.f32.mrf.mxu0
    %v236 = vadd.f32 %v180, %v235
    %v237 = vpop.f32.mrf.mxu0
    %238 = vdwg.mxu0
    %v239 = vld [vmem:[#allocation2 + $0x2] sm:$0xff]
    %v240 = vld [vmem:[#allocation2 + $0xa] sm:$0xff]
    %v241 = vld [vmem:[#allocation2 + $0x12] sm:$0xff]
    %v242 = vld [vmem:[#allocation2 + $0x1a] sm:$0xff]
    %v243 = vld [vmem:[#allocation2 + $0x22] sm:$0x1]
    %v244 = vpack.c.bf16 %v240, %v239
    %v245 = vpack.c.bf16 %v242, %v241
    %v246 = vpack.c.bf16 %v243, %v243
    %v247 = vld [vmem:[#allocation11 + $0x40] sm:$0xf]
    %v248 = vld [vmem:[#allocation11 + $0x44] sm:$0xf]
    %v249 = vld [vmem:[#allocation11 + $0x48] sm:$0xf]
    %v250 = vld [vmem:[#allocation11 + $0x4c] sm:$0xf]
    %v251 = vld [vmem:[#allocation11 + $0x50] sm:$0xf]
    %v252 = vld [vmem:[#allocation11 + $0x54] sm:$0xf]
    %v253 = vld [vmem:[#allocation11 + $0x58] sm:$0xf]
    %v254 = vld [vmem:[#allocation11 + $0x5c] sm:$0xf]
    %v263 = vunpack.c.l.b16 %v247
    %v264 = vunpack.c.l.b16 %v248
    %v265 = vunpack.c.l.b16 %v249
    %v266 = vunpack.c.l.b16 %v250
    %v267 = vunpack.c.l.b16 %v251
    %v268 = vunpack.c.l.b16 %v252
    %v269 = vunpack.c.l.b16 %v253
    %v270 = vunpack.c.l.b16 %v254
    %v271 = vpack.c.b16 %v264, %v263
    %v272 = vpack.c.b16 %v266, %v265
    %v273 = vpack.c.b16 %v268, %v267
    %v274 = vpack.c.b16 %v270, %v269
    %v280 = vsel %vm88, %v244, 0
    %v283 = vsel %vm88, %v245, 0
    %v286 = vsel %vm88, %v246, 0
    %288 = vmatpush.bf16.msra.mxu0 0
    %289 = vmatpush.bf16.msra.mxu0 0
    %290 = vmatpush.bf16.msra.mxu0 0
    %291 = vmatpush.bf16.msra.mxu0 0
    %292 = vmatpush.bf16.msra.mxu0 %v274
    %293 = vmatpush.bf16.msra.mxu0 %v273
    %294 = vmatpush.bf16.msra.mxu0 %v272
    %295 = vmatpush.bf16.msra.mxu0 %v271
    %296 = vmatmul.bf16.gmra.mxu0 %v280
    %v297 = vpop.f32.mrf.mxu0
    %v298 = vadd.f32 0.0, %v297
    %v299 = vpop.f32.mrf.mxu0
    %v300 = vadd.f32 0.0, %v299
    %301 = vmatmul.bf16.gmra.mxu0 %v283
    %v302 = vpop.f32.mrf.mxu0
    %v303 = vadd.f32 0.0, %v302
    %v304 = vpop.f32.mrf.mxu0
    %v305 = vadd.f32 0.0, %v304
    %306 = vmatmul.bf16.gmra.mxu0 %v286
    %v307 = vpop.f32.mrf.mxu0
    %v308 = vadd.f32 0.0, %v307
    %v309 = vpop.f32.mrf.mxu0
    %310 = vdwg.mxu0
    %v311 = vadd.f32 %v226, %v298
    %v312 = vadd.f32 %v228, %v300
    %v313 = vadd.f32 %v231, %v303
    %v314 = vadd.f32 %v233, %v305
    %v315 = vadd.f32 %v236, %v308
    %v316 = vld [vmem:[%s2] sm:$0x1]
    %v317 = vperm.slane %v316, 0
    %v318 = vadd.f32 %v311, %v317
    %v319 = vadd.f32 %v312, %v317
    %v320 = vadd.f32 %v313, %v317
    %v321 = vadd.f32 %v314, %v317
    %v322 = vadd.f32 %v315, %v317
    %vm323 = vcmp.ge.f32.partialorder %v318, 0.0
    %vm324 = vcmp.ge.f32.partialorder %v319, 0.0
    %vm325 = vcmp.ge.f32.partialorder %v320, 0.0
    %vm326 = vcmp.ge.f32.partialorder %v321, 0.0
    %vm327 = vcmp.ge.f32.partialorder %v322, 0.0
    %v328 = vmul.f32 %v318, 0.1
    %v329 = vmul.f32 %v319, 0.1
    %v330 = vmul.f32 %v320, 0.1
    %v331 = vmul.f32 %v321, 0.1
    %v332 = vmul.f32 %v322, 0.1
    %v333 = vsel %vm323, %v318, %v328
    %v334 = vsel %vm324, %v319, %v329
    %v335 = vsel %vm325, %v320, %v330
    %v336 = vsel %vm326, %v321, %v331
    %v337 = vsel %vm327, %v322, %v332
    %v338 = vld [vmem:[#allocation11 + $0x60] sm:$0xf]
    %v339 = vld [vmem:[#allocation11 + $0x64] sm:$0xf]
    %v340 = vld [vmem:[#allocation11 + $0x68] sm:$0x3]
    %v341 = vpack.c.bf16 %v334, %v333
    %v342 = vpack.c.bf16 %v336, %v335
    %v343 = vpack.c.bf16 %v337, %v337
    %v347 = vunpack.c.l.b16 %v338
    %v348 = vunpack.c.l.b16 %v339
    %v349 = vunpack.c.l.b16 %v340
    %v350 = vpack.c.b16 %v348, %v347
    %v351 = vpack.c.b16 %v349, %v349
    %vm352 = vcmask 269312
    %v354 = vsel %vm352, %v350, 0
    %v357 = vsel %vm352, %v351, 0
    %vm359 = vcmask 1040384
    %v360 = vsel 0, 4294967295, 65535
    %v361 = vsel %vm359, %v360, 0
    %v363 = vand.u32 %v343, %v361
    %365 = vmatpush.bf16.msra.mxu0 0
    %366 = vmatpush.bf16.msra.mxu0 0
    %367 = vmatpush.bf16.msra.mxu0 0
    %368 = vmatpush.bf16.msra.mxu0 0
    %369 = vmatpush.bf16.msra.mxu0 0
    %370 = vmatpush.bf16.msra.mxu0 %v363
    %371 = vmatpush.bf16.msra.mxu0 %v342
    %372 = vmatpush.bf16.msra.mxu0 %v341
    %373 = vmatmul.bf16.gmra.mxu0 %v354
    %v374 = vpop.f32.mrf.mxu0
    %v375 = vadd.f32 0.0, %v374
    %v376 = vpop.f32.mrf.mxu0
    %v377 = vadd.f32 0.0, %v376
    %378 = vmatmul.bf16.gmra.mxu0 %v357
    %v379 = vpop.f32.mrf.mxu0
    %v380 = vadd.f32 0.0, %v379
    %v381 = vpop.f32.mrf.mxu0
    %382 = vdwg.mxu0
    %383 = vst.msk [vmem:[#allocation3] sm:$0xff] %vm55, %v375
    %384 = vst.msk [vmem:[#allocation3 + $0x8] sm:$0xff] %vm55, %v377
    %vm385 = vcmask 257024
    %386 = vst.msk [vmem:[#allocation3 + $0x10] sm:$0xf] %vm385, %v380
    %v387 = vld [vmem:[#allocation3] sm:$0xff]
    %v388 = vld [vmem:[#allocation3 + $0x8] sm:$0xff]
    %v389 = vld [vmem:[#allocation3 + $0x10] sm:$0x1]
    %v390 = vpack.c.bf16 %v388, %v387
    %v391 = vpack.c.bf16 %v389, %v389
    %v392 = vld [vmem:[#allocation11 + $0x70] sm:$0xf]
    %v393 = vld [vmem:[#allocation11 + $0x74] sm:$0xf]
    %v394 = vld [vmem:[#allocation11 + $0x78] sm:$0xf]
    %v395 = vld [vmem:[#allocation11 + $0x7c] sm:$0xf]
    %v396 = vld [vmem:[#allocation3 + $0x1] sm:$0xff]
    %v397 = vld [vmem:[#allocation3 + $0x9] sm:$0xff]
    %v398 = vld [vmem:[#allocation3 + $0x11] sm:$0x1]
    %v399 = vpack.c.bf16 %v397, %v396
    %v400 = vpack.c.bf16 %v398, %v398
    %v401 = vld [vmem:[#allocation11 + $0x80] sm:$0xf]
    %v402 = vld [vmem:[#allocation11 + $0x84] sm:$0xf]
    %v403 = vld [vmem:[#allocation11 + $0x88] sm:$0xf]
    %v404 = vld [vmem:[#allocation11 + $0x8c] sm:$0xf]
    %v409 = vunpack.c.l.b16 %v401
    %v410 = vunpack.c.l.b16 %v402
    %v411 = vunpack.c.l.b16 %v403
    %v412 = vunpack.c.l.b16 %v404
    %v413 = vpack.c.b16 %v410, %v409
    %v414 = vpack.c.b16 %v412, %v411
    %v418 = vsel %vm55, %v399, 0
    %v421 = vsel %vm55, %v400, 0
    %423 = vmatpush.bf16.msra.mxu0 0
    %424 = vmatpush.bf16.msra.mxu0 0
    %425 = vmatpush.bf16.msra.mxu0 0
    %426 = vmatpush.bf16.msra.mxu0 0
    %427 = vmatpush.bf16.msra.mxu0 0
    %428 = vmatpush.bf16.msra.mxu0 0
    %429 = vmatpush.bf16.msra.mxu0 %v414
    %430 = vmatpush.bf16.msra.mxu0 %v413
    %431 = vmatmul.bf16.gmra.mxu0 %v418
    %v432 = vpop.f32.mrf.mxu0
    %v433 = vadd.f32 0.0, %v432
    %v434 = vpop.f32.mrf.mxu0
    %v435 = vadd.f32 0.0, %v434
    %436 = vmatmul.bf16.gmra.mxu0 %v421
    %v437 = vpop.f32.mrf.mxu0
    %v438 = vadd.f32 0.0, %v437
    %v439 = vpop.f32.mrf.mxu0
    %440 = vdwg.mxu0
    %v445 = vunpack.c.l.b16 %v392
    %v446 = vunpack.c.l.b16 %v393
    %v447 = vunpack.c.l.b16 %v394
    %v448 = vunpack.c.l.b16 %v395
    %v449 = vpack.c.b16 %v446, %v445
    %v450 = vpack.c.b16 %v448, %v447
    %v454 = vsel %vm55, %v390, 0
    %v457 = vsel %vm55, %v391, 0
    %459 = vmatpush.bf16.msra.mxu0 0
    %460 = vmatpush.bf16.msra.mxu0 0
    %461 = vmatpush.bf16.msra.mxu0 0
    %462 = vmatpush.bf16.msra.mxu0 0
    %463 = vmatpush.bf16.msra.mxu0 0
    %464 = vmatpush.bf16.msra.mxu0 0
    %465 = vmatpush.bf16.msra.mxu0 %v450
    %466 = vmatpush.bf16.msra.mxu0 %v449
    %467 = vmatmul.bf16.gmra.mxu0 %v454
    %v468 = vpop.f32.mrf.mxu0
    %v469 = vadd.f32 %v433, %v468
    %v470 = vpop.f32.mrf.mxu0
    %v471 = vadd.f32 %v435, %v470
    %472 = vmatmul.bf16.gmra.mxu0 %v457
    %v473 = vpop.f32.mrf.mxu0
    %v474 = vadd.f32 %v438, %v473
    %v475 = vpop.f32.mrf.mxu0
    %476 = vdwg.mxu0
    %v477 = vld [vmem:[#allocation3 + $0x2] sm:$0xff]
    %v478 = vld [vmem:[#allocation3 + $0xa] sm:$0xff]
    %v479 = vld [vmem:[#allocation3 + $0x12] sm:$0x1]
    %v480 = vpack.c.bf16 %v478, %v477
    %v481 = vpack.c.bf16 %v479, %v479
    %v482 = vld [vmem:[#allocation11 + $0x90] sm:$0xf]
    %v483 = vld [vmem:[#allocation11 + $0x94] sm:$0xf]
    %v484 = vld [vmem:[#allocation11 + $0x98] sm:$0xf]
    %v485 = vld [vmem:[#allocation11 + $0x9c] sm:$0xf]
    %v490 = vunpack.c.l.b16 %v482
    %v491 = vunpack.c.l.b16 %v483
    %v492 = vunpack.c.l.b16 %v484
    %v493 = vunpack.c.l.b16 %v485
    %v494 = vpack.c.b16 %v491, %v490
    %v495 = vpack.c.b16 %v493, %v492
    %v499 = vsel %vm55, %v480, 0
    %v502 = vsel %vm55, %v481, 0
    %504 = vmatpush.bf16.msra.mxu0 0
    %505 = vmatpush.bf16.msra.mxu0 0
    %506 = vmatpush.bf16.msra.mxu0 0
    %507 = vmatpush.bf16.msra.mxu0 0
    %508 = vmatpush.bf16.msra.mxu0 0
    %509 = vmatpush.bf16.msra.mxu0 0
    %510 = vmatpush.bf16.msra.mxu0 %v495
    %511 = vmatpush.bf16.msra.mxu0 %v494
    %512 = vmatmul.bf16.gmra.mxu0 %v499
    %v513 = vpop.f32.mrf.mxu0
    %v514 = vadd.f32 0.0, %v513
    %v515 = vpop.f32.mrf.mxu0
    %v516 = vadd.f32 0.0, %v515
    %517 = vmatmul.bf16.gmra.mxu0 %v502
    %v518 = vpop.f32.mrf.mxu0
    %v519 = vadd.f32 0.0, %v518
    %v520 = vpop.f32.mrf.mxu0
    %521 = vdwg.mxu0
    %v522 = vadd.f32 %v469, %v514
    %v523 = vadd.f32 %v471, %v516
    %v524 = vadd.f32 %v474, %v519
    %v525 = vld [vmem:[%s2 + $0x1] sm:$0x1]
    %v526 = vperm.slane %v525, 0
    %v527 = vadd.f32 %v522, %v526
    %v528 = vadd.f32 %v523, %v526
    %v529 = vadd.f32 %v524, %v526
    %vm530 = vcmp.ge.f32.partialorder %v527, 0.0
    %vm531 = vcmp.ge.f32.partialorder %v528, 0.0
    %vm532 = vcmp.ge.f32.partialorder %v529, 0.0
    %v533 = vmul.f32 %v527, 0.1
    %v534 = vmul.f32 %v528, 0.1
    %v535 = vmul.f32 %v529, 0.1
    %v536 = vsel %vm530, %v527, %v533
    %v537 = vsel %vm531, %v528, %v534
    %v538 = vsel %vm532, %v529, %v535
    %v539 = vld [vmem:[#allocation11 + $0xa0] sm:$0xf]
    %v540 = vld [vmem:[#allocation11 + $0xa4] sm:$0x3]
    %v541 = vpack.c.bf16 %v537, %v536
    %v542 = vpack.c.bf16 %v538, %v538
    %v545 = vunpack.c.l.b16 %v539
    %v546 = vunpack.c.l.b16 %v540
    %v547 = vpack.c.b16 %v546, %v545
    %vm548 = vcmask 138240
    %v550 = vsel %vm548, %v547, 0
    %v553 = vand.u32 %v542, %v361
    %555 = vmatpush.bf16.msra.mxu0 0
    %556 = vmatpush.bf16.msra.mxu0 0
    %557 = vmatpush.bf16.msra.mxu0 0
    %558 = vmatpush.bf16.msra.mxu0 0
    %559 = vmatpush.bf16.msra.mxu0 0
    %560 = vmatpush.bf16.msra.mxu0 0
    %561 = vmatpush.bf16.msra.mxu0 %v553
    %562 = vmatpush.bf16.msra.mxu0 %v541
    %563 = vmatmul.bf16.gmra.mxu0 %v550
    %v564 = vpop.f32.mrf.mxu0
    %v565 = vadd.f32 0.0, %v564
    %v566 = vpop.f32.mrf.mxu0
    %v567 = vadd.f32 0.0, %v566
    %568 = vdwg.mxu0
    %vm569 = vcmask 130048
    %570 = vst.msk [vmem:[#allocation4] sm:$0xff] %vm569, %v565
    %vm571 = vcmask 125952
    %572 = vst.msk [vmem:[#allocation4 + $0x8] sm:$0xf] %vm571, %v567
    %v573 = vld [vmem:[#allocation4] sm:$0xff]
    %v574 = vld [vmem:[#allocation4 + $0x8] sm:$0x3]
    %v575 = vpack.c.bf16 %v574, %v573
    %v576 = vld [vmem:[#allocation11 + $0xa8] sm:$0xf]
    %v577 = vld [vmem:[#allocation11 + $0xac] sm:$0xf]
    %v578 = vld [vmem:[#allocation4 + $0x1] sm:$0xff]
    %v579 = vld [vmem:[#allocation4 + $0x9] sm:$0x3]
    %v580 = vpack.c.bf16 %v579, %v578
    %v581 = vld [vmem:[#allocation11 + $0xb0] sm:$0xf]
    %v582 = vld [vmem:[#allocation11 + $0xb4] sm:$0xf]
    %v585 = vunpack.c.l.b16 %v581
    %v586 = vunpack.c.l.b16 %v582
    %v587 = vpack.c.b16 %v586, %v585
    %v590 = vsel %vm569, %v580, 0
    %592 = vmatpush.bf16.msra.mxu0 0
    %593 = vmatpush.bf16.msra.mxu0 0
    %594 = vmatpush.bf16.msra.mxu0 0
    %595 = vmatpush.bf16.msra.mxu0 0
    %596 = vmatpush.bf16.msra.mxu0 0
    %597 = vmatpush.bf16.msra.mxu0 0
    %598 = vmatpush.bf16.msra.mxu0 0
    %599 = vmatpush.bf16.msra.mxu0 %v587
    %600 = vmatmul.bf16.gmra.mxu0 %v590
    %v601 = vpop.f32.mrf.mxu0
    %v602 = vadd.f32 0.0, %v601
    %v603 = vpop.f32.mrf.mxu0
    %v604 = vadd.f32 0.0, %v603
    %605 = vdwg.mxu0
    %v608 = vunpack.c.l.b16 %v576
    %v609 = vunpack.c.l.b16 %v577
    %v610 = vpack.c.b16 %v609, %v608
    %v613 = vsel %vm569, %v575, 0
    %615 = vmatpush.bf16.msra.mxu0 0
    %616 = vmatpush.bf16.msra.mxu0 0
    %617 = vmatpush.bf16.msra.mxu0 0
    %618 = vmatpush.bf16.msra.mxu0 0
    %619 = vmatpush.bf16.msra.mxu0 0
    %620 = vmatpush.bf16.msra.mxu0 0
    %621 = vmatpush.bf16.msra.mxu0 0
    %622 = vmatpush.bf16.msra.mxu0 %v610
    %623 = vmatmul.bf16.gmra.mxu0 %v613
    %v624 = vpop.f32.mrf.mxu0
    %v625 = vadd.f32 %v602, %v624
    %v626 = vpop.f32.mrf.mxu0
    %v627 = vadd.f32 %v604, %v626
    %628 = vdwg.mxu0
    %v629 = vld [vmem:[#allocation4 + $0x2] sm:$0xff]
    %v630 = vld [vmem:[#allocation4 + $0xa] sm:$0x3]
    %v631 = vpack.c.bf16 %v630, %v629
    %v632 = vld [vmem:[#allocation11 + $0xb8] sm:$0xf]
    %v633 = vld [vmem:[#allocation11 + $0xbc] sm:$0xf]
    %v636 = vunpack.c.l.b16 %v632
    %v637 = vunpack.c.l.b16 %v633
    %v638 = vpack.c.b16 %v637, %v636
    %v641 = vsel %vm569, %v631, 0
    %643 = vmatpush.bf16.msra.mxu0 0
    %644 = vmatpush.bf16.msra.mxu0 0
    %645 = vmatpush.bf16.msra.mxu0 0
    %646 = vmatpush.bf16.msra.mxu0 0
    %647 = vmatpush.bf16.msra.mxu0 0
    %648 = vmatpush.bf16.msra.mxu0 0
    %649 = vmatpush.bf16.msra.mxu0 0
    %650 = vmatpush.bf16.msra.mxu0 %v638
    %651 = vmatmul.bf16.gmra.mxu0 %v641
    %v652 = vpop.f32.mrf.mxu0
    %v653 = vadd.f32 0.0, %v652
    %v654 = vpop.f32.mrf.mxu0
    %v655 = vadd.f32 0.0, %v654
    %656 = vdwg.mxu0
    %v657 = vadd.f32 %v625, %v653
    %v658 = vadd.f32 %v627, %v655
    %v659 = vld [vmem:[%s2 + $0x2] sm:$0x1]
    %v660 = vperm.slane %v659, 0
    %v661 = vadd.f32 %v657, %v660
    %v662 = vadd.f32 %v658, %v660
    %vm663 = vcmp.ge.f32.partialorder %v661, 0.0
    %vm664 = vcmp.ge.f32.partialorder %v662, 0.0
    %v665 = vmul.f32 %v661, 0.1
    %v666 = vmul.f32 %v662, 0.1
    %v667 = vsel %vm663, %v661, %v665
    %v668 = vsel %vm664, %v662, %v666
    %v669 = vld [vmem:[#allocation11 + $0xc0] sm:$0xf]
    %v670 = vld [vmem:[#allocation11 + $0xc4] sm:$0x3]
    %v671 = vpack.c.bf16 %v668, %v667
    %v674 = vunpack.c.l.b16 %v669
    %v675 = vunpack.c.l.b16 %v670
    %v676 = vpack.c.b16 %v675, %v674
    %vm677 = vcmask 80896
    %v679 = vsel %vm677, %v676, 0
    %vm681 = vcmask 1044480
    %v683 = vsel %vm681, %v671, 0
    %685 = vmatpush.bf16.msra.mxu0 0
    %686 = vmatpush.bf16.msra.mxu0 0
    %687 = vmatpush.bf16.msra.mxu0 0
    %688 = vmatpush.bf16.msra.mxu0 0
    %689 = vmatpush.bf16.msra.mxu0 0
    %690 = vmatpush.bf16.msra.mxu0 0
    %691 = vmatpush.bf16.msra.mxu0 0
    %692 = vmatpush.bf16.msra.mxu0 %v683
    %693 = vmatmul.bf16.gmra.mxu0 %v679
    %v694 = vpop.f32.mrf.mxu0
    %v695 = vadd.f32 0.0, %v694
    %v696 = vpop.f32.mrf.mxu0
    %v697 = vadd.f32 0.0, %v696
    %698 = vdwg.mxu0
    %699 = vst.msk [vmem:[#allocation5] sm:$0xff] %vm569, %v695
    %700 = vst.msk [vmem:[#allocation5 + $0x8] sm:$0xf] %vm571, %v697
    %v701 = vld [vmem:[#allocation5] sm:$0xff]
    %v702 = vld [vmem:[#allocation5 + $0x8] sm:$0x1]
    %v703 = vpack.c.bf16 %v702, %v701
    %v704 = vld [vmem:[#allocation11 + $0xc8] sm:$0xf]
    %v705 = vld [vmem:[#allocation11 + $0xcc] sm:$0xf]
    %v706 = vld [vmem:[#allocation5 + $0x1] sm:$0xff]
    %v707 = vld [vmem:[#allocation5 + $0x9] sm:$0x1]
    %v708 = vpack.c.bf16 %v707, %v706
    %v709 = vld [vmem:[#allocation11 + $0xd0] sm:$0xf]
    %v710 = vld [vmem:[#allocation11 + $0xd4] sm:$0xf]
    %v713 = vunpack.c.l.b16 %v709
    %v714 = vunpack.c.l.b16 %v710
    %v715 = vpack.c.b16 %v714, %v713
    %v718 = vsel %vm569, %v708, 0
    %720 = vmatpush.bf16.msra.mxu0 0
    %721 = vmatpush.bf16.msra.mxu0 0
    %722 = vmatpush.bf16.msra.mxu0 0
    %723 = vmatpush.bf16.msra.mxu0 0
    %724 = vmatpush.bf16.msra.mxu0 0
    %725 = vmatpush.bf16.msra.mxu0 0
    %726 = vmatpush.bf16.msra.mxu0 0
    %727 = vmatpush.bf16.msra.mxu0 %v715
    %728 = vmatmul.bf16.gmra.mxu0 %v718
    %v729 = vpop.f32.mrf.mxu0
    %v730 = vadd.f32 0.0, %v729
    %v731 = vpop.f32.mrf.mxu0
    %v732 = vadd.f32 0.0, %v731
    %733 = vdwg.mxu0
    %v736 = vunpack.c.l.b16 %v704
    %v737 = vunpack.c.l.b16 %v705
    %v738 = vpack.c.b16 %v737, %v736
    %v741 = vsel %vm569, %v703, 0
    %743 = vmatpush.bf16.msra.mxu0 0
    %744 = vmatpush.bf16.msra.mxu0 0
    %745 = vmatpush.bf16.msra.mxu0 0
    %746 = vmatpush.bf16.msra.mxu0 0
    %747 = vmatpush.bf16.msra.mxu0 0
    %748 = vmatpush.bf16.msra.mxu0 0
    %749 = vmatpush.bf16.msra.mxu0 0
    %750 = vmatpush.bf16.msra.mxu0 %v738
    %751 = vmatmul.bf16.gmra.mxu0 %v741
    %v752 = vpop.f32.mrf.mxu0
    %v753 = vadd.f32 %v730, %v752
    %v754 = vpop.f32.mrf.mxu0
    %v755 = vadd.f32 %v732, %v754
    %756 = vdwg.mxu0
    %v757 = vld [vmem:[#allocation5 + $0x2] sm:$0xff]
    %v758 = vld [vmem:[#allocation5 + $0xa] sm:$0x1]
    %v759 = vpack.c.bf16 %v758, %v757
    %v760 = vld [vmem:[#allocation11 + $0xd8] sm:$0xf]
    %v761 = vld [vmem:[#allocation11 + $0xdc] sm:$0xf]
    %v764 = vunpack.c.l.b16 %v760
    %v765 = vunpack.c.l.b16 %v761
    %v766 = vpack.c.b16 %v765, %v764
    %v769 = vsel %vm569, %v759, 0
    %771 = vmatpush.bf16.msra.mxu0 0
    %772 = vmatpush.bf16.msra.mxu0 0
    %773 = vmatpush.bf16.msra.mxu0 0
    %774 = vmatpush.bf16.msra.mxu0 0
    %775 = vmatpush.bf16.msra.mxu0 0
    %776 = vmatpush.bf16.msra.mxu0 0
    %777 = vmatpush.bf16.msra.mxu0 0
    %778 = vmatpush.bf16.msra.mxu0 %v766
    %779 = vmatmul.bf16.gmra.mxu0 %v769
    %v780 = vpop.f32.mrf.mxu0
    %v781 = vadd.f32 0.0, %v780
    %v782 = vpop.f32.mrf.mxu0
    %v783 = vadd.f32 0.0, %v782
    %784 = vdwg.mxu0
    %v785 = vadd.f32 %v753, %v781
    %v786 = vadd.f32 %v755, %v783
    %v787 = vld [vmem:[%s2 + $0x3] sm:$0x1]
    %v788 = vperm.slane %v787, 0
    %v789 = vadd.f32 %v785, %v788
    %v790 = vadd.f32 %v786, %v788
    %vm791 = vcmp.ge.f32.partialorder %v789, 0.0
    %vm792 = vcmp.ge.f32.partialorder %v790, 0.0
    %v793 = vmul.f32 %v789, 0.1
    %v794 = vmul.f32 %v790, 0.1
    %v795 = vsel %vm791, %v789, %v793
    %v796 = vsel %vm792, %v790, %v794
    %v797 = vld [vmem:[#allocation11 + $0xe0] sm:$0xf]
    %v798 = vpack.c.bf16 %v796, %v795
    %vm799 = vcmask 72704
    %v801 = vsel %vm799, %v797, 0
    %vm803 = vcmask 1043456
    %v804 = vsel %vm803, 4294967295, 65535
    %v805 = vsel %vm681, %v804, 0
    %v807 = vand.u32 %v798, %v805
    %809 = vmatpush.bf16.msra.mxu0 0
    %810 = vmatpush.bf16.msra.mxu0 0
    %811 = vmatpush.bf16.msra.mxu0 0
    %812 = vmatpush.bf16.msra.mxu0 0
    %813 = vmatpush.bf16.msra.mxu0 0
    %814 = vmatpush.bf16.msra.mxu0 0
    %815 = vmatpush.bf16.msra.mxu0 0
    %816 = vmatpush.bf16.msra.mxu0 %v807
    %817 = vmatmul.bf16.gmra.mxu0 %v801
    %v818 = vpop.f32.mrf.mxu0
    %v819 = vadd.f32 0.0, %v818
    %v820 = vpop.f32.mrf.mxu0
    %821 = vdwg.mxu0
    %vm822 = vcmask 64512
    %823 = vst.msk [vmem:[#allocation6] sm:$0xff] %vm822, %v819
    %v824 = vld [vmem:[#allocation6] sm:$0x3f]
    %v825 = vpack.c.bf16 %v824, %v824
    %v826 = vld [vmem:[#allocation11 + $0xe8] sm:$0xf]
    %v827 = vld [vmem:[#allocation6 + $0x1] sm:$0x3f]
    %v828 = vpack.c.bf16 %v827, %v827
    %v829 = vld [vmem:[#allocation11 + $0xf0] sm:$0xf]
    %v831 = vsel %vm822, %v828, 0
    %v834 = vsel %vm803, %v829, 0
    %836 = vmatpush.bf16.msra.mxu0 0
    %837 = vmatpush.bf16.msra.mxu0 0
    %838 = vmatpush.bf16.msra.mxu0 0
    %839 = vmatpush.bf16.msra.mxu0 0
    %840 = vmatpush.bf16.msra.mxu0 0
    %841 = vmatpush.bf16.msra.mxu0 0
    %842 = vmatpush.bf16.msra.mxu0 0
    %843 = vmatpush.bf16.msra.mxu0 %v834
    %844 = vmatmul.bf16.gmra.mxu0 %v831
    %v845 = vpop.f32.mrf.mxu0
    %v846 = vadd.f32 0.0, %v845
    %v847 = vpop.f32.mrf.mxu0
    %848 = vdwg.mxu0
    %v850 = vsel %vm822, %v825, 0
    %v853 = vsel %vm803, %v826, 0
    %855 = vmatpush.bf16.msra.mxu0 0
    %856 = vmatpush.bf16.msra.mxu0 0
    %857 = vmatpush.bf16.msra.mxu0 0
    %858 = vmatpush.bf16.msra.mxu0 0
    %859 = vmatpush.bf16.msra.mxu0 0
    %860 = vmatpush.bf16.msra.mxu0 0
    %861 = vmatpush.bf16.msra.mxu0 0
    %862 = vmatpush.bf16.msra.mxu0 %v853
    %863 = vmatmul.bf16.gmra.mxu0 %v850
    %v864 = vpop.f32.mrf.mxu0
    %v865 = vadd.f32 %v846, %v864
    %v866 = vpop.f32.mrf.mxu0
    %867 = vdwg.mxu0
    %v868 = vld [vmem:[#allocation6 + $0x2] sm:$0x3f]
    %v869 = vpack.c.bf16 %v868, %v868
    %v870 = vld [vmem:[#allocation11 + $0xf8] sm:$0xf]
    %v872 = vsel %vm822, %v869, 0
    %v875 = vsel %vm803, %v870, 0
    %877 = vmatpush.bf16.msra.mxu0 0
    %878 = vmatpush.bf16.msra.mxu0 0
    %879 = vmatpush.bf16.msra.mxu0 0
    %880 = vmatpush.bf16.msra.mxu0 0
    %881 = vmatpush.bf16.msra.mxu0 0
    %882 = vmatpush.bf16.msra.mxu0 0
    %883 = vmatpush.bf16.msra.mxu0 0
    %884 = vmatpush.bf16.msra.mxu0 %v875
    %885 = vmatmul.bf16.gmra.mxu0 %v872
    %v886 = vpop.f32.mrf.mxu0
    %v887 = vadd.f32 0.0, %v886
    %v888 = vpop.f32.mrf.mxu0
    %889 = vdwg.mxu0
    %v890 = vadd.f32 %v865, %v887
    %v891 = vld [vmem:[%s2 + $0x4] sm:$0x1]
    %v892 = vperm.slane %v891, 0
    %v893 = vadd.f32 %v890, %v892
    %vm894 = vcmp.ge.f32.partialorder %v893, 0.0
    %v895 = vmul.f32 %v893, 0.1
    %v896 = vsel %vm894, %v893, %v895
    %v897 = vld [vmem:[#allocation11 + $0x100] sm:$0xf]
    %v898 = vpack.c.bf16 %v896, %v896
    %vm899 = vcmask 48128
    %v901 = vsel %vm899, %v897, 0
    %vm903 = vcmask 1042432
    %v905 = vsel %vm903, %v898, 0
    %907 = vmatpush.bf16.msra.mxu0 0
    %908 = vmatpush.bf16.msra.mxu0 0
    %909 = vmatpush.bf16.msra.mxu0 0
    %910 = vmatpush.bf16.msra.mxu0 0
    %911 = vmatpush.bf16.msra.mxu0 0
    %912 = vmatpush.bf16.msra.mxu0 0
    %913 = vmatpush.bf16.msra.mxu0 0
    %914 = vmatpush.bf16.msra.mxu0 %v905
    %915 = vmatmul.bf16.gmra.mxu0 %v901
    %v916 = vpop.f32.mrf.mxu0
    %v917 = vadd.f32 0.0, %v916
    %v918 = vpop.f32.mrf.mxu0
    %919 = vdwg.mxu0
    %920 = vst.msk [vmem:[#allocation7] sm:$0xff] %vm822, %v917
    %v921 = vld [vmem:[#allocation7] sm:$0x3f]
    %v922 = vpack.c.bf16 %v921, %v921
    %v923 = vld [vmem:[#allocation11 + $0x108] sm:$0xf]
    %v924 = vld [vmem:[#allocation7 + $0x1] sm:$0x3f]
    %v925 = vpack.c.bf16 %v924, %v924
    %v926 = vld [vmem:[#allocation11 + $0x110] sm:$0xf]
    %v928 = vsel %vm822, %v925, 0
    %v931 = vsel %vm803, %v926, 0
    %933 = vmatpush.bf16.msra.mxu0 0
    %934 = vmatpush.bf16.msra.mxu0 0
    %935 = vmatpush.bf16.msra.mxu0 0
    %936 = vmatpush.bf16.msra.mxu0 0
    %937 = vmatpush.bf16.msra.mxu0 0
    %938 = vmatpush.bf16.msra.mxu0 0
    %939 = vmatpush.bf16.msra.mxu0 0
    %940 = vmatpush.bf16.msra.mxu0 %v931
    %941 = vmatmul.bf16.gmra.mxu0 %v928
    %v942 = vpop.f32.mrf.mxu0
    %v943 = vadd.f32 0.0, %v942
    %v944 = vpop.f32.mrf.mxu0
    %945 = vdwg.mxu0
    %v947 = vsel %vm822, %v922, 0
    %v950 = vsel %vm803, %v923, 0
    %952 = vmatpush.bf16.msra.mxu0 0
    %953 = vmatpush.bf16.msra.mxu0 0
    %954 = vmatpush.bf16.msra.mxu0 0
    %955 = vmatpush.bf16.msra.mxu0 0
    %956 = vmatpush.bf16.msra.mxu0 0
    %957 = vmatpush.bf16.msra.mxu0 0
    %958 = vmatpush.bf16.msra.mxu0 0
    %959 = vmatpush.bf16.msra.mxu0 %v950
    %960 = vmatmul.bf16.gmra.mxu0 %v947
    %v961 = vpop.f32.mrf.mxu0
    %v962 = vadd.f32 %v943, %v961
    %v963 = vpop.f32.mrf.mxu0
    %964 = vdwg.mxu0
    %v965 = vld [vmem:[#allocation11 + $0x118] sm:$0xf]
    %v966 = vld [vmem:[#allocation7 + $0x2] sm:$0x3f]
    %v967 = vpack.c.bf16 %v966, %v966
    %v968 = vld [vmem:[#allocation11 + $0x120] sm:$0xf]
    %v970 = vsel %vm822, %v967, 0
    %v973 = vsel %vm803, %v968, 0
    %975 = vmatpush.bf16.msra.mxu0 0
    %976 = vmatpush.bf16.msra.mxu0 0
    %977 = vmatpush.bf16.msra.mxu0 0
    %978 = vmatpush.bf16.msra.mxu0 0
    %979 = vmatpush.bf16.msra.mxu0 0
    %980 = vmatpush.bf16.msra.mxu0 0
    %981 = vmatpush.bf16.msra.mxu0 0
    %982 = vmatpush.bf16.msra.mxu0 %v973
    %983 = vmatmul.bf16.gmra.mxu0 %v970
    %v984 = vpop.f32.mrf.mxu0
    %v985 = vadd.f32 0.0, %v984
    %v986 = vpop.f32.mrf.mxu0
    %987 = vdwg.mxu0
    %v989 = vsel %vm803, %v965, 0
    %991 = vmatpush.bf16.msra.mxu0 0
    %992 = vmatpush.bf16.msra.mxu0 0
    %993 = vmatpush.bf16.msra.mxu0 0
    %994 = vmatpush.bf16.msra.mxu0 0
    %995 = vmatpush.bf16.msra.mxu0 0
    %996 = vmatpush.bf16.msra.mxu0 0
    %997 = vmatpush.bf16.msra.mxu0 0
    %998 = vmatpush.bf16.msra.mxu0 %v989
    %999 = vmatmul.bf16.gmra.mxu0 %v928
    %v1000 = vpop.f32.mrf.mxu0
    %v1001 = vadd.f32 %v985, %v1000
    %v1002 = vpop.f32.mrf.mxu0
    %1003 = vdwg.mxu0
    %v1004 = vld [vmem:[%s2 + $0x5] sm:$0x1]
    %v1005 = vld [vmem:[#allocation11 + $0x128] sm:$0xf]
    %v1006 = vld [vmem:[#allocation11 + $0x12c] sm:$0x3]
    %v1007 = vperm.slane %v1004, 0
    %v1008 = vadd.f32 %v962, %v1007
    %vm1009 = vcmp.ge.f32.partialorder %v1008, 0.0
    %v1010 = vmul.f32 %v1008, 0.1
    %v1011 = vsel %vm1009, %v1008, %v1010
    %v1012 = vpack.c.bf16 %v1011, %v1011
    %v1013 = vld [vmem:[#allocation11 + $0x130] sm:$0xf]
    %v1014 = vld [vmem:[#allocation11 + $0x134] sm:$0x3]
    %v1015 = vadd.f32 %v1001, %v1007
    %vm1016 = vcmp.ge.f32.partialorder %v1015, 0.0
    %v1017 = vmul.f32 %v1015, 0.1
    %v1018 = vsel %vm1016, %v1015, %v1017
    %v1019 = vpack.c.bf16 %v1018, %v1018
    %v1022 = vunpack.c.l.b16 %v1013
    %v1023 = vunpack.c.l.b16 %v1014
    %v1024 = vpack.c.b16 %v1023, %v1022
    %v1026 = vsel %vm899, %v1024, 0
    %v1029 = vsel %vm903, %v1019, 0
    %1031 = vmatpush.bf16.msra.mxu0 0
    %1032 = vmatpush.bf16.msra.mxu0 0
    %1033 = vmatpush.bf16.msra.mxu0 0
    %1034 = vmatpush.bf16.msra.mxu0 0
    %1035 = vmatpush.bf16.msra.mxu0 0
    %1036 = vmatpush.bf16.msra.mxu0 0
    %1037 = vmatpush.bf16.msra.mxu0 0
    %1038 = vmatpush.bf16.msra.mxu0 %v1029
    %1039 = vmatmul.bf16.gmra.mxu0 %v1026
    %v1040 = vpop.f32.mrf.mxu0
    %v1041 = vadd.f32 0.0, %v1040
    %v1042 = vpop.f32.mrf.mxu0
    %v1043 = vadd.f32 0.0, %v1042
    %1044 = vdwg.mxu0
    %v1047 = vunpack.c.l.b16 %v1005
    %v1048 = vunpack.c.l.b16 %v1006
    %v1049 = vpack.c.b16 %v1048, %v1047
    %v1051 = vsel %vm899, %v1049, 0
    %v1054 = vsel %vm903, %v1012, 0
    %1056 = vmatpush.bf16.msra.mxu0 0
    %1057 = vmatpush.bf16.msra.mxu0 0
    %1058 = vmatpush.bf16.msra.mxu0 0
    %1059 = vmatpush.bf16.msra.mxu0 0
    %1060 = vmatpush.bf16.msra.mxu0 0
    %1061 = vmatpush.bf16.msra.mxu0 0
    %1062 = vmatpush.bf16.msra.mxu0 0
    %1063 = vmatpush.bf16.msra.mxu0 %v1054
    %1064 = vmatmul.bf16.gmra.mxu0 %v1051
    %v1065 = vpop.f32.mrf.mxu0
    %v1066 = vadd.f32 %v1041, %v1065
    %v1067 = vpop.f32.mrf.mxu0
    %v1068 = vadd.f32 %v1043, %v1067
    %1069 = vdwg.mxu0
    %1070 = vst.msk [vmem:[#allocation8] sm:$0xff] %vm569, %v1066
    %1071 = vst.msk [vmem:[#allocation8 + $0x8] sm:$0xf] %vm571, %v1068
    %v1072 = vld [vmem:[#allocation5] sm:$0xff]
    %v1073 = vld [vmem:[#allocation5 + $0x8] sm:$0x3]
    %v1074 = vpack.c.bf16 %v1073, %v1072
    %v1075 = vld [vmem:[#allocation11 + $0x138] sm:$0xf]
    %v1076 = vld [vmem:[#allocation11 + $0x13c] sm:$0xf]
    %v1077 = vld [vmem:[#allocation5 + $0x1] sm:$0xff]
    %v1078 = vld [vmem:[#allocation5 + $0x9] sm:$0x3]
    %v1079 = vpack.c.bf16 %v1078, %v1077
    %v1080 = vld [vmem:[#allocation11 + $0x140] sm:$0xf]
    %v1081 = vld [vmem:[#allocation11 + $0x144] sm:$0xf]
    %v1084 = vunpack.c.l.b16 %v1080
    %v1085 = vunpack.c.l.b16 %v1081
    %v1086 = vpack.c.b16 %v1085, %v1084
    %v1089 = vsel %vm569, %v1079, 0
    %1091 = vmatpush.bf16.msra.mxu0 0
    %1092 = vmatpush.bf16.msra.mxu0 0
    %1093 = vmatpush.bf16.msra.mxu0 0
    %1094 = vmatpush.bf16.msra.mxu0 0
    %1095 = vmatpush.bf16.msra.mxu0 0
    %1096 = vmatpush.bf16.msra.mxu0 0
    %1097 = vmatpush.bf16.msra.mxu0 0
    %1098 = vmatpush.bf16.msra.mxu0 %v1086
    %1099 = vmatmul.bf16.gmra.mxu0 %v1089
    %v1100 = vpop.f32.mrf.mxu0
    %v1101 = vadd.f32 0.0, %v1100
    %v1102 = vpop.f32.mrf.mxu0
    %v1103 = vadd.f32 0.0, %v1102
    %1104 = vdwg.mxu0
    %v1107 = vunpack.c.l.b16 %v1075
    %v1108 = vunpack.c.l.b16 %v1076
    %v1109 = vpack.c.b16 %v1108, %v1107
    %v1112 = vsel %vm569, %v1074, 0
    %1114 = vmatpush.bf16.msra.mxu0 0
    %1115 = vmatpush.bf16.msra.mxu0 0
    %1116 = vmatpush.bf16.msra.mxu0 0
    %1117 = vmatpush.bf16.msra.mxu0 0
    %1118 = vmatpush.bf16.msra.mxu0 0
    %1119 = vmatpush.bf16.msra.mxu0 0
    %1120 = vmatpush.bf16.msra.mxu0 0
    %1121 = vmatpush.bf16.msra.mxu0 %v1109
    %1122 = vmatmul.bf16.gmra.mxu0 %v1112
    %v1123 = vpop.f32.mrf.mxu0
    %v1124 = vadd.f32 %v1101, %v1123
    %v1125 = vpop.f32.mrf.mxu0
    %v1126 = vadd.f32 %v1103, %v1125
    %1127 = vdwg.mxu0
    %v1128 = vld [vmem:[#allocation11 + $0x148] sm:$0xf]
    %v1129 = vld [vmem:[#allocation11 + $0x14c] sm:$0xf]
    %v1130 = vld [vmem:[#allocation5 + $0x2] sm:$0xff]
    %v1131 = vld [vmem:[#allocation5 + $0xa] sm:$0x3]
    %v1132 = vpack.c.bf16 %v1131, %v1130
    %v1133 = vld [vmem:[#allocation11 + $0x150] sm:$0xf]
    %v1134 = vld [vmem:[#allocation11 + $0x154] sm:$0xf]
    %v1137 = vunpack.c.l.b16 %v1133
    %v1138 = vunpack.c.l.b16 %v1134
    %v1139 = vpack.c.b16 %v1138, %v1137
    %v1142 = vsel %vm569, %v1132, 0
    %1144 = vmatpush.bf16.msra.mxu0 0
    %1145 = vmatpush.bf16.msra.mxu0 0
    %1146 = vmatpush.bf16.msra.mxu0 0
    %1147 = vmatpush.bf16.msra.mxu0 0
    %1148 = vmatpush.bf16.msra.mxu0 0
    %1149 = vmatpush.bf16.msra.mxu0 0
    %1150 = vmatpush.bf16.msra.mxu0 0
    %1151 = vmatpush.bf16.msra.mxu0 %v1139
    %1152 = vmatmul.bf16.gmra.mxu0 %v1142
    %v1153 = vpop.f32.mrf.mxu0
    %v1154 = vadd.f32 0.0, %v1153
    %v1155 = vpop.f32.mrf.mxu0
    %v1156 = vadd.f32 0.0, %v1155
    %1157 = vdwg.mxu0
    %v1160 = vunpack.c.l.b16 %v1128
    %v1161 = vunpack.c.l.b16 %v1129
    %v1162 = vpack.c.b16 %v1161, %v1160
    %1164 = vmatpush.bf16.msra.mxu0 0
    %1165 = vmatpush.bf16.msra.mxu0 0
    %1166 = vmatpush.bf16.msra.mxu0 0
    %1167 = vmatpush.bf16.msra.mxu0 0
    %1168 = vmatpush.bf16.msra.mxu0 0
    %1169 = vmatpush.bf16.msra.mxu0 0
    %1170 = vmatpush.bf16.msra.mxu0 0
    %1171 = vmatpush.bf16.msra.mxu0 %v1162
    %1172 = vmatmul.bf16.gmra.mxu0 %v1089
    %v1173 = vpop.f32.mrf.mxu0
    %v1174 = vadd.f32 %v1154, %v1173
    %v1175 = vpop.f32.mrf.mxu0
    %v1176 = vadd.f32 %v1156, %v1175
    %1177 = vdwg.mxu0
    %v1178 = vld [vmem:[#allocation8] sm:$0xff]
    %v1179 = vld [vmem:[#allocation8 + $0x8] sm:$0x3]
    %v1180 = vpack.c.bf16 %v1179, %v1178
    %v1181 = vld [vmem:[#allocation11 + $0x158] sm:$0xf]
    %v1182 = vld [vmem:[#allocation11 + $0x15c] sm:$0xf]
    %v1185 = vunpack.c.l.b16 %v1181
    %v1186 = vunpack.c.l.b16 %v1182
    %v1187 = vpack.c.b16 %v1186, %v1185
    %v1190 = vsel %vm569, %v1180, 0
    %1192 = vmatpush.bf16.msra.mxu0 0
    %1193 = vmatpush.bf16.msra.mxu0 0
    %1194 = vmatpush.bf16.msra.mxu0 0
    %1195 = vmatpush.bf16.msra.mxu0 0
    %1196 = vmatpush.bf16.msra.mxu0 0
    %1197 = vmatpush.bf16.msra.mxu0 0
    %1198 = vmatpush.bf16.msra.mxu0 0
    %1199 = vmatpush.bf16.msra.mxu0 %v1187
    %1200 = vmatmul.bf16.gmra.mxu0 %v1190
    %v1201 = vpop.f32.mrf.mxu0
    %v1202 = vadd.f32 0.0, %v1201
    %v1203 = vpop.f32.mrf.mxu0
    %v1204 = vadd.f32 0.0, %v1203
    %1205 = vdwg.mxu0
    %v1206 = vadd.f32 %v1124, %v1202
    %v1207 = vadd.f32 %v1126, %v1204
    %v1208 = vld [vmem:[#allocation8 + $0x1] sm:$0xff]
    %v1209 = vld [vmem:[#allocation8 + $0x9] sm:$0x3]
    %v1210 = vpack.c.bf16 %v1209, %v1208
    %v1211 = vld [vmem:[#allocation11 + $0x160] sm:$0xf]
    %v1212 = vld [vmem:[#allocation11 + $0x164] sm:$0xf]
    %v1215 = vunpack.c.l.b16 %v1211
    %v1216 = vunpack.c.l.b16 %v1212
    %v1217 = vpack.c.b16 %v1216, %v1215
    %v1220 = vsel %vm569, %v1210, 0
    %1222 = vmatpush.bf16.msra.mxu0 0
    %1223 = vmatpush.bf16.msra.mxu0 0
    %1224 = vmatpush.bf16.msra.mxu0 0
    %1225 = vmatpush.bf16.msra.mxu0 0
    %1226 = vmatpush.bf16.msra.mxu0 0
    %1227 = vmatpush.bf16.msra.mxu0 0
    %1228 = vmatpush.bf16.msra.mxu0 0
    %1229 = vmatpush.bf16.msra.mxu0 %v1217
    %1230 = vmatmul.bf16.gmra.mxu0 %v1220
    %v1231 = vpop.f32.mrf.mxu0
    %v1232 = vadd.f32 0.0, %v1231
    %v1233 = vpop.f32.mrf.mxu0
    %v1234 = vadd.f32 0.0, %v1233
    %1235 = vdwg.mxu0
    %v1236 = vadd.f32 %v1206, %v1232
    %v1237 = vadd.f32 %v1207, %v1234
    %v1238 = vld [vmem:[#allocation11 + $0x168] sm:$0xf]
    %v1239 = vld [vmem:[#allocation11 + $0x16c] sm:$0xf]
    %v1242 = vunpack.c.l.b16 %v1238
    %v1243 = vunpack.c.l.b16 %v1239
    %v1244 = vpack.c.b16 %v1243, %v1242
    %1246 = vmatpush.bf16.msra.mxu0 0
    %1247 = vmatpush.bf16.msra.mxu0 0
    %1248 = vmatpush.bf16.msra.mxu0 0
    %1249 = vmatpush.bf16.msra.mxu0 0
    %1250 = vmatpush.bf16.msra.mxu0 0
    %1251 = vmatpush.bf16.msra.mxu0 0
    %1252 = vmatpush.bf16.msra.mxu0 0
    %1253 = vmatpush.bf16.msra.mxu0 %v1244
    %1254 = vmatmul.bf16.gmra.mxu0 %v1220
    %v1255 = vpop.f32.mrf.mxu0
    %v1256 = vadd.f32 0.0, %v1255
    %v1257 = vpop.f32.mrf.mxu0
    %v1258 = vadd.f32 0.0, %v1257
    %1259 = vdwg.mxu0
    %v1260 = vadd.f32 %v1174, %v1256
    %v1261 = vadd.f32 %v1176, %v1258
    %v1262 = vld [vmem:[#allocation8 + $0x2] sm:$0xff]
    %v1263 = vld [vmem:[#allocation8 + $0xa] sm:$0x3]
    %v1264 = vpack.c.bf16 %v1263, %v1262
    %v1265 = vld [vmem:[#allocation11 + $0x170] sm:$0xf]
    %v1266 = vld [vmem:[#allocation11 + $0x174] sm:$0xf]
    %v1269 = vunpack.c.l.b16 %v1265
    %v1270 = vunpack.c.l.b16 %v1266
    %v1271 = vpack.c.b16 %v1270, %v1269
    %v1274 = vsel %vm569, %v1264, 0
    %1276 = vmatpush.bf16.msra.mxu0 0
    %1277 = vmatpush.bf16.msra.mxu0 0
    %1278 = vmatpush.bf16.msra.mxu0 0
    %1279 = vmatpush.bf16.msra.mxu0 0
    %1280 = vmatpush.bf16.msra.mxu0 0
    %1281 = vmatpush.bf16.msra.mxu0 0
    %1282 = vmatpush.bf16.msra.mxu0 0
    %1283 = vmatpush.bf16.msra.mxu0 %v1271
    %1284 = vmatmul.bf16.gmra.mxu0 %v1274
    %v1285 = vpop.f32.mrf.mxu0
    %v1286 = vadd.f32 0.0, %v1285
    %v1287 = vpop.f32.mrf.mxu0
    %v1288 = vadd.f32 0.0, %v1287
    %1289 = vdwg.mxu0
    %v1290 = vadd.f32 %v1260, %v1286
    %v1291 = vadd.f32 %v1261, %v1288
    %v1292 = vld [vmem:[%s2 + $0x6] sm:$0x1]
    %v1293 = vld [vmem:[#allocation11 + $0x178] sm:$0xf]
    %v1294 = vld [vmem:[#allocation11 + $0x17c] sm:$0xf]
    %v1295 = vld [vmem:[#allocation11 + $0x180] sm:$0x3]
    %v1296 = vperm.slane %v1292, 0
    %v1297 = vadd.f32 %v1236, %v1296
    %v1298 = vadd.f32 %v1237, %v1296
    %vm1299 = vcmp.ge.f32.partialorder %v1297, 0.0
    %vm1300 = vcmp.ge.f32.partialorder %v1298, 0.0
    %v1301 = vmul.f32 %v1297, 0.1
    %v1302 = vmul.f32 %v1298, 0.1
    %v1303 = vsel %vm1299, %v1297, %v1301
    %v1304 = vsel %vm1300, %v1298, %v1302
    %v1305 = vpack.c.bf16 %v1304, %v1303
    %v1306 = vld [vmem:[#allocation11 + $0x188] sm:$0xf]
    %v1307 = vld [vmem:[#allocation11 + $0x18c] sm:$0xf]
    %v1308 = vld [vmem:[#allocation11 + $0x190] sm:$0x3]
    %v1309 = vadd.f32 %v1290, %v1296
    %v1310 = vadd.f32 %v1291, %v1296
    %vm1311 = vcmp.ge.f32.partialorder %v1309, 0.0
    %vm1312 = vcmp.ge.f32.partialorder %v1310, 0.0
    %v1313 = vmul.f32 %v1309, 0.1
    %v1314 = vmul.f32 %v1310, 0.1
    %v1315 = vsel %vm1311, %v1309, %v1313
    %v1316 = vsel %vm1312, %v1310, %v1314
    %v1317 = vpack.c.bf16 %v1316, %v1315
    %v1321 = vunpack.c.l.b16 %v1306
    %v1322 = vunpack.c.l.b16 %v1307
    %v1323 = vunpack.c.l.b16 %v1308
    %v1324 = vpack.c.b16 %v1322, %v1321
    %v1325 = vpack.c.b16 %v1323, %v1323
    %v1327 = vsel %vm677, %v1324, 0
    %v1330 = vsel %vm677, %v1325, 0
    %v1333 = vsel %vm681, %v1317, 0
    %1335 = vmatpush.bf16.msra.mxu0 0
    %1336 = vmatpush.bf16.msra.mxu0 0
    %1337 = vmatpush.bf16.msra.mxu0 0
    %1338 = vmatpush.bf16.msra.mxu0 0
    %1339 = vmatpush.bf16.msra.mxu0 0
    %1340 = vmatpush.bf16.msra.mxu0 0
    %1341 = vmatpush.bf16.msra.mxu0 0
    %1342 = vmatpush.bf16.msra.mxu0 %v1333
    %1343 = vmatmul.bf16.gmra.mxu0 %v1327
    %v1344 = vpop.f32.mrf.mxu0
    %v1345 = vadd.f32 0.0, %v1344
    %v1346 = vpop.f32.mrf.mxu0
    %v1347 = vadd.f32 0.0, %v1346
    %1348 = vmatmul.bf16.gmra.mxu0 %v1330
    %v1349 = vpop.f32.mrf.mxu0
    %v1350 = vadd.f32 0.0, %v1349
    %v1351 = vpop.f32.mrf.mxu0
    %1352 = vdwg.mxu0
    %v1356 = vunpack.c.l.b16 %v1293
    %v1357 = vunpack.c.l.b16 %v1294
    %v1358 = vunpack.c.l.b16 %v1295
    %v1359 = vpack.c.b16 %v1357, %v1356
    %v1360 = vpack.c.b16 %v1358, %v1358
    %v1362 = vsel %vm677, %v1359, 0
    %v1365 = vsel %vm677, %v1360, 0
    %v1368 = vsel %vm681, %v1305, 0
    %1370 = vmatpush.bf16.msra.mxu0 0
    %1371 = vmatpush.bf16.msra.mxu0 0
    %1372 = vmatpush.bf16.msra.mxu0 0
    %1373 = vmatpush.bf16.msra.mxu0 0
    %1374 = vmatpush.bf16.msra.mxu0 0
    %1375 = vmatpush.bf16.msra.mxu0 0
    %1376 = vmatpush.bf16.msra.mxu0 0
    %1377 = vmatpush.bf16.msra.mxu0 %v1368
    %1378 = vmatmul.bf16.gmra.mxu0 %v1362
    %v1379 = vpop.f32.mrf.mxu0
    %v1380 = vadd.f32 %v1345, %v1379
    %v1381 = vpop.f32.mrf.mxu0
    %v1382 = vadd.f32 %v1347, %v1381
    %1383 = vmatmul.bf16.gmra.mxu0 %v1365
    %v1384 = vpop.f32.mrf.mxu0
    %v1385 = vadd.f32 %v1350, %v1384
    %v1386 = vpop.f32.mrf.mxu0
    %1387 = vdwg.mxu0
    %1388 = vst.msk [vmem:[#allocation9] sm:$0xff] %vm55, %v1380
    %1389 = vst.msk [vmem:[#allocation9 + $0x8] sm:$0xff] %vm55, %v1382
    %1390 = vst.msk [vmem:[#allocation9 + $0x10] sm:$0xf] %vm385, %v1385
    %v1391 = vld [vmem:[#allocation3] sm:$0xff]
    %v1392 = vld [vmem:[#allocation3 + $0x8] sm:$0xff]
    %v1393 = vld [vmem:[#allocation3 + $0x10] sm:$0x3]
    %v1394 = vpack.c.bf16 %v1392, %v1391
    %v1395 = vpack.c.bf16 %v1393, %v1393
    %v1396 = vld [vmem:[#allocation11 + $0x198] sm:$0xf]
    %v1397 = vld [vmem:[#allocation11 + $0x19c] sm:$0xf]
    %v1398 = vld [vmem:[#allocation11 + $0x1a0] sm:$0xf]
    %v1399 = vld [vmem:[#allocation11 + $0x1a4] sm:$0xf]
    %v1400 = vld [vmem:[#allocation3 + $0x1] sm:$0xff]
    %v1401 = vld [vmem:[#allocation3 + $0x9] sm:$0xff]
    %v1402 = vld [vmem:[#allocation3 + $0x11] sm:$0x3]
    %v1403 = vpack.c.bf16 %v1401, %v1400
    %v1404 = vpack.c.bf16 %v1402, %v1402
    %v1405 = vld [vmem:[#allocation11 + $0x1a8] sm:$0xf]
    %v1406 = vld [vmem:[#allocation11 + $0x1ac] sm:$0xf]
    %v1407 = vld [vmem:[#allocation11 + $0x1b0] sm:$0xf]
    %v1408 = vld [vmem:[#allocation11 + $0x1b4] sm:$0xf]
    %v1413 = vunpack.c.l.b16 %v1405
    %v1414 = vunpack.c.l.b16 %v1406
    %v1415 = vunpack.c.l.b16 %v1407
    %v1416 = vunpack.c.l.b16 %v1408
    %v1417 = vpack.c.b16 %v1414, %v1413
    %v1418 = vpack.c.b16 %v1416, %v1415
    %v1422 = vsel %vm55, %v1403, 0
    %v1425 = vsel %vm55, %v1404, 0
    %1427 = vmatpush.bf16.msra.mxu0 0
    %1428 = vmatpush.bf16.msra.mxu0 0
    %1429 = vmatpush.bf16.msra.mxu0 0
    %1430 = vmatpush.bf16.msra.mxu0 0
    %1431 = vmatpush.bf16.msra.mxu0 0
    %1432 = vmatpush.bf16.msra.mxu0 0
    %1433 = vmatpush.bf16.msra.mxu0 %v1418
    %1434 = vmatpush.bf16.msra.mxu0 %v1417
    %1435 = vmatmul.bf16.gmra.mxu0 %v1422
    %v1436 = vpop.f32.mrf.mxu0
    %v1437 = vadd.f32 0.0, %v1436
    %v1438 = vpop.f32.mrf.mxu0
    %v1439 = vadd.f32 0.0, %v1438
    %1440 = vmatmul.bf16.gmra.mxu0 %v1425
    %v1441 = vpop.f32.mrf.mxu0
    %v1442 = vadd.f32 0.0, %v1441
    %v1443 = vpop.f32.mrf.mxu0
    %1444 = vdwg.mxu0
    %v1449 = vunpack.c.l.b16 %v1396
    %v1450 = vunpack.c.l.b16 %v1397
    %v1451 = vunpack.c.l.b16 %v1398
    %v1452 = vunpack.c.l.b16 %v1399
    %v1453 = vpack.c.b16 %v1450, %v1449
    %v1454 = vpack.c.b16 %v1452, %v1451
    %v1458 = vsel %vm55, %v1394, 0
    %v1461 = vsel %vm55, %v1395, 0
    %1463 = vmatpush.bf16.msra.mxu0 0
    %1464 = vmatpush.bf16.msra.mxu0 0
    %1465 = vmatpush.bf16.msra.mxu0 0
    %1466 = vmatpush.bf16.msra.mxu0 0
    %1467 = vmatpush.bf16.msra.mxu0 0
    %1468 = vmatpush.bf16.msra.mxu0 0
    %1469 = vmatpush.bf16.msra.mxu0 %v1454
    %1470 = vmatpush.bf16.msra.mxu0 %v1453
    %1471 = vmatmul.bf16.gmra.mxu0 %v1458
    %v1472 = vpop.f32.mrf.mxu0
    %v1473 = vadd.f32 %v1437, %v1472
    %v1474 = vpop.f32.mrf.mxu0
    %v1475 = vadd.f32 %v1439, %v1474
    %1476 = vmatmul.bf16.gmra.mxu0 %v1461
    %v1477 = vpop.f32.mrf.mxu0
    %v1478 = vadd.f32 %v1442, %v1477
    %v1479 = vpop.f32.mrf.mxu0
    %1480 = vdwg.mxu0
    %v1481 = vld [vmem:[#allocation11 + $0x1b8] sm:$0xf]
    %v1482 = vld [vmem:[#allocation11 + $0x1bc] sm:$0xf]
    %v1483 = vld [vmem:[#allocation11 + $0x1c0] sm:$0xf]
    %v1484 = vld [vmem:[#allocation11 + $0x1c4] sm:$0xf]
    %v1485 = vld [vmem:[#allocation3 + $0x2] sm:$0xff]
    %v1486 = vld [vmem:[#allocation3 + $0xa] sm:$0xff]
    %v1487 = vld [vmem:[#allocation3 + $0x12] sm:$0x3]
    %v1488 = vpack.c.bf16 %v1486, %v1485
    %v1489 = vpack.c.bf16 %v1487, %v1487
    %v1490 = vld [vmem:[#allocation11 + $0x1c8] sm:$0xf]
    %v1491 = vld [vmem:[#allocation11 + $0x1cc] sm:$0xf]
    %v1492 = vld [vmem:[#allocation11 + $0x1d0] sm:$0xf]
    %v1493 = vld [vmem:[#allocation11 + $0x1d4] sm:$0xf]
    %v1498 = vunpack.c.l.b16 %v1490
    %v1499 = vunpack.c.l.b16 %v1491
    %v1500 = vunpack.c.l.b16 %v1492
    %v1501 = vunpack.c.l.b16 %v1493
    %v1502 = vpack.c.b16 %v1499, %v1498
    %v1503 = vpack.c.b16 %v1501, %v1500
    %v1507 = vsel %vm55, %v1488, 0
    %v1510 = vsel %vm55, %v1489, 0
    %1512 = vmatpush.bf16.msra.mxu0 0
    %1513 = vmatpush.bf16.msra.mxu0 0
    %1514 = vmatpush.bf16.msra.mxu0 0
    %1515 = vmatpush.bf16.msra.mxu0 0
    %1516 = vmatpush.bf16.msra.mxu0 0
    %1517 = vmatpush.bf16.msra.mxu0 0
    %1518 = vmatpush.bf16.msra.mxu0 %v1503
    %1519 = vmatpush.bf16.msra.mxu0 %v1502
    %1520 = vmatmul.bf16.gmra.mxu0 %v1507
    %v1521 = vpop.f32.mrf.mxu0
    %v1522 = vadd.f32 0.0, %v1521
    %v1523 = vpop.f32.mrf.mxu0
    %v1524 = vadd.f32 0.0, %v1523
    %1525 = vmatmul.bf16.gmra.mxu0 %v1510
    %v1526 = vpop.f32.mrf.mxu0
    %v1527 = vadd.f32 0.0, %v1526
    %v1528 = vpop.f32.mrf.mxu0
    %1529 = vdwg.mxu0
    %v1534 = vunpack.c.l.b16 %v1481
    %v1535 = vunpack.c.l.b16 %v1482
    %v1536 = vunpack.c.l.b16 %v1483
    %v1537 = vunpack.c.l.b16 %v1484
    %v1538 = vpack.c.b16 %v1535, %v1534
    %v1539 = vpack.c.b16 %v1537, %v1536
    %1542 = vmatpush.bf16.msra.mxu0 0
    %1543 = vmatpush.bf16.msra.mxu0 0
    %1544 = vmatpush.bf16.msra.mxu0 0
    %1545 = vmatpush.bf16.msra.mxu0 0
    %1546 = vmatpush.bf16.msra.mxu0 0
    %1547 = vmatpush.bf16.msra.mxu0 0
    %1548 = vmatpush.bf16.msra.mxu0 %v1539
    %1549 = vmatpush.bf16.msra.mxu0 %v1538
    %1550 = vmatmul.bf16.gmra.mxu0 %v1422
    %v1551 = vpop.f32.mrf.mxu0
    %v1552 = vadd.f32 %v1522, %v1551
    %v1553 = vpop.f32.mrf.mxu0
    %v1554 = vadd.f32 %v1524, %v1553
    %1555 = vmatmul.bf16.gmra.mxu0 %v1425
    %v1556 = vpop.f32.mrf.mxu0
    %v1557 = vadd.f32 %v1527, %v1556
    %v1558 = vpop.f32.mrf.mxu0
    %1559 = vdwg.mxu0
    %v1560 = vld [vmem:[#allocation9] sm:$0xff]
    %v1561 = vld [vmem:[#allocation9 + $0x8] sm:$0xff]
    %v1562 = vld [vmem:[#allocation9 + $0x10] sm:$0x3]
    %v1563 = vpack.c.bf16 %v1561, %v1560
    %v1564 = vpack.c.bf16 %v1562, %v1562
    %v1565 = vld [vmem:[#allocation11 + $0x1d8] sm:$0xf]
    %v1566 = vld [vmem:[#allocation11 + $0x1dc] sm:$0xf]
    %v1567 = vld [vmem:[#allocation11 + $0x1e0] sm:$0xf]
    %v1568 = vld [vmem:[#allocation11 + $0x1e4] sm:$0xf]
    %v1573 = vunpack.c.l.b16 %v1565
    %v1574 = vunpack.c.l.b16 %v1566
    %v1575 = vunpack.c.l.b16 %v1567
    %v1576 = vunpack.c.l.b16 %v1568
    %v1577 = vpack.c.b16 %v1574, %v1573
    %v1578 = vpack.c.b16 %v1576, %v1575
    %v1582 = vsel %vm55, %v1563, 0
    %v1585 = vsel %vm55, %v1564, 0
    %1587 = vmatpush.bf16.msra.mxu0 0
    %1588 = vmatpush.bf16.msra.mxu0 0
    %1589 = vmatpush.bf16.msra.mxu0 0
    %1590 = vmatpush.bf16.msra.mxu0 0
    %1591 = vmatpush.bf16.msra.mxu0 0
    %1592 = vmatpush.bf16.msra.mxu0 0
    %1593 = vmatpush.bf16.msra.mxu0 %v1578
    %1594 = vmatpush.bf16.msra.mxu0 %v1577
    %1595 = vmatmul.bf16.gmra.mxu0 %v1582
    %v1596 = vpop.f32.mrf.mxu0
    %v1597 = vadd.f32 0.0, %v1596
    %v1598 = vpop.f32.mrf.mxu0
    %v1599 = vadd.f32 0.0, %v1598
    %1600 = vmatmul.bf16.gmra.mxu0 %v1585
    %v1601 = vpop.f32.mrf.mxu0
    %v1602 = vadd.f32 0.0, %v1601
    %v1603 = vpop.f32.mrf.mxu0
    %1604 = vdwg.mxu0
    %v1605 = vadd.f32 %v1473, %v1597
    %v1606 = vadd.f32 %v1475, %v1599
    %v1607 = vadd.f32 %v1478, %v1602
    %v1608 = vld [vmem:[#allocation9 + $0x1] sm:$0xff]
    %v1609 = vld [vmem:[#allocation9 + $0x9] sm:$0xff]
    %v1610 = vld [vmem:[#allocation9 + $0x11] sm:$0x3]
    %v1611 = vpack.c.bf16 %v1609, %v1608
    %v1612 = vpack.c.bf16 %v1610, %v1610
    %v1613 = vld [vmem:[#allocation11 + $0x1e8] sm:$0xf]
    %v1614 = vld [vmem:[#allocation11 + $0x1ec] sm:$0xf]
    %v1615 = vld [vmem:[#allocation11 + $0x1f0] sm:$0xf]
    %v1616 = vld [vmem:[#allocation11 + $0x1f4] sm:$0xf]
    %v1621 = vunpack.c.l.b16 %v1613
    %v1622 = vunpack.c.l.b16 %v1614
    %v1623 = vunpack.c.l.b16 %v1615
    %v1624 = vunpack.c.l.b16 %v1616
    %v1625 = vpack.c.b16 %v1622, %v1621
    %v1626 = vpack.c.b16 %v1624, %v1623
    %v1630 = vsel %vm55, %v1611, 0
    %v1633 = vsel %vm55, %v1612, 0
    %1635 = vmatpush.bf16.msra.mxu0 0
    %1636 = vmatpush.bf16.msra.mxu0 0
    %1637 = vmatpush.bf16.msra.mxu0 0
    %1638 = vmatpush.bf16.msra.mxu0 0
    %1639 = vmatpush.bf16.msra.mxu0 0
    %1640 = vmatpush.bf16.msra.mxu0 0
    %1641 = vmatpush.bf16.msra.mxu0 %v1626
    %1642 = vmatpush.bf16.msra.mxu0 %v1625
    %1643 = vmatmul.bf16.gmra.mxu0 %v1630
    %v1644 = vpop.f32.mrf.mxu0
    %v1645 = vadd.f32 0.0, %v1644
    %v1646 = vpop.f32.mrf.mxu0
    %v1647 = vadd.f32 0.0, %v1646
    %1648 = vmatmul.bf16.gmra.mxu0 %v1633
    %v1649 = vpop.f32.mrf.mxu0
    %v1650 = vadd.f32 0.0, %v1649
    %v1651 = vpop.f32.mrf.mxu0
    %1652 = vdwg.mxu0
    %v1653 = vadd.f32 %v1605, %v1645
    %v1654 = vadd.f32 %v1606, %v1647
    %v1655 = vadd.f32 %v1607, %v1650
    %v1656 = vld [vmem:[#allocation11 + $0x1f8] sm:$0xf]
    %v1657 = vld [vmem:[#allocation11 + $0x1fc] sm:$0xf]
    %v1658 = vld [vmem:[#allocation11 + $0x200] sm:$0xf]
    %v1659 = vld [vmem:[#allocation11 + $0x204] sm:$0xf]
    %v1664 = vunpack.c.l.b16 %v1656
    %v1665 = vunpack.c.l.b16 %v1657
    %v1666 = vunpack.c.l.b16 %v1658
    %v1667 = vunpack.c.l.b16 %v1659
    %v1668 = vpack.c.b16 %v1665, %v1664
    %v1669 = vpack.c.b16 %v1667, %v1666
    %1672 = vmatpush.bf16.msra.mxu0 0
    %1673 = vmatpush.bf16.msra.mxu0 0
    %1674 = vmatpush.bf16.msra.mxu0 0
    %1675 = vmatpush.bf16.msra.mxu0 0
    %1676 = vmatpush.bf16.msra.mxu0 0
    %1677 = vmatpush.bf16.msra.mxu0 0
    %1678 = vmatpush.bf16.msra.mxu0 %v1669
    %1679 = vmatpush.bf16.msra.mxu0 %v1668
    %1680 = vmatmul.bf16.gmra.mxu0 %v1630
    %v1681 = vpop.f32.mrf.mxu0
    %v1682 = vadd.f32 0.0, %v1681
    %v1683 = vpop.f32.mrf.mxu0
    %v1684 = vadd.f32 0.0, %v1683
    %1685 = vmatmul.bf16.gmra.mxu0 %v1633
    %v1686 = vpop.f32.mrf.mxu0
    %v1687 = vadd.f32 0.0, %v1686
    %v1688 = vpop.f32.mrf.mxu0
    %1689 = vdwg.mxu0
    %v1690 = vadd.f32 %v1552, %v1682
    %v1691 = vadd.f32 %v1554, %v1684
    %v1692 = vadd.f32 %v1557, %v1687
    %v1693 = vld [vmem:[#allocation9 + $0x2] sm:$0xff]
    %v1694 = vld [vmem:[#allocation9 + $0xa] sm:$0xff]
    %v1695 = vld [vmem:[#allocation9 + $0x12] sm:$0x3]
    %v1696 = vpack.c.bf16 %v1694, %v1693
    %v1697 = vpack.c.bf16 %v1695, %v1695
    %v1698 = vld [vmem:[#allocation11 + $0x208] sm:$0xf]
    %v1699 = vld [vmem:[#allocation11 + $0x20c] sm:$0xf]
    %v1700 = vld [vmem:[#allocation11 + $0x210] sm:$0xf]
    %v1701 = vld [vmem:[#allocation11 + $0x214] sm:$0xf]
    %v1706 = vunpack.c.l.b16 %v1698
    %v1707 = vunpack.c.l.b16 %v1699
    %v1708 = vunpack.c.l.b16 %v1700
    %v1709 = vunpack.c.l.b16 %v1701
    %v1710 = vpack.c.b16 %v1707, %v1706
    %v1711 = vpack.c.b16 %v1709, %v1708
    %v1715 = vsel %vm55, %v1696, 0
    %v1718 = vsel %vm55, %v1697, 0
    %1720 = vmatpush.bf16.msra.mxu0 0
    %1721 = vmatpush.bf16.msra.mxu0 0
    %1722 = vmatpush.bf16.msra.mxu0 0
    %1723 = vmatpush.bf16.msra.mxu0 0
    %1724 = vmatpush.bf16.msra.mxu0 0
    %1725 = vmatpush.bf16.msra.mxu0 0
    %1726 = vmatpush.bf16.msra.mxu0 %v1711
    %1727 = vmatpush.bf16.msra.mxu0 %v1710
    %1728 = vmatmul.bf16.gmra.mxu0 %v1715
    %v1729 = vpop.f32.mrf.mxu0
    %v1730 = vadd.f32 0.0, %v1729
    %v1731 = vpop.f32.mrf.mxu0
    %v1732 = vadd.f32 0.0, %v1731
    %1733 = vmatmul.bf16.gmra.mxu0 %v1718
    %v1734 = vpop.f32.mrf.mxu0
    %v1735 = vadd.f32 0.0, %v1734
    %v1736 = vpop.f32.mrf.mxu0
    %1737 = vdwg.mxu0
    %v1738 = vadd.f32 %v1690, %v1730
    %v1739 = vadd.f32 %v1691, %v1732
    %v1740 = vadd.f32 %v1692, %v1735
    %v1741 = vld [vmem:[%s2 + $0x7] sm:$0x1]
    %v1742 = vld [vmem:[#allocation11 + $0x218] sm:$0xf]
    %v1743 = vld [vmem:[#allocation11 + $0x21c] sm:$0xf]
    %v1744 = vld [vmem:[#allocation11 + $0x220] sm:$0xf]
    %v1745 = vld [vmem:[#allocation11 + $0x224] sm:$0xf]
    %v1746 = vld [vmem:[#allocation11 + $0x228] sm:$0x3]
    %v1747 = vperm.slane %v1741, 0
    %v1748 = vadd.f32 %v1653, %v1747
    %v1749 = vadd.f32 %v1654, %v1747
    %v1750 = vadd.f32 %v1655, %v1747
    %vm1751 = vcmp.ge.f32.partialorder %v1748, 0.0
    %vm1752 = vcmp.ge.f32.partialorder %v1749, 0.0
    %vm1753 = vcmp.ge.f32.partialorder %v1750, 0.0
    %v1754 = vmul.f32 %v1748, 0.1
    %v1755 = vmul.f32 %v1749, 0.1
    %v1756 = vmul.f32 %v1750, 0.1
    %v1757 = vsel %vm1751, %v1748, %v1754
    %v1758 = vsel %vm1752, %v1749, %v1755
    %v1759 = vsel %vm1753, %v1750, %v1756
    %v1760 = vpack.c.bf16 %v1758, %v1757
    %v1761 = vpack.c.bf16 %v1759, %v1759
    %v1762 = vld [vmem:[#allocation11 + $0x230] sm:$0xf]
    %v1763 = vld [vmem:[#allocation11 + $0x234] sm:$0xf]
    %v1764 = vld [vmem:[#allocation11 + $0x238] sm:$0xf]
    %v1765 = vld [vmem:[#allocation11 + $0x23c] sm:$0xf]
    %v1766 = vld [vmem:[#allocation11 + $0x240] sm:$0x3]
    %v1767 = vadd.f32 %v1738, %v1747
    %v1768 = vadd.f32 %v1739, %v1747
    %v1769 = vadd.f32 %v1740, %v1747
    %vm1770 = vcmp.ge.f32.partialorder %v1767, 0.0
    %vm1771 = vcmp.ge.f32.partialorder %v1768, 0.0
    %vm1772 = vcmp.ge.f32.partialorder %v1769, 0.0
    %v1773 = vmul.f32 %v1767, 0.1
    %v1774 = vmul.f32 %v1768, 0.1
    %v1775 = vmul.f32 %v1769, 0.1
    %v1776 = vsel %vm1770, %v1767, %v1773
    %v1777 = vsel %vm1771, %v1768, %v1774
    %v1778 = vsel %vm1772, %v1769, %v1775
    %v1779 = vpack.c.bf16 %v1777, %v1776
    %v1780 = vpack.c.bf16 %v1778, %v1778
    %v1786 = vunpack.c.l.b16 %v1762
    %v1787 = vunpack.c.l.b16 %v1763
    %v1788 = vunpack.c.l.b16 %v1764
    %v1789 = vunpack.c.l.b16 %v1765
    %v1790 = vunpack.c.l.b16 %v1766
    %v1791 = vpack.c.b16 %v1787, %v1786
    %v1792 = vpack.c.b16 %v1789, %v1788
    %v1793 = vpack.c.b16 %v1790, %v1790
    %vm1794 = vcmask 146432
    %v1796 = vsel %vm1794, %v1791, 0
    %v1799 = vsel %vm1794, %v1792, 0
    %v1802 = vsel %vm1794, %v1793, 0
    %v1805 = vsel %vm359, %v1780, 0
    %1807 = vmatpush.bf16.msra.mxu0 0
    %1808 = vmatpush.bf16.msra.mxu0 0
    %1809 = vmatpush.bf16.msra.mxu0 0
    %1810 = vmatpush.bf16.msra.mxu0 0
    %1811 = vmatpush.bf16.msra.mxu0 0
    %1812 = vmatpush.bf16.msra.mxu0 0
    %1813 = vmatpush.bf16.msra.mxu0 %v1805
    %1814 = vmatpush.bf16.msra.mxu0 %v1779
    %1815 = vmatmul.bf16.gmra.mxu0 %v1796
    %v1816 = vpop.f32.mrf.mxu0
    %v1817 = vadd.f32 0.0, %v1816
    %v1818 = vpop.f32.mrf.mxu0
    %v1819 = vadd.f32 0.0, %v1818
    %1820 = vmatmul.bf16.gmra.mxu0 %v1799
    %v1821 = vpop.f32.mrf.mxu0
    %v1822 = vadd.f32 0.0, %v1821
    %v1823 = vpop.f32.mrf.mxu0
    %v1824 = vadd.f32 0.0, %v1823
    %1825 = vmatmul.bf16.gmra.mxu0 %v1802
    %v1826 = vpop.f32.mrf.mxu0
    %v1827 = vadd.f32 0.0, %v1826
    %v1828 = vpop.f32.mrf.mxu0
    %1829 = vdwg.mxu0
    %v1835 = vunpack.c.l.b16 %v1742
    %v1836 = vunpack.c.l.b16 %v1743
    %v1837 = vunpack.c.l.b16 %v1744
    %v1838 = vunpack.c.l.b16 %v1745
    %v1839 = vunpack.c.l.b16 %v1746
    %v1840 = vpack.c.b16 %v1836, %v1835
    %v1841 = vpack.c.b16 %v1838, %v1837
    %v1842 = vpack.c.b16 %v1839, %v1839
    %v1844 = vsel %vm1794, %v1840, 0
    %v1847 = vsel %vm1794, %v1841, 0
    %v1850 = vsel %vm1794, %v1842, 0
    %v1853 = vsel %vm359, %v1761, 0
    %1855 = vmatpush.bf16.msra.mxu0 0
    %1856 = vmatpush.bf16.msra.mxu0 0
    %1857 = vmatpush.bf16.msra.mxu0 0
    %1858 = vmatpush.bf16.msra.mxu0 0
    %1859 = vmatpush.bf16.msra.mxu0 0
    %1860 = vmatpush.bf16.msra.mxu0 0
    %1861 = vmatpush.bf16.msra.mxu0 %v1853
    %1862 = vmatpush.bf16.msra.mxu0 %v1760
    %1863 = vmatmul.bf16.gmra.mxu0 %v1844
    %v1864 = vpop.f32.mrf.mxu0
    %v1865 = vadd.f32 %v1817, %v1864
    %v1866 = vpop.f32.mrf.mxu0
    %v1867 = vadd.f32 %v1819, %v1866
    %1868 = vmatmul.bf16.gmra.mxu0 %v1847
    %v1869 = vpop.f32.mrf.mxu0
    %v1870 = vadd.f32 %v1822, %v1869
    %v1871 = vpop.f32.mrf.mxu0
    %v1872 = vadd.f32 %v1824, %v1871
    %1873 = vmatmul.bf16.gmra.mxu0 %v1850
    %v1874 = vpop.f32.mrf.mxu0
    %v1875 = vadd.f32 %v1827, %v1874
    %v1876 = vpop.f32.mrf.mxu0
    %1877 = vdwg.mxu0
    %1878 = vst.msk [vmem:[#allocation10] sm:$0xff] %vm88, %v1865
    %1879 = vst.msk [vmem:[#allocation10 + $0x8] sm:$0xff] %vm88, %v1867
    %1880 = vst.msk [vmem:[#allocation10 + $0x10] sm:$0xff] %vm88, %v1870
    %1881 = vst.msk [vmem:[#allocation10 + $0x18] sm:$0xff] %vm88, %v1872
    %1882 = vst.msk [vmem:[#allocation10 + $0x20] sm:$0xf] %vm93, %v1875
    %v1883 = vld [vmem:[#allocation2] sm:$0xff]
    %v1884 = vld [vmem:[#allocation2 + $0x8] sm:$0xff]
    %v1885 = vld [vmem:[#allocation2 + $0x10] sm:$0xff]
    %v1886 = vld [vmem:[#allocation2 + $0x18] sm:$0xff]
    %v1887 = vld [vmem:[#allocation2 + $0x20] sm:$0x3]
    %v1888 = vpack.c.bf16 %v1884, %v1883
    %v1889 = vpack.c.bf16 %v1886, %v1885
    %v1890 = vpack.c.bf16 %v1887, %v1887
    %v1891 = vld [vmem:[#allocation11 + $0x248] sm:$0xf]
    %v1892 = vld [vmem:[#allocation11 + $0x24c] sm:$0xf]
    %v1893 = vld [vmem:[#allocation11 + $0x250] sm:$0xf]
    %v1894 = vld [vmem:[#allocation11 + $0x254] sm:$0xf]
    %v1895 = vld [vmem:[#allocation11 + $0x258] sm:$0xf]
    %v1896 = vld [vmem:[#allocation11 + $0x25c] sm:$0xf]
    %v1897 = vld [vmem:[#allocation11 + $0x260] sm:$0xf]
    %v1898 = vld [vmem:[#allocation11 + $0x264] sm:$0xf]
    %v1899 = vld [vmem:[#allocation10] sm:$0xff]
    %v1900 = vld [vmem:[#allocation10 + $0x8] sm:$0xff]
    %v1901 = vld [vmem:[#allocation10 + $0x10] sm:$0xff]
    %v1902 = vld [vmem:[#allocation10 + $0x18] sm:$0xff]
    %v1903 = vld [vmem:[#allocation10 + $0x20] sm:$0x3]
    %v1904 = vpack.c.bf16 %v1900, %v1899
    %v1905 = vpack.c.bf16 %v1902, %v1901
    %v1906 = vpack.c.bf16 %v1903, %v1903
    %v1907 = vld [vmem:[#allocation11 + $0x2a8] sm:$0xf]
    %v1908 = vld [vmem:[#allocation11 + $0x2ac] sm:$0xf]
    %v1909 = vld [vmem:[#allocation11 + $0x2b0] sm:$0xf]
    %v1910 = vld [vmem:[#allocation11 + $0x2b4] sm:$0xf]
    %v1911 = vld [vmem:[#allocation11 + $0x2b8] sm:$0xf]
    %v1912 = vld [vmem:[#allocation11 + $0x2bc] sm:$0xf]
    %v1913 = vld [vmem:[#allocation11 + $0x2c0] sm:$0xf]
    %v1914 = vld [vmem:[#allocation11 + $0x2c4] sm:$0xf]
    %v1923 = vunpack.c.l.b16 %v1907
    %v1924 = vunpack.c.l.b16 %v1908
    %v1925 = vunpack.c.l.b16 %v1909
    %v1926 = vunpack.c.l.b16 %v1910
    %v1927 = vunpack.c.l.b16 %v1911
    %v1928 = vunpack.c.l.b16 %v1912
    %v1929 = vunpack.c.l.b16 %v1913
    %v1930 = vunpack.c.l.b16 %v1914
    %v1931 = vpack.c.b16 %v1924, %v1923
    %v1932 = vpack.c.b16 %v1926, %v1925
    %v1933 = vpack.c.b16 %v1928, %v1927
    %v1934 = vpack.c.b16 %v1930, %v1929
    %v1940 = vsel %vm88, %v1904, 0
    %v1943 = vsel %vm88, %v1905, 0
    %v1946 = vsel %vm88, %v1906, 0
    %1948 = vmatpush.bf16.msra.mxu0 0
    %1949 = vmatpush.bf16.msra.mxu0 0
    %1950 = vmatpush.bf16.msra.mxu0 0
    %1951 = vmatpush.bf16.msra.mxu0 0
    %1952 = vmatpush.bf16.msra.mxu0 %v1934
    %1953 = vmatpush.bf16.msra.mxu0 %v1933
    %1954 = vmatpush.bf16.msra.mxu0 %v1932
    %1955 = vmatpush.bf16.msra.mxu0 %v1931
    %1956 = vmatmul.bf16.gmra.mxu0 %v1940
    %v1957 = vpop.f32.mrf.mxu0
    %v1958 = vadd.f32 0.0, %v1957
    %v1959 = vpop.f32.mrf.mxu0
    %v1960 = vadd.f32 0.0, %v1959
    %1961 = vmatmul.bf16.gmra.mxu0 %v1943
    %v1962 = vpop.f32.mrf.mxu0
    %v1963 = vadd.f32 0.0, %v1962
    %v1964 = vpop.f32.mrf.mxu0
    %v1965 = vadd.f32 0.0, %v1964
    %1966 = vmatmul.bf16.gmra.mxu0 %v1946
    %v1967 = vpop.f32.mrf.mxu0
    %v1968 = vadd.f32 0.0, %v1967
    %v1969 = vpop.f32.mrf.mxu0
    %1970 = vdwg.mxu0
    %v1979 = vunpack.c.l.b16 %v1891
    %v1980 = vunpack.c.l.b16 %v1892
    %v1981 = vunpack.c.l.b16 %v1893
    %v1982 = vunpack.c.l.b16 %v1894
    %v1983 = vunpack.c.l.b16 %v1895
    %v1984 = vunpack.c.l.b16 %v1896
    %v1985 = vunpack.c.l.b16 %v1897
    %v1986 = vunpack.c.l.b16 %v1898
    %v1987 = vpack.c.b16 %v1980, %v1979
    %v1988 = vpack.c.b16 %v1982, %v1981
    %v1989 = vpack.c.b16 %v1984, %v1983
    %v1990 = vpack.c.b16 %v1986, %v1985
    %v1996 = vsel %vm88, %v1888, 0
    %v1999 = vsel %vm88, %v1889, 0
    %v2002 = vsel %vm88, %v1890, 0
    %2004 = vmatpush.bf16.msra.mxu0 0
    %2005 = vmatpush.bf16.msra.mxu0 0
    %2006 = vmatpush.bf16.msra.mxu0 0
    %2007 = vmatpush.bf16.msra.mxu0 0
    %2008 = vmatpush.bf16.msra.mxu0 %v1990
    %2009 = vmatpush.bf16.msra.mxu0 %v1989
    %2010 = vmatpush.bf16.msra.mxu0 %v1988
    %2011 = vmatpush.bf16.msra.mxu0 %v1987
    %2012 = vmatmul.bf16.gmra.mxu0 %v1996
    %v2013 = vpop.f32.mrf.mxu0
    %v2014 = vadd.f32 %v1958, %v2013
    %v2015 = vpop.f32.mrf.mxu0
    %v2016 = vadd.f32 %v1960, %v2015
    %2017 = vmatmul.bf16.gmra.mxu0 %v1999
    %v2018 = vpop.f32.mrf.mxu0
    %v2019 = vadd.f32 %v1963, %v2018
    %v2020 = vpop.f32.mrf.mxu0
    %v2021 = vadd.f32 %v1965, %v2020
    %2022 = vmatmul.bf16.gmra.mxu0 %v2002
    %v2023 = vpop.f32.mrf.mxu0
    %v2024 = vadd.f32 %v1968, %v2023
    %v2025 = vpop.f32.mrf.mxu0
    %2026 = vdwg.mxu0
    %v2027 = vld [vmem:[#allocation2 + $0x1] sm:$0xff]
    %v2028 = vld [vmem:[#allocation2 + $0x9] sm:$0xff]
    %v2029 = vld [vmem:[#allocation2 + $0x11] sm:$0xff]
    %v2030 = vld [vmem:[#allocation2 + $0x19] sm:$0xff]
    %v2031 = vld [vmem:[#allocation2 + $0x21] sm:$0x3]
    %v2032 = vpack.c.bf16 %v2028, %v2027
    %v2033 = vpack.c.bf16 %v2030, %v2029
    %v2034 = vpack.c.bf16 %v2031, %v2031
    %v2035 = vld [vmem:[#allocation11 + $0x268] sm:$0xf]
    %v2036 = vld [vmem:[#allocation11 + $0x26c] sm:$0xf]
    %v2037 = vld [vmem:[#allocation11 + $0x270] sm:$0xf]
    %v2038 = vld [vmem:[#allocation11 + $0x274] sm:$0xf]
    %v2039 = vld [vmem:[#allocation11 + $0x278] sm:$0xf]
    %v2040 = vld [vmem:[#allocation11 + $0x27c] sm:$0xf]
    %v2041 = vld [vmem:[#allocation11 + $0x280] sm:$0xf]
    %v2042 = vld [vmem:[#allocation11 + $0x284] sm:$0xf]
    %v2043 = vld [vmem:[#allocation10 + $0x1] sm:$0xff]
    %v2044 = vld [vmem:[#allocation10 + $0x9] sm:$0xff]
    %v2045 = vld [vmem:[#allocation10 + $0x11] sm:$0xff]
    %v2046 = vld [vmem:[#allocation10 + $0x19] sm:$0xff]
    %v2047 = vld [vmem:[#allocation10 + $0x21] sm:$0x3]
    %v2048 = vpack.c.bf16 %v2044, %v2043
    %v2049 = vpack.c.bf16 %v2046, %v2045
    %v2050 = vpack.c.bf16 %v2047, %v2047
    %v2051 = vld [vmem:[#allocation11 + $0x2c8] sm:$0xf]
    %v2052 = vld [vmem:[#allocation11 + $0x2cc] sm:$0xf]
    %v2053 = vld [vmem:[#allocation11 + $0x2d0] sm:$0xf]
    %v2054 = vld [vmem:[#allocation11 + $0x2d4] sm:$0xf]
    %v2055 = vld [vmem:[#allocation11 + $0x2d8] sm:$0xf]
    %v2056 = vld [vmem:[#allocation11 + $0x2dc] sm:$0xf]
    %v2057 = vld [vmem:[#allocation11 + $0x2e0] sm:$0xf]
    %v2058 = vld [vmem:[#allocation11 + $0x2e4] sm:$0xf]
    %v2067 = vunpack.c.l.b16 %v2051
    %v2068 = vunpack.c.l.b16 %v2052
    %v2069 = vunpack.c.l.b16 %v2053
    %v2070 = vunpack.c.l.b16 %v2054
    %v2071 = vunpack.c.l.b16 %v2055
    %v2072 = vunpack.c.l.b16 %v2056
    %v2073 = vunpack.c.l.b16 %v2057
    %v2074 = vunpack.c.l.b16 %v2058
    %v2075 = vpack.c.b16 %v2068, %v2067
    %v2076 = vpack.c.b16 %v2070, %v2069
    %v2077 = vpack.c.b16 %v2072, %v2071
    %v2078 = vpack.c.b16 %v2074, %v2073
    %v2084 = vsel %vm88, %v2048, 0
    %v2087 = vsel %vm88, %v2049, 0
    %v2090 = vsel %vm88, %v2050, 0
    %2092 = vmatpush.bf16.msra.mxu0 0
    %2093 = vmatpush.bf16.msra.mxu0 0
    %2094 = vmatpush.bf16.msra.mxu0 0
    %2095 = vmatpush.bf16.msra.mxu0 0
    %2096 = vmatpush.bf16.msra.mxu0 %v2078
    %2097 = vmatpush.bf16.msra.mxu0 %v2077
    %2098 = vmatpush.bf16.msra.mxu0 %v2076
    %2099 = vmatpush.bf16.msra.mxu0 %v2075
    %2100 = vmatmul.bf16.gmra.mxu0 %v2084
    %v2101 = vpop.f32.mrf.mxu0
    %v2102 = vadd.f32 0.0, %v2101
    %v2103 = vpop.f32.mrf.mxu0
    %v2104 = vadd.f32 0.0, %v2103
    %2105 = vmatmul.bf16.gmra.mxu0 %v2087
    %v2106 = vpop.f32.mrf.mxu0
    %v2107 = vadd.f32 0.0, %v2106
    %v2108 = vpop.f32.mrf.mxu0
    %v2109 = vadd.f32 0.0, %v2108
    %2110 = vmatmul.bf16.gmra.mxu0 %v2090
    %v2111 = vpop.f32.mrf.mxu0
    %v2112 = vadd.f32 0.0, %v2111
    %v2113 = vpop.f32.mrf.mxu0
    %2114 = vdwg.mxu0
    %v2123 = vunpack.c.l.b16 %v2035
    %v2124 = vunpack.c.l.b16 %v2036
    %v2125 = vunpack.c.l.b16 %v2037
    %v2126 = vunpack.c.l.b16 %v2038
    %v2127 = vunpack.c.l.b16 %v2039
    %v2128 = vunpack.c.l.b16 %v2040
    %v2129 = vunpack.c.l.b16 %v2041
    %v2130 = vunpack.c.l.b16 %v2042
    %v2131 = vpack.c.b16 %v2124, %v2123
    %v2132 = vpack.c.b16 %v2126, %v2125
    %v2133 = vpack.c.b16 %v2128, %v2127
    %v2134 = vpack.c.b16 %v2130, %v2129
    %v2140 = vsel %vm88, %v2032, 0
    %v2143 = vsel %vm88, %v2033, 0
    %v2146 = vsel %vm88, %v2034, 0
    %2148 = vmatpush.bf16.msra.mxu0 0
    %2149 = vmatpush.bf16.msra.mxu0 0
    %2150 = vmatpush.bf16.msra.mxu0 0
    %2151 = vmatpush.bf16.msra.mxu0 0
    %2152 = vmatpush.bf16.msra.mxu0 %v2134
    %2153 = vmatpush.bf16.msra.mxu0 %v2133
    %2154 = vmatpush.bf16.msra.mxu0 %v2132
    %2155 = vmatpush.bf16.msra.mxu0 %v2131
    %2156 = vmatmul.bf16.gmra.mxu0 %v2140
    %v2157 = vpop.f32.mrf.mxu0
    %v2158 = vadd.f32 %v2102, %v2157
    %v2159 = vpop.f32.mrf.mxu0
    %v2160 = vadd.f32 %v2104, %v2159
    %2161 = vmatmul.bf16.gmra.mxu0 %v2143
    %v2162 = vpop.f32.mrf.mxu0
    %v2163 = vadd.f32 %v2107, %v2162
    %v2164 = vpop.f32.mrf.mxu0
    %v2165 = vadd.f32 %v2109, %v2164
    %2166 = vmatmul.bf16.gmra.mxu0 %v2146
    %v2167 = vpop.f32.mrf.mxu0
    %v2168 = vadd.f32 %v2112, %v2167
    %v2169 = vpop.f32.mrf.mxu0
    %2170 = vdwg.mxu0
    %v2171 = vadd.f32 %v2014, %v2158
    %v2172 = vadd.f32 %v2016, %v2160
    %v2173 = vadd.f32 %v2019, %v2163
    %v2174 = vadd.f32 %v2021, %v2165
    %v2175 = vadd.f32 %v2024, %v2168
    %v2176 = vld [vmem:[#allocation2 + $0x2] sm:$0xff]
    %v2177 = vld [vmem:[#allocation2 + $0xa] sm:$0xff]
    %v2178 = vld [vmem:[#allocation2 + $0x12] sm:$0xff]
    %v2179 = vld [vmem:[#allocation2 + $0x1a] sm:$0xff]
    %v2180 = vld [vmem:[#allocation2 + $0x22] sm:$0x3]
    %v2181 = vpack.c.bf16 %v2177, %v2176
    %v2182 = vpack.c.bf16 %v2179, %v2178
    %v2183 = vpack.c.bf16 %v2180, %v2180
    %v2184 = vld [vmem:[#allocation11 + $0x288] sm:$0xf]
    %v2185 = vld [vmem:[#allocation11 + $0x28c] sm:$0xf]
    %v2186 = vld [vmem:[#allocation11 + $0x290] sm:$0xf]
    %v2187 = vld [vmem:[#allocation11 + $0x294] sm:$0xf]
    %v2188 = vld [vmem:[#allocation11 + $0x298] sm:$0xf]
    %v2189 = vld [vmem:[#allocation11 + $0x29c] sm:$0xf]
    %v2190 = vld [vmem:[#allocation11 + $0x2a0] sm:$0xf]
    %v2191 = vld [vmem:[#allocation11 + $0x2a4] sm:$0xf]
    %v2192 = vld [vmem:[#allocation10 + $0x2] sm:$0xff]
    %v2193 = vld [vmem:[#allocation10 + $0xa] sm:$0xff]
    %v2194 = vld [vmem:[#allocation10 + $0x12] sm:$0xff]
    %v2195 = vld [vmem:[#allocation10 + $0x1a] sm:$0xff]
    %v2196 = vld [vmem:[#allocation10 + $0x22] sm:$0x3]
    %v2197 = vpack.c.bf16 %v2193, %v2192
    %v2198 = vpack.c.bf16 %v2195, %v2194
    %v2199 = vpack.c.bf16 %v2196, %v2196
    %v2200 = vld [vmem:[#allocation11 + $0x2e8] sm:$0xf]
    %v2201 = vld [vmem:[#allocation11 + $0x2ec] sm:$0xf]
    %v2202 = vld [vmem:[#allocation11 + $0x2f0] sm:$0xf]
    %v2203 = vld [vmem:[#allocation11 + $0x2f4] sm:$0xf]
    %v2204 = vld [vmem:[#allocation11 + $0x2f8] sm:$0xf]
    %v2205 = vld [vmem:[#allocation11 + $0x2fc] sm:$0xf]
    %v2206 = vld [vmem:[#allocation11 + $0x300] sm:$0xf]
    %v2207 = vld [vmem:[#allocation11 + $0x304] sm:$0xf]
    %v2216 = vunpack.c.l.b16 %v2200
    %v2217 = vunpack.c.l.b16 %v2201
    %v2218 = vunpack.c.l.b16 %v2202
    %v2219 = vunpack.c.l.b16 %v2203
    %v2220 = vunpack.c.l.b16 %v2204
    %v2221 = vunpack.c.l.b16 %v2205
    %v2222 = vunpack.c.l.b16 %v2206
    %v2223 = vunpack.c.l.b16 %v2207
    %v2224 = vpack.c.b16 %v2217, %v2216
    %v2225 = vpack.c.b16 %v2219, %v2218
    %v2226 = vpack.c.b16 %v2221, %v2220
    %v2227 = vpack.c.b16 %v2223, %v2222
    %v2233 = vsel %vm88, %v2197, 0
    %v2236 = vsel %vm88, %v2198, 0
    %v2239 = vsel %vm88, %v2199, 0
    %2241 = vmatpush.bf16.msra.mxu0 0
    %2242 = vmatpush.bf16.msra.mxu0 0
    %2243 = vmatpush.bf16.msra.mxu0 0
    %2244 = vmatpush.bf16.msra.mxu0 0
    %2245 = vmatpush.bf16.msra.mxu0 %v2227
    %2246 = vmatpush.bf16.msra.mxu0 %v2226
    %2247 = vmatpush.bf16.msra.mxu0 %v2225
    %2248 = vmatpush.bf16.msra.mxu0 %v2224
    %2249 = vmatmul.bf16.gmra.mxu0 %v2233
    %v2250 = vpop.f32.mrf.mxu0
    %v2251 = vadd.f32 0.0, %v2250
    %v2252 = vpop.f32.mrf.mxu0
    %v2253 = vadd.f32 0.0, %v2252
    %2254 = vmatmul.bf16.gmra.mxu0 %v2236
    %v2255 = vpop.f32.mrf.mxu0
    %v2256 = vadd.f32 0.0, %v2255
    %v2257 = vpop.f32.mrf.mxu0
    %v2258 = vadd.f32 0.0, %v2257
    %2259 = vmatmul.bf16.gmra.mxu0 %v2239
    %v2260 = vpop.f32.mrf.mxu0
    %v2261 = vadd.f32 0.0, %v2260
    %v2262 = vpop.f32.mrf.mxu0
    %2263 = vdwg.mxu0
    %v2272 = vunpack.c.l.b16 %v2184
    %v2273 = vunpack.c.l.b16 %v2185
    %v2274 = vunpack.c.l.b16 %v2186
    %v2275 = vunpack.c.l.b16 %v2187
    %v2276 = vunpack.c.l.b16 %v2188
    %v2277 = vunpack.c.l.b16 %v2189
    %v2278 = vunpack.c.l.b16 %v2190
    %v2279 = vunpack.c.l.b16 %v2191
    %v2280 = vpack.c.b16 %v2273, %v2272
    %v2281 = vpack.c.b16 %v2275, %v2274
    %v2282 = vpack.c.b16 %v2277, %v2276
    %v2283 = vpack.c.b16 %v2279, %v2278
    %v2289 = vsel %vm88, %v2181, 0
    %v2292 = vsel %vm88, %v2182, 0
    %v2295 = vsel %vm88, %v2183, 0
    %2297 = vmatpush.bf16.msra.mxu0 0
    %2298 = vmatpush.bf16.msra.mxu0 0
    %2299 = vmatpush.bf16.msra.mxu0 0
    %2300 = vmatpush.bf16.msra.mxu0 0
    %2301 = vmatpush.bf16.msra.mxu0 %v2283
    %2302 = vmatpush.bf16.msra.mxu0 %v2282
    %2303 = vmatpush.bf16.msra.mxu0 %v2281
    %2304 = vmatpush.bf16.msra.mxu0 %v2280
    %2305 = vmatmul.bf16.gmra.mxu0 %v2289
    %v2306 = vpop.f32.mrf.mxu0
    %v2307 = vadd.f32 %v2251, %v2306
    %v2308 = vpop.f32.mrf.mxu0
    %v2309 = vadd.f32 %v2253, %v2308
    %2310 = vmatmul.bf16.gmra.mxu0 %v2292
    %v2311 = vpop.f32.mrf.mxu0
    %v2312 = vadd.f32 %v2256, %v2311
    %v2313 = vpop.f32.mrf.mxu0
    %v2314 = vadd.f32 %v2258, %v2313
    %2315 = vmatmul.bf16.gmra.mxu0 %v2295
    %v2316 = vpop.f32.mrf.mxu0
    %v2317 = vadd.f32 %v2261, %v2316
    %v2318 = vpop.f32.mrf.mxu0
    %2319 = vdwg.mxu0
    %v2320 = vadd.f32 %v2171, %v2307
    %v2321 = vadd.f32 %v2172, %v2309
    %v2322 = vadd.f32 %v2173, %v2312
    %v2323 = vadd.f32 %v2174, %v2314
    %v2324 = vadd.f32 %v2175, %v2317
    %v2325 = vld [vmem:[%s2 + $0x8] sm:$0x1]
    %v2326 = vperm.slane %v2325, 0
    %v2327 = vadd.f32 %v2320, %v2326
    %v2328 = vadd.f32 %v2321, %v2326
    %v2329 = vadd.f32 %v2322, %v2326
    %v2330 = vadd.f32 %v2323, %v2326
    %v2331 = vadd.f32 %v2324, %v2326
    %v2332 = vld [vmem:[#allocation11 + $0x308] sm:$0xf]
    %v2333 = vld [vmem:[#allocation11 + $0x30c] sm:$0xf]
    %v2334 = vld [vmem:[#allocation11 + $0x310] sm:$0xf]
    %v2335 = vld [vmem:[#allocation11 + $0x314] sm:$0xf]
    %v2336 = vunpack.c.l.bf16 %v2332
    %v2337 = vunpack.c.l.bf16 %v2333
    %v2338 = vunpack.c.l.bf16 %v2334
    %v2339 = vunpack.c.l.bf16 %v2335
    %vm2340 = vcmask 277504
    %v2342 = vsel %vm2340, %v2336, 0
    %v2345 = vsel %vm2340, %v2337, 0
    %v2348 = vsel %vm2340, %v2338, 0
    %v2351 = vsel %vm2340, %v2339, 0
    %vm2353 = vcmask 1041408
    %v2355 = vsel %vm2353, %v2331, 0
    %2357 = vmatpush.msra.mxu0 0.0
    %2358 = vmatpush.msra.mxu0 0.0
    %2359 = vmatpush.msra.mxu0 0.0
    %2360 = vmatpush.msra.mxu0 0.0
    %2361 = vmatpush.msra.mxu0 0.0
    %2362 = vmatpush.msra.mxu0 0.0
    %2363 = vmatpush.msra.mxu0 0.0
    %2364 = vmatpush.msra.mxu0 0.0
    %2365 = vmatpush.msra.mxu0 0.0
    %2366 = vmatpush.msra.mxu0 0.0
    %2367 = vmatpush.msra.mxu0 0.0
    %2368 = vmatpush.msra.mxu0 %v2355
    %2369 = vmatpush.msra.mxu0 %v2330
    %2370 = vmatpush.msra.mxu0 %v2329
    %2371 = vmatpush.msra.mxu0 %v2328
    %2372 = vmatpush.msra.mxu0 %v2327
    %2373 = vmatmul.f32.gmra.mxu0 %v2342
    %v2374 = vpop.f32.mrf.mxu0
    %v2375 = vadd.f32 0.0, %v2374
    %2376 = vmatmul.f32.gmra.mxu0 %v2345
    %v2377 = vpop.f32.mrf.mxu0
    %v2378 = vadd.f32 0.0, %v2377
    %2379 = vmatmul.f32.gmra.mxu0 %v2348
    %v2380 = vpop.f32.mrf.mxu0
    %v2381 = vadd.f32 0.0, %v2380
    %2382 = vmatmul.f32.gmra.mxu0 %v2351
    %v2383 = vpop.f32.mrf.mxu0
    %v2384 = vadd.f32 0.0, %v2383
    %2385 = vdwg.mxu0
    %2386 = vst.msk [vmem:[%s3] sm:$0xff] %vm88, %v2375
    %2387 = vst.msk [vmem:[%s3 + $0x8] sm:$0xff] %vm88, %v2378
    %2388 = vst.msk [vmem:[%s3 + $0x10] sm:$0xff] %vm88, %v2381
    %2389 = vst.msk [vmem:[%s3 + $0x18] sm:$0xff] %vm88, %v2384
    // Predicated region
    $region18: #{unet_forward.1} parent=1 // pred_check
      _
    $region19: #{unet_forward.1} parent=1 // pred_check_branch
      %2391 = sbr.rel (0) target = $region21
    $region20: #{unet_forward.1} parent=1 // pred_region
      _
    $region21: #{unet_forward.1} parent=1 // pred_fallthru
      _
    // Predicated region
    $region22: #{unet_forward.1} parent=1 // pred_check
      _
    $region23: #{unet_forward.1} parent=1 // pred_check_branch
      %2393 = sbr.rel (0) target = $region25
    $region24: #{unet_forward.1} parent=1 // pred_region
      _
    $region25: #{unet_forward.1} parent=1 // pred_fallthru
      _
    %2394 = vsyncpa [#allocation12], 1

</llo_original>
